<compile_context>
chip_gen: v7x
topology: tpu7x:2x2x1
jax: 0.10.0
libtpu: 0.0.40
codegen_flags: <defaults>
</compile_context>

<pallas_src>
import numpy as np
import jax
import jax.numpy as jnp
from jax import lax
from jax.experimental import pallas as pl
from jax.experimental.pallas import tpu as pltpu

# ----------------------------- small-model config -----------------------------
BATCH = 2
CHANNELS = 3
IMG = 24
PATCH = 4
GRID_SRC = IMG // PATCH                    # 6
T_SRC = GRID_SRC * GRID_SRC                # 36 vision tokens (h = w = 6)
PATCH_DIM = CHANNELS * PATCH * PATCH       # 48
HIDDEN = 128                               # stand-in for 1152 (lane-dense: multiple of 128)
NUM_HEADS = 4
HEAD_DIM = HIDDEN // NUM_HEADS             # 32
MLP = 256
NUM_LAYERS = 2
GRID_TGT = 4
NUM_TOKENS = GRID_TGT * GRID_TGT           # 16 target tokens (!= T_SRC -> interpolate path)
LN_EPS = 1e-6
ATTN_SCALE = HEAD_DIM ** -0.5
F_NORMALIZE_EPS = 1e-12


# ----------------------------- in-kernel helpers ------------------------------
def _layer_norm(x, scale, bias):
    mu = jnp.mean(x, axis=-1, keepdims=True)
    xc = x - mu
    var = jnp.mean(xc * xc, axis=-1, keepdims=True)
    return xc * lax.rsqrt(var + LN_EPS) * scale + bias


def _gelu_tanh(x):
    # gelu_pytorch_tanh
    c = 0.7978845608028654  # sqrt(2/pi)
    return 0.5 * x * (1.0 + jnp.tanh(c * (x + 0.044715 * x * x * x)))


# ------------------------------- Pallas kernel --------------------------------
# grid = (batch, layer).  One SigLIP encoder layer per (b, l) step; the running
# activation x is resident in VMEM scratch across the layer axis.  Patch+pos
# embedding runs at l == 0; bilinear resize + L2-normalize + output store at
# l == L-1.  Per-layer weights are streamed by the BlockSpec pipeline.
def siglip_layer_kernel(
    patches_ref, pw_ref, eb_ref,
    ln1s_ref, ln1b_ref, qkvw_ref, qkvb_ref, ow_ref, ob_ref,
    ln2s_ref, ln2b_ref, f1w_ref, f1b_ref, f2w_ref, f2b_ref,
    interp_ref, out_ref, x_scr,
):
    l = pl.program_id(1)

    # ---- patch embedding (stride=P conv as a matmul) + position embedding ----
    @pl.when(l == 0)
    def _():
        emb = jnp.dot(patches_ref[0], pw_ref[...],
                      preferred_element_type=jnp.float32)
        x_scr[...] = emb + eb_ref[...]

    x = x_scr[...]

    # ---------------------- pre-LN multi-head self-attention ------------------
    h = _layer_norm(x, ln1s_ref[0], ln1b_ref[0])
    qkv = jnp.dot(h.astype(jnp.bfloat16), qkvw_ref[0],
                  preferred_element_type=jnp.float32) + qkvb_ref[0]
    q = qkv[:, 0 * HIDDEN:1 * HIDDEN]
    k = qkv[:, 1 * HIDDEN:2 * HIDDEN]
    v = qkv[:, 2 * HIDDEN:3 * HIDDEN]

    heads = []
    for hi in range(NUM_HEADS):
        lo = hi * HEAD_DIM
        qh = q[:, lo:lo + HEAD_DIM].astype(jnp.bfloat16)
        kh = k[:, lo:lo + HEAD_DIM].astype(jnp.bfloat16)
        vh = v[:, lo:lo + HEAD_DIM].astype(jnp.bfloat16)
        # scores = qh @ kh.T * scale  (contract on head dim, no explicit transpose)
        s = lax.dot_general(qh, kh, (((1,), (1,)), ((), ())),
                            preferred_element_type=jnp.float32) * ATTN_SCALE
        s = s - jnp.max(s, axis=-1, keepdims=True)
        p = jnp.exp(s)
        p = p * pl.reciprocal(jnp.sum(p, axis=-1, keepdims=True), approx=True)
        heads.append(jnp.dot(p.astype(jnp.bfloat16), vh,
                             preferred_element_type=jnp.float32))
    # one fused output projection over the concatenated head outputs
    attn = jnp.concatenate(heads, axis=-1)
    attn = jnp.dot(attn.astype(jnp.bfloat16), ow_ref[0],
                   preferred_element_type=jnp.float32) + ob_ref[0]
    x = x + attn

    # -------------------------------- pre-LN MLP ------------------------------
    h = _layer_norm(x, ln2s_ref[0], ln2b_ref[0])
    h = jnp.dot(h.astype(jnp.bfloat16), f1w_ref[0],
                preferred_element_type=jnp.float32) + f1b_ref[0]
    h = _gelu_tanh(h)
    h = jnp.dot(h.astype(jnp.bfloat16), f2w_ref[0],
                preferred_element_type=jnp.float32) + f2b_ref[0]
    x = x + h

    x_scr[...] = x

    # ---- finalize: x == hidden_states[-1] (no post_layernorm) ----------------
    @pl.when(l == pl.num_programs(1) - 1)
    def _():
        # bilinear (h,w)->(target_h,target_w) token resize as a matmul
        y = jnp.dot(interp_ref[...], x, preferred_element_type=jnp.float32)
        # F.normalize(p=2, dim=-1), eps-clamped, exact divide
        nrm = jnp.sqrt(jnp.sum(y * y, axis=-1, keepdims=True))
        out_ref[0] = y / jnp.maximum(nrm, F_NORMALIZE_EPS)


# ------------------------------ JAX-side glue ---------------------------------
def _patchify_nchw(x):
    """(B, C, H, W) -> (B, T_src, C*P*P), ordering (C, P, P) like a Conv2d weight flatten."""
    b, c, h, w = x.shape
    x = x.reshape(b, c, h // PATCH, PATCH, w // PATCH, PATCH)
    x = jnp.transpose(x, (0, 2, 4, 1, 3, 5))
    return x.reshape(b, (h // PATCH) * (w // PATCH), c * PATCH * PATCH)


def _bilinear_matrix_1d(src, dst):
    """PyTorch F.interpolate bilinear, align_corners=False, 1-D weights (dst, src)."""
    scale = src / dst
    w = np.zeros((dst, src), dtype=np.float32)
    for i in range(dst):
        s = (i + 0.5) * scale - 0.5
        s = max(s, 0.0)
        i0 = min(int(np.floor(s)), src - 1)
        i1 = min(i0 + 1, src - 1)
        lam = s - i0
        w[i, i0] += 1.0 - lam
        w[i, i1] += lam
    return w


def make_interp_matrix():
    wh = _bilinear_matrix_1d(GRID_SRC, GRID_TGT)
    ww = _bilinear_matrix_1d(GRID_SRC, GRID_TGT)
    return jnp.asarray(np.kron(wh, ww), dtype=jnp.float32)   # (T_TGT, T_SRC)


def init_params(key):
    ks = jax.random.split(key, 12)

    def nrm(k, shape):
        return (0.02 * jax.random.normal(k, shape)).astype(jnp.float32)

    L, D, M = NUM_LAYERS, HIDDEN, MLP
    return dict(
        patch_w=nrm(ks[0], (PATCH_DIM, D)),
        patch_b=jnp.zeros((1, D), jnp.float32),
        pos_emb=nrm(ks[1], (T_SRC, D)),
        ln1_s=jnp.ones((L, 1, D), jnp.float32),
        ln1_b=jnp.zeros((L, 1, D), jnp.float32),
        q_w=nrm(ks[2], (L, D, D)), q_b=jnp.zeros((L, 1, D), jnp.float32),
        k_w=nrm(ks[3], (L, D, D)), k_b=jnp.zeros((L, 1, D), jnp.float32),
        v_w=nrm(ks[4], (L, D, D)), v_b=jnp.zeros((L, 1, D), jnp.float32),
        o_w=nrm(ks[5], (L, D, D)), o_b=jnp.zeros((L, 1, D), jnp.float32),
        ln2_s=jnp.ones((L, 1, D), jnp.float32),
        ln2_b=jnp.zeros((L, 1, D), jnp.float32),
        f1_w=nrm(ks[6], (L, D, M)), f1_b=jnp.zeros((L, 1, M), jnp.float32),
        f2_w=nrm(ks[7], (L, M, D)), f2_b=jnp.zeros((L, 1, D), jnp.float32),
    )


def _const_spec(shape):
    """Grid-invariant operand (weights shared by every (b, l) step)."""
    n = len(shape)
    return pl.BlockSpec(shape, lambda b, l, _n=n: (0,) * _n)


def _layer_spec(shape):
    """Per-layer operand of shape (L, X, Y): stream one layer slice per grid step."""
    return pl.BlockSpec((1,) + tuple(shape[1:]), lambda b, l: (l, 0, 0))


def siglip_wrapper_forward(x_nchw, params, interp):
    """Equivalent of SiglipWrapper(x): returns (B, 1 + NUM_TOKENS, HIDDEN)."""
    if x_nchw.ndim == 3:          # images.dim() == 3 -> unsqueeze(0)
        x_nchw = x_nchw[None]
    patches = _patchify_nchw(x_nchw.astype(jnp.float32)).astype(jnp.bfloat16)
    b = patches.shape[0]

    bf16 = jnp.bfloat16
    patch_w = params['patch_w'].astype(bf16)
    embed_bias = params['pos_emb'] + params['patch_b']                     # (T_SRC, D) f32
    qkv_w = jnp.concatenate([params['q_w'], params['k_w'], params['v_w']],
                            axis=-1).astype(bf16)                          # (L, D, 3D)
    qkv_b = jnp.concatenate([params['q_b'], params['k_b'], params['v_b']],
                            axis=-1)                                       # (L, 1, 3D)
    o_w = params['o_w'].astype(bf16)
    f1_w = params['f1_w'].astype(bf16)
    f2_w = params['f2_w'].astype(bf16)

    operands = (
        patches, patch_w, embed_bias,
        params['ln1_s'], params['ln1_b'], qkv_w, qkv_b, o_w, params['o_b'],
        params['ln2_s'], params['ln2_b'], f1_w, params['f1_b'], f2_w, params['f2_b'],
        interp,
    )

    in_specs = [
        pl.BlockSpec((1, T_SRC, PATCH_DIM), lambda bb, ll: (bb, 0, 0)),   # patches
        _const_spec(patch_w.shape),                                       # patch_w
        _const_spec(embed_bias.shape),                                    # pos + bias
        _layer_spec(params['ln1_s'].shape), _layer_spec(params['ln1_b'].shape),
        _layer_spec(qkv_w.shape), _layer_spec(qkv_b.shape),
        _layer_spec(o_w.shape), _layer_spec(params['o_b'].shape),
        _layer_spec(params['ln2_s'].shape), _layer_spec(params['ln2_b'].shape),
        _layer_spec(f1_w.shape), _layer_spec(params['f1_b'].shape),
        _layer_spec(f2_w.shape), _layer_spec(params['f2_b'].shape),
        _const_spec(interp.shape),                                        # interp matrix
    ]

    latent = pl.pallas_call(
        siglip_layer_kernel,
        out_shape=jax.ShapeDtypeStruct((b, NUM_TOKENS, HIDDEN), jnp.float32),
        grid=(b, NUM_LAYERS),
        in_specs=in_specs,
        out_specs=pl.BlockSpec((1, NUM_TOKENS, HIDDEN), lambda bb, ll: (bb, 0, 0)),
        scratch_shapes=[pltpu.VMEM((T_SRC, HIDDEN), jnp.float32)],
        compiler_params=pltpu.CompilerParams(
            dimension_semantics=("parallel", "arbitrary"),
            vmem_limit_bytes=64 * 1024 * 1024,
        ),
    )(*operands)

    # torch.cat([empty_cls, latent], dim=1) -- zero CLS row added in the wrapper so the
    # kernel's output stores stay lane-dense and offset-0.
    cls = jnp.zeros((b, 1, HIDDEN), latent.dtype)
    return jnp.concatenate([cls, latent], axis=1)


# ----------------------------------- main --------------------------------------
if __name__ == "__main__":
    key = jax.random.PRNGKey(0)
    k_img, k_par = jax.random.split(key)

    x = jax.random.normal(k_img, (BATCH, CHANNELS, IMG, IMG), dtype=jnp.float32)  # NCHW
    params = init_params(k_par)
    interp = make_interp_matrix()

    out = siglip_wrapper_forward(x, params, interp)
    out = jax.block_until_ready(out)

    # lightweight sanity checks on the semantics
    assert out.shape == (BATCH, 1 + NUM_TOKENS, HIDDEN), out.shape
    assert out.dtype == jnp.float32
    assert bool(jnp.all(jnp.isfinite(out)))
    # row 0 is the zero CLS token
    assert bool(jnp.all(out[:, 0, :] == 0.0))
    # remaining rows are L2-normalized
    norms = jnp.linalg.norm(out[:, 1:, :], axis=-1)
    assert bool(jnp.all(jnp.abs(norms - 1.0) < 1e-4))

    print("KERNEL_OK")
</pallas_src>

<mosaic_0001>
module attributes {stable_mosaic.version = 11 : i64} {
  func.func @siglip_layer_kernel(%arg0: i32, %arg1: i32, %arg2: memref<1x36x48xbf16, #tpu.memory_space<vmem>>, %arg3: memref<48x128xbf16, #tpu.memory_space<vmem>>, %arg4: memref<36x128xf32, #tpu.memory_space<vmem>>, %arg5: memref<1x1x128xf32, #tpu.memory_space<vmem>>, %arg6: memref<1x1x128xf32, #tpu.memory_space<vmem>>, %arg7: memref<1x128x384xbf16, #tpu.memory_space<vmem>>, %arg8: memref<1x1x384xf32, #tpu.memory_space<vmem>>, %arg9: memref<1x128x128xbf16, #tpu.memory_space<vmem>>, %arg10: memref<1x1x128xf32, #tpu.memory_space<vmem>>, %arg11: memref<1x1x128xf32, #tpu.memory_space<vmem>>, %arg12: memref<1x1x128xf32, #tpu.memory_space<vmem>>, %arg13: memref<1x128x256xbf16, #tpu.memory_space<vmem>>, %arg14: memref<1x1x256xf32, #tpu.memory_space<vmem>>, %arg15: memref<1x256x128xbf16, #tpu.memory_space<vmem>>, %arg16: memref<1x1x128xf32, #tpu.memory_space<vmem>>, %arg17: memref<16x36xf32, #tpu.memory_space<vmem>>, %arg18: memref<1x16x128xf32, #tpu.memory_space<vmem>>, %arg19: memref<36x128xf32, #tpu.memory_space<vmem>>) attributes {dimension_semantics = [#tpu.dimension_semantics<parallel>, #tpu.dimension_semantics<arbitrary>], iteration_bounds = array<i64: 2, 2>, scalar_prefetch = 0 : i64, scratch_operands = 1 : i64, tpu.core_type = #tpu.core_type<tc>, window_params = [{transform_indices = @transform_0, window_bounds = array<i64: 1, 36, 48>}, {pipeline_mode = #tpu.pipeline_mode<synchronous>, transform_indices = @transform_1, window_bounds = array<i64: 48, 128>}, {pipeline_mode = #tpu.pipeline_mode<synchronous>, transform_indices = @transform_2, window_bounds = array<i64: 36, 128>}, {transform_indices = @transform_3, window_bounds = array<i64: 1, 1, 128>}, {transform_indices = @transform_4, window_bounds = array<i64: 1, 1, 128>}, {transform_indices = @transform_5, window_bounds = array<i64: 1, 128, 384>}, {transform_indices = @transform_6, window_bounds = array<i64: 1, 1, 384>}, {transform_indices = @transform_7, window_bounds = array<i64: 1, 128, 128>}, {transform_indices = @transform_8, window_bounds = array<i64: 1, 1, 128>}, {transform_indices = @transform_9, window_bounds = array<i64: 1, 1, 128>}, {transform_indices = @transform_10, window_bounds = array<i64: 1, 1, 128>}, {transform_indices = @transform_11, window_bounds = array<i64: 1, 128, 256>}, {transform_indices = @transform_12, window_bounds = array<i64: 1, 1, 256>}, {transform_indices = @transform_13, window_bounds = array<i64: 1, 256, 128>}, {transform_indices = @transform_14, window_bounds = array<i64: 1, 1, 128>}, {pipeline_mode = #tpu.pipeline_mode<synchronous>, transform_indices = @transform_15, window_bounds = array<i64: 16, 36>}, {transform_indices = @transform_16, window_bounds = array<i64: 1, 16, 128>}]} {
    %c0_i32 = arith.constant 0 : i32
    %0 = arith.cmpi eq, %arg1, %c0_i32 : i32
    %1 = arith.extui %0 : i1 to i32
    %c0_i32_0 = arith.constant 0 : i32
    %2 = arith.cmpi ne, %1, %c0_i32_0 : i32
    scf.if %2 {
      %c0_78 = arith.constant 0 : index
      %c0_79 = arith.constant 0 : index
      %c0_80 = arith.constant 0 : index
      %191 = vector.load %arg2[%c0_78, %c0_79, %c0_80] : memref<1x36x48xbf16, #tpu.memory_space<vmem>>, vector<1x36x48xbf16>
      %192 = vector.shape_cast %191 : vector<1x36x48xbf16> to vector<36x48xbf16>
      %c0_81 = arith.constant 0 : index
      %c0_82 = arith.constant 0 : index
      %193 = vector.load %arg3[%c0_81, %c0_82] : memref<48x128xbf16, #tpu.memory_space<vmem>>, vector<48x128xbf16>
      %cst_83 = arith.constant dense<0.000000e+00> : vector<36x128xf32>
      %194 = tpu.matmul %192, %193, %cst_83 {dimension_numbers = #tpu.dot_dimension_numbers<[1], [0], [0], [1], [0, 0, 1, 1], [], []>} : vector<36x48xbf16>, vector<48x128xbf16>, vector<36x128xf32> -> vector<36x128xf32>
      %c0_84 = arith.constant 0 : index
      %c0_85 = arith.constant 0 : index
      %195 = vector.load %arg4[%c0_84, %c0_85] : memref<36x128xf32, #tpu.memory_space<vmem>>, vector<36x128xf32>
      %196 = arith.addf %194, %195 : vector<36x128xf32>
      %c0_86 = arith.constant 0 : index
      %c0_87 = arith.constant 0 : index
      %197 = vector.load %arg19[%c0_86, %c0_87] : memref<36x128xf32, #tpu.memory_space<vmem>>, vector<36x128xf32>
      tpu.vector_store %arg19[%c0_86, %c0_87], %196 {strides = array<i32>} : memref<36x128xf32, #tpu.memory_space<vmem>>, vector<36x128xf32>,
    } else {
    }
    %c0 = arith.constant 0 : index
    %c0_1 = arith.constant 0 : index
    %3 = vector.load %arg19[%c0, %c0_1] : memref<36x128xf32, #tpu.memory_space<vmem>>, vector<36x128xf32>
    %c0_2 = arith.constant 0 : index
    %c0_3 = arith.constant 0 : index
    %c0_4 = arith.constant 0 : index
    %4 = vector.load %arg5[%c0_2, %c0_3, %c0_4] : memref<1x1x128xf32, #tpu.memory_space<vmem>>, vector<1x1x128xf32>
    %5 = vector.shape_cast %4 : vector<1x1x128xf32> to vector<1x128xf32>
    %c0_5 = arith.constant 0 : index
    %c0_6 = arith.constant 0 : index
    %c0_7 = arith.constant 0 : index
    %6 = vector.load %arg6[%c0_5, %c0_6, %c0_7] : memref<1x1x128xf32, #tpu.memory_space<vmem>>, vector<1x1x128xf32>
    %7 = vector.shape_cast %6 : vector<1x1x128xf32> to vector<1x128xf32>
    %cst = arith.constant dense<0.000000e+00> : vector<36xf32>
    %8 = vector.multi_reduction <add>, %3, %cst [1] : vector<36x128xf32> to vector<36xf32>
    %9 = vector.shape_cast %8 : vector<36xf32> to vector<36x1xf32>
    %cst_8 = arith.constant 1.280000e+02 : f32
    %10 = vector.broadcast %cst_8 : f32 to vector<36x1xf32>
    %11 = arith.divf %9, %10 : vector<36x1xf32>
    %12 = vector.broadcast %11 : vector<36x1xf32> to vector<36x128xf32>
    %13 = arith.subf %3, %12 : vector<36x128xf32>
    %14 = arith.mulf %13, %13 : vector<36x128xf32>
    %cst_9 = arith.constant dense<0.000000e+00> : vector<36xf32>
    %15 = vector.multi_reduction <add>, %14, %cst_9 [1] : vector<36x128xf32> to vector<36xf32>
    %16 = vector.shape_cast %15 : vector<36xf32> to vector<36x1xf32>
    %cst_10 = arith.constant 1.280000e+02 : f32
    %17 = vector.broadcast %cst_10 : f32 to vector<36x1xf32>
    %18 = arith.divf %16, %17 : vector<36x1xf32>
    %cst_11 = arith.constant 9.99999997E-7 : f32
    %19 = vector.broadcast %cst_11 : f32 to vector<36x1xf32>
    %20 = arith.addf %18, %19 : vector<36x1xf32>
    %21 = math.rsqrt %20 : vector<36x1xf32>
    %22 = vector.broadcast %21 : vector<36x1xf32> to vector<36x128xf32>
    %23 = arith.mulf %13, %22 : vector<36x128xf32>
    %24 = vector.broadcast %5 : vector<1x128xf32> to vector<36x128xf32>
    %25 = arith.mulf %23, %24 : vector<36x128xf32>
    %26 = vector.broadcast %7 : vector<1x128xf32> to vector<36x128xf32>
    %27 = arith.addf %25, %26 : vector<36x128xf32>
    %28 = arith.truncf %27 : vector<36x128xf32> to vector<36x128xbf16>
    %c0_12 = arith.constant 0 : index
    %c0_13 = arith.constant 0 : index
    %c0_14 = arith.constant 0 : index
    %29 = vector.load %arg7[%c0_12, %c0_13, %c0_14] : memref<1x128x384xbf16, #tpu.memory_space<vmem>>, vector<1x128x384xbf16>
    %30 = vector.shape_cast %29 : vector<1x128x384xbf16> to vector<128x384xbf16>
    %cst_15 = arith.constant dense<0.000000e+00> : vector<36x384xf32>
    %31 = tpu.matmul %28, %30, %cst_15 {dimension_numbers = #tpu.dot_dimension_numbers<[1], [0], [0], [1], [0, 0, 1, 1], [], []>} : vector<36x128xbf16>, vector<128x384xbf16>, vector<36x384xf32> -> vector<36x384xf32>
    %c0_16 = arith.constant 0 : index
    %c0_17 = arith.constant 0 : index
    %c0_18 = arith.constant 0 : index
    %32 = vector.load %arg8[%c0_16, %c0_17, %c0_18] : memref<1x1x384xf32, #tpu.memory_space<vmem>>, vector<1x1x384xf32>
    %33 = vector.shape_cast %32 : vector<1x1x384xf32> to vector<1x384xf32>
    %34 = vector.broadcast %33 : vector<1x384xf32> to vector<36x384xf32>
    %35 = arith.addf %31, %34 : vector<36x384xf32>
    %36 = vector.extract_strided_slice %35 {offsets = [0, 0], sizes = [36, 128], strides = [1, 1]} : vector<36x384xf32> to vector<36x128xf32>
    %37 = vector.extract_strided_slice %35 {offsets = [0, 128], sizes = [36, 128], strides = [1, 1]} : vector<36x384xf32> to vector<36x128xf32>
    %38 = vector.extract_strided_slice %35 {offsets = [0, 256], sizes = [36, 128], strides = [1, 1]} : vector<36x384xf32> to vector<36x128xf32>
    %39 = vector.extract_strided_slice %36 {offsets = [0, 0], sizes = [36, 32], strides = [1, 1]} : vector<36x128xf32> to vector<36x32xf32>
    %40 = arith.truncf %39 : vector<36x32xf32> to vector<36x32xbf16>
    %41 = vector.extract_strided_slice %37 {offsets = [0, 0], sizes = [36, 32], strides = [1, 1]} : vector<36x128xf32> to vector<36x32xf32>
    %42 = arith.truncf %41 : vector<36x32xf32> to vector<36x32xbf16>
    %43 = vector.extract_strided_slice %38 {offsets = [0, 0], sizes = [36, 32], strides = [1, 1]} : vector<36x128xf32> to vector<36x32xf32>
    %44 = arith.truncf %43 : vector<36x32xf32> to vector<36x32xbf16>
    %cst_19 = arith.constant dense<0.000000e+00> : vector<36x36xf32>
    %45 = tpu.matmul %40, %42, %cst_19 {dimension_numbers = #tpu.dot_dimension_numbers<[1], [1], [0], [0], [0, 0, 1, 0], [], []>} : vector<36x32xbf16>, vector<36x32xbf16>, vector<36x36xf32> -> vector<36x36xf32>
    %cst_20 = arith.constant 0.176776692 : f32
    %46 = vector.broadcast %cst_20 : f32 to vector<36x36xf32>
    %47 = arith.mulf %45, %46 : vector<36x36xf32>
    %cst_21 = arith.constant dense<0xFF800000> : vector<36xf32>
    %48 = vector.multi_reduction <maximumf>, %47, %cst_21 [1] : vector<36x36xf32> to vector<36xf32>
    %49 = vector.shape_cast %48 : vector<36xf32> to vector<36x1xf32>
    %50 = vector.broadcast %49 : vector<36x1xf32> to vector<36x36xf32>
    %51 = arith.subf %47, %50 : vector<36x36xf32>
    %52 = math.exp %51 : vector<36x36xf32>
    %cst_22 = arith.constant dense<0.000000e+00> : vector<36xf32>
    %53 = vector.multi_reduction <add>, %52, %cst_22 [1] : vector<36x36xf32> to vector<36xf32>
    %54 = vector.shape_cast %53 : vector<36xf32> to vector<36x1xf32>
    %55 = tpu.reciprocal %54 {approx = true} : vector<36x1xf32> -> vector<36x1xf32>
    %56 = vector.broadcast %55 : vector<36x1xf32> to vector<36x36xf32>
    %57 = arith.mulf %52, %56 : vector<36x36xf32>
    %58 = arith.truncf %57 : vector<36x36xf32> to vector<36x36xbf16>
    %cst_23 = arith.constant dense<0.000000e+00> : vector<36x32xf32>
    %59 = tpu.matmul %58, %44, %cst_23 {dimension_numbers = #tpu.dot_dimension_numbers<[1], [0], [0], [1], [0, 0, 1, 1], [], []>} : vector<36x36xbf16>, vector<36x32xbf16>, vector<36x32xf32> -> vector<36x32xf32>
    %60 = vector.extract_strided_slice %36 {offsets = [0, 32], sizes = [36, 32], strides = [1, 1]} : vector<36x128xf32> to vector<36x32xf32>
    %61 = arith.truncf %60 : vector<36x32xf32> to vector<36x32xbf16>
    %62 = vector.extract_strided_slice %37 {offsets = [0, 32], sizes = [36, 32], strides = [1, 1]} : vector<36x128xf32> to vector<36x32xf32>
    %63 = arith.truncf %62 : vector<36x32xf32> to vector<36x32xbf16>
    %64 = vector.extract_strided_slice %38 {offsets = [0, 32], sizes = [36, 32], strides = [1, 1]} : vector<36x128xf32> to vector<36x32xf32>
    %65 = arith.truncf %64 : vector<36x32xf32> to vector<36x32xbf16>
    %cst_24 = arith.constant dense<0.000000e+00> : vector<36x36xf32>
    %66 = tpu.matmul %61, %63, %cst_24 {dimension_numbers = #tpu.dot_dimension_numbers<[1], [1], [0], [0], [0, 0, 1, 0], [], []>} : vector<36x32xbf16>, vector<36x32xbf16>, vector<36x36xf32> -> vector<36x36xf32>
    %cst_25 = arith.constant 0.176776692 : f32
    %67 = vector.broadcast %cst_25 : f32 to vector<36x36xf32>
    %68 = arith.mulf %66, %67 : vector<36x36xf32>
    %cst_26 = arith.constant dense<0xFF800000> : vector<36xf32>
    %69 = vector.multi_reduction <maximumf>, %68, %cst_26 [1] : vector<36x36xf32> to vector<36xf32>
    %70 = vector.shape_cast %69 : vector<36xf32> to vector<36x1xf32>
    %71 = vector.broadcast %70 : vector<36x1xf32> to vector<36x36xf32>
    %72 = arith.subf %68, %71 : vector<36x36xf32>
    %73 = math.exp %72 : vector<36x36xf32>
    %cst_27 = arith.constant dense<0.000000e+00> : vector<36xf32>
    %74 = vector.multi_reduction <add>, %73, %cst_27 [1] : vector<36x36xf32> to vector<36xf32>
    %75 = vector.shape_cast %74 : vector<36xf32> to vector<36x1xf32>
    %76 = tpu.reciprocal %75 {approx = true} : vector<36x1xf32> -> vector<36x1xf32>
    %77 = vector.broadcast %76 : vector<36x1xf32> to vector<36x36xf32>
    %78 = arith.mulf %73, %77 : vector<36x36xf32>
    %79 = arith.truncf %78 : vector<36x36xf32> to vector<36x36xbf16>
    %cst_28 = arith.constant dense<0.000000e+00> : vector<36x32xf32>
    %80 = tpu.matmul %79, %65, %cst_28 {dimension_numbers = #tpu.dot_dimension_numbers<[1], [0], [0], [1], [0, 0, 1, 1], [], []>} : vector<36x36xbf16>, vector<36x32xbf16>, vector<36x32xf32> -> vector<36x32xf32>
    %81 = vector.extract_strided_slice %36 {offsets = [0, 64], sizes = [36, 32], strides = [1, 1]} : vector<36x128xf32> to vector<36x32xf32>
    %82 = arith.truncf %81 : vector<36x32xf32> to vector<36x32xbf16>
    %83 = vector.extract_strided_slice %37 {offsets = [0, 64], sizes = [36, 32], strides = [1, 1]} : vector<36x128xf32> to vector<36x32xf32>
    %84 = arith.truncf %83 : vector<36x32xf32> to vector<36x32xbf16>
    %85 = vector.extract_strided_slice %38 {offsets = [0, 64], sizes = [36, 32], strides = [1, 1]} : vector<36x128xf32> to vector<36x32xf32>
    %86 = arith.truncf %85 : vector<36x32xf32> to vector<36x32xbf16>
    %cst_29 = arith.constant dense<0.000000e+00> : vector<36x36xf32>
    %87 = tpu.matmul %82, %84, %cst_29 {dimension_numbers = #tpu.dot_dimension_numbers<[1], [1], [0], [0], [0, 0, 1, 0], [], []>} : vector<36x32xbf16>, vector<36x32xbf16>, vector<36x36xf32> -> vector<36x36xf32>
    %cst_30 = arith.constant 0.176776692 : f32
    %88 = vector.broadcast %cst_30 : f32 to vector<36x36xf32>
    %89 = arith.mulf %87, %88 : vector<36x36xf32>
    %cst_31 = arith.constant dense<0xFF800000> : vector<36xf32>
    %90 = vector.multi_reduction <maximumf>, %89, %cst_31 [1] : vector<36x36xf32> to vector<36xf32>
    %91 = vector.shape_cast %90 : vector<36xf32> to vector<36x1xf32>
    %92 = vector.broadcast %91 : vector<36x1xf32> to vector<36x36xf32>
    %93 = arith.subf %89, %92 : vector<36x36xf32>
    %94 = math.exp %93 : vector<36x36xf32>
    %cst_32 = arith.constant dense<0.000000e+00> : vector<36xf32>
    %95 = vector.multi_reduction <add>, %94, %cst_32 [1] : vector<36x36xf32> to vector<36xf32>
    %96 = vector.shape_cast %95 : vector<36xf32> to vector<36x1xf32>
    %97 = tpu.reciprocal %96 {approx = true} : vector<36x1xf32> -> vector<36x1xf32>
    %98 = vector.broadcast %97 : vector<36x1xf32> to vector<36x36xf32>
    %99 = arith.mulf %94, %98 : vector<36x36xf32>
    %100 = arith.truncf %99 : vector<36x36xf32> to vector<36x36xbf16>
    %cst_33 = arith.constant dense<0.000000e+00> : vector<36x32xf32>
    %101 = tpu.matmul %100, %86, %cst_33 {dimension_numbers = #tpu.dot_dimension_numbers<[1], [0], [0], [1], [0, 0, 1, 1], [], []>} : vector<36x36xbf16>, vector<36x32xbf16>, vector<36x32xf32> -> vector<36x32xf32>
    %102 = vector.extract_strided_slice %36 {offsets = [0, 96], sizes = [36, 32], strides = [1, 1]} : vector<36x128xf32> to vector<36x32xf32>
    %103 = arith.truncf %102 : vector<36x32xf32> to vector<36x32xbf16>
    %104 = vector.extract_strided_slice %37 {offsets = [0, 96], sizes = [36, 32], strides = [1, 1]} : vector<36x128xf32> to vector<36x32xf32>
    %105 = arith.truncf %104 : vector<36x32xf32> to vector<36x32xbf16>
    %106 = vector.extract_strided_slice %38 {offsets = [0, 96], sizes = [36, 32], strides = [1, 1]} : vector<36x128xf32> to vector<36x32xf32>
    %107 = arith.truncf %106 : vector<36x32xf32> to vector<36x32xbf16>
    %cst_34 = arith.constant dense<0.000000e+00> : vector<36x36xf32>
    %108 = tpu.matmul %103, %105, %cst_34 {dimension_numbers = #tpu.dot_dimension_numbers<[1], [1], [0], [0], [0, 0, 1, 0], [], []>} : vector<36x32xbf16>, vector<36x32xbf16>, vector<36x36xf32> -> vector<36x36xf32>
    %cst_35 = arith.constant 0.176776692 : f32
    %109 = vector.broadcast %cst_35 : f32 to vector<36x36xf32>
    %110 = arith.mulf %108, %109 : vector<36x36xf32>
    %cst_36 = arith.constant dense<0xFF800000> : vector<36xf32>
    %111 = vector.multi_reduction <maximumf>, %110, %cst_36 [1] : vector<36x36xf32> to vector<36xf32>
    %112 = vector.shape_cast %111 : vector<36xf32> to vector<36x1xf32>
    %113 = vector.broadcast %112 : vector<36x1xf32> to vector<36x36xf32>
    %114 = arith.subf %110, %113 : vector<36x36xf32>
    %115 = math.exp %114 : vector<36x36xf32>
    %cst_37 = arith.constant dense<0.000000e+00> : vector<36xf32>
    %116 = vector.multi_reduction <add>, %115, %cst_37 [1] : vector<36x36xf32> to vector<36xf32>
    %117 = vector.shape_cast %116 : vector<36xf32> to vector<36x1xf32>
    %118 = tpu.reciprocal %117 {approx = true} : vector<36x1xf32> -> vector<36x1xf32>
    %119 = vector.broadcast %118 : vector<36x1xf32> to vector<36x36xf32>
    %120 = arith.mulf %115, %119 : vector<36x36xf32>
    %121 = arith.truncf %120 : vector<36x36xf32> to vector<36x36xbf16>
    %cst_38 = arith.constant dense<0.000000e+00> : vector<36x32xf32>
    %122 = tpu.matmul %121, %107, %cst_38 {dimension_numbers = #tpu.dot_dimension_numbers<[1], [0], [0], [1], [0, 0, 1, 1], [], []>} : vector<36x36xbf16>, vector<36x32xbf16>, vector<36x32xf32> -> vector<36x32xf32>
    %123 = tpu.concatenate %59, %80, %101, %122 in 1 : vector<36x32xf32>, vector<36x32xf32>, vector<36x32xf32>, vector<36x32xf32> -> vector<36x128xf32>
    %124 = arith.truncf %123 : vector<36x128xf32> to vector<36x128xbf16>
    %c0_39 = arith.constant 0 : index
    %c0_40 = arith.constant 0 : index
    %c0_41 = arith.constant 0 : index
    %125 = vector.load %arg9[%c0_39, %c0_40, %c0_41] : memref<1x128x128xbf16, #tpu.memory_space<vmem>>, vector<1x128x128xbf16>
    %126 = vector.shape_cast %125 : vector<1x128x128xbf16> to vector<128x128xbf16>
    %cst_42 = arith.constant dense<0.000000e+00> : vector<36x128xf32>
    %127 = tpu.matmul %124, %126, %cst_42 {dimension_numbers = #tpu.dot_dimension_numbers<[1], [0], [0], [1], [0, 0, 1, 1], [], []>} : vector<36x128xbf16>, vector<128x128xbf16>, vector<36x128xf32> -> vector<36x128xf32>
    %c0_43 = arith.constant 0 : index
    %c0_44 = arith.constant 0 : index
    %c0_45 = arith.constant 0 : index
    %128 = vector.load %arg10[%c0_43, %c0_44, %c0_45] : memref<1x1x128xf32, #tpu.memory_space<vmem>>, vector<1x1x128xf32>
    %129 = vector.shape_cast %128 : vector<1x1x128xf32> to vector<1x128xf32>
    %130 = vector.broadcast %129 : vector<1x128xf32> to vector<36x128xf32>
    %131 = arith.addf %127, %130 : vector<36x128xf32>
    %132 = arith.addf %3, %131 : vector<36x128xf32>
    %c0_46 = arith.constant 0 : index
    %c0_47 = arith.constant 0 : index
    %c0_48 = arith.constant 0 : index
    %133 = vector.load %arg11[%c0_46, %c0_47, %c0_48] : memref<1x1x128xf32, #tpu.memory_space<vmem>>, vector<1x1x128xf32>
    %134 = vector.shape_cast %133 : vector<1x1x128xf32> to vector<1x128xf32>
    %c0_49 = arith.constant 0 : index
    %c0_50 = arith.constant 0 : index
    %c0_51 = arith.constant 0 : index
    %135 = vector.load %arg12[%c0_49, %c0_50, %c0_51] : memref<1x1x128xf32, #tpu.memory_space<vmem>>, vector<1x1x128xf32>
    %136 = vector.shape_cast %135 : vector<1x1x128xf32> to vector<1x128xf32>
    %cst_52 = arith.constant dense<0.000000e+00> : vector<36xf32>
    %137 = vector.multi_reduction <add>, %132, %cst_52 [1] : vector<36x128xf32> to vector<36xf32>
    %138 = vector.shape_cast %137 : vector<36xf32> to vector<36x1xf32>
    %cst_53 = arith.constant 1.280000e+02 : f32
    %139 = vector.broadcast %cst_53 : f32 to vector<36x1xf32>
    %140 = arith.divf %138, %139 : vector<36x1xf32>
    %141 = vector.broadcast %140 : vector<36x1xf32> to vector<36x128xf32>
    %142 = arith.subf %132, %141 : vector<36x128xf32>
    %143 = arith.mulf %142, %142 : vector<36x128xf32>
    %cst_54 = arith.constant dense<0.000000e+00> : vector<36xf32>
    %144 = vector.multi_reduction <add>, %143, %cst_54 [1] : vector<36x128xf32> to vector<36xf32>
    %145 = vector.shape_cast %144 : vector<36xf32> to vector<36x1xf32>
    %cst_55 = arith.constant 1.280000e+02 : f32
    %146 = vector.broadcast %cst_55 : f32 to vector<36x1xf32>
    %147 = arith.divf %145, %146 : vector<36x1xf32>
    %cst_56 = arith.constant 9.99999997E-7 : f32
    %148 = vector.broadcast %cst_56 : f32 to vector<36x1xf32>
    %149 = arith.addf %147, %148 : vector<36x1xf32>
    %150 = math.rsqrt %149 : vector<36x1xf32>
    %151 = vector.broadcast %150 : vector<36x1xf32> to vector<36x128xf32>
    %152 = arith.mulf %142, %151 : vector<36x128xf32>
    %153 = vector.broadcast %134 : vector<1x128xf32> to vector<36x128xf32>
    %154 = arith.mulf %152, %153 : vector<36x128xf32>
    %155 = vector.broadcast %136 : vector<1x128xf32> to vector<36x128xf32>
    %156 = arith.addf %154, %155 : vector<36x128xf32>
    %157 = arith.truncf %156 : vector<36x128xf32> to vector<36x128xbf16>
    %c0_57 = arith.constant 0 : index
    %c0_58 = arith.constant 0 : index
    %c0_59 = arith.constant 0 : index
    %158 = vector.load %arg13[%c0_57, %c0_58, %c0_59] : memref<1x128x256xbf16, #tpu.memory_space<vmem>>, vector<1x128x256xbf16>
    %159 = vector.shape_cast %158 : vector<1x128x256xbf16> to vector<128x256xbf16>
    %cst_60 = arith.constant dense<0.000000e+00> : vector<36x256xf32>
    %160 = tpu.matmul %157, %159, %cst_60 {dimension_numbers = #tpu.dot_dimension_numbers<[1], [0], [0], [1], [0, 0, 1, 1], [], []>} : vector<36x128xbf16>, vector<128x256xbf16>, vector<36x256xf32> -> vector<36x256xf32>
    %c0_61 = arith.constant 0 : index
    %c0_62 = arith.constant 0 : index
    %c0_63 = arith.constant 0 : index
    %161 = vector.load %arg14[%c0_61, %c0_62, %c0_63] : memref<1x1x256xf32, #tpu.memory_space<vmem>>, vector<1x1x256xf32>
    %162 = vector.shape_cast %161 : vector<1x1x256xf32> to vector<1x256xf32>
    %163 = vector.broadcast %162 : vector<1x256xf32> to vector<36x256xf32>
    %164 = arith.addf %160, %163 : vector<36x256xf32>
    %cst_64 = arith.constant 5.000000e-01 : f32
    %165 = vector.broadcast %cst_64 : f32 to vector<36x256xf32>
    %166 = arith.mulf %165, %164 : vector<36x256xf32>
    %cst_65 = arith.constant 4.471500e-02 : f32
    %167 = vector.broadcast %cst_65 : f32 to vector<36x256xf32>
    %168 = arith.mulf %167, %164 : vector<36x256xf32>
    %169 = arith.mulf %168, %164 : vector<36x256xf32>
    %170 = arith.mulf %169, %164 : vector<36x256xf32>
    %171 = arith.addf %164, %170 : vector<36x256xf32>
    %cst_66 = arith.constant 0.797884583 : f32
    %172 = vector.broadcast %cst_66 : f32 to vector<36x256xf32>
    %173 = arith.mulf %172, %171 : vector<36x256xf32>
    %174 = math.tanh %173 : vector<36x256xf32>
    %cst_67 = arith.constant 1.000000e+00 : f32
    %175 = vector.broadcast %cst_67 : f32 to vector<36x256xf32>
    %176 = arith.addf %175, %174 : vector<36x256xf32>
    %177 = arith.mulf %166, %176 : vector<36x256xf32>
    %178 = arith.truncf %177 : vector<36x256xf32> to vector<36x256xbf16>
    %c0_68 = arith.constant 0 : index
    %c0_69 = arith.constant 0 : index
    %c0_70 = arith.constant 0 : index
    %179 = vector.load %arg15[%c0_68, %c0_69, %c0_70] : memref<1x256x128xbf16, #tpu.memory_space<vmem>>, vector<1x256x128xbf16>
    %180 = vector.shape_cast %179 : vector<1x256x128xbf16> to vector<256x128xbf16>
    %cst_71 = arith.constant dense<0.000000e+00> : vector<36x128xf32>
    %181 = tpu.matmul %178, %180, %cst_71 {dimension_numbers = #tpu.dot_dimension_numbers<[1], [0], [0], [1], [0, 0, 1, 1], [], []>} : vector<36x256xbf16>, vector<256x128xbf16>, vector<36x128xf32> -> vector<36x128xf32>
    %c0_72 = arith.constant 0 : index
    %c0_73 = arith.constant 0 : index
    %c0_74 = arith.constant 0 : index
    %182 = vector.load %arg16[%c0_72, %c0_73, %c0_74] : memref<1x1x128xf32, #tpu.memory_space<vmem>>, vector<1x1x128xf32>
    %183 = vector.shape_cast %182 : vector<1x1x128xf32> to vector<1x128xf32>
    %184 = vector.broadcast %183 : vector<1x128xf32> to vector<36x128xf32>
    %185 = arith.addf %181, %184 : vector<36x128xf32>
    %186 = arith.addf %132, %185 : vector<36x128xf32>
    %c0_75 = arith.constant 0 : index
    %c0_76 = arith.constant 0 : index
    %187 = vector.load %arg19[%c0_75, %c0_76] : memref<36x128xf32, #tpu.memory_space<vmem>>, vector<36x128xf32>
    tpu.vector_store %arg19[%c0_75, %c0_76], %186 {strides = array<i32>} : memref<36x128xf32, #tpu.memory_space<vmem>>, vector<36x128xf32>,
    %c1_i32 = arith.constant 1 : i32
    %188 = arith.cmpi eq, %arg1, %c1_i32 : i32
    %189 = arith.extui %188 : i1 to i32
    %c0_i32_77 = arith.constant 0 : i32
    %190 = arith.cmpi ne, %189, %c0_i32_77 : i32
    scf.if %190 {
      %c0_78 = arith.constant 0 : index
      %c0_79 = arith.constant 0 : index
      %191 = vector.load %arg17[%c0_78, %c0_79] : memref<16x36xf32, #tpu.memory_space<vmem>>, vector<16x36xf32>
      %cst_80 = arith.constant dense<0.000000e+00> : vector<16x128xf32>
      %192 = tpu.matmul %191, %186, %cst_80 {dimension_numbers = #tpu.dot_dimension_numbers<[1], [0], [0], [1], [0, 0, 1, 1], [], []>} : vector<16x36xf32>, vector<36x128xf32>, vector<16x128xf32> -> vector<16x128xf32>
      %193 = arith.mulf %192, %192 : vector<16x128xf32>
      %cst_81 = arith.constant dense<0.000000e+00> : vector<16xf32>
      %194 = vector.multi_reduction <add>, %193, %cst_81 [1] : vector<16x128xf32> to vector<16xf32>
      %195 = vector.shape_cast %194 : vector<16xf32> to vector<16x1xf32>
      %196 = math.sqrt %195 : vector<16x1xf32>
      %cst_82 = arith.constant 9.99999996E-13 : f32
      %197 = vector.broadcast %cst_82 : f32 to vector<16x1xf32>
      %198 = arith.maximumf %196, %197 : vector<16x1xf32>
      %199 = vector.broadcast %198 : vector<16x1xf32> to vector<16x128xf32>
      %200 = arith.divf %192, %199 : vector<16x128xf32>
      %c0_83 = arith.constant 0 : index
      %c0_84 = arith.constant 0 : index
      %c0_85 = arith.constant 0 : index
      %201 = vector.load %arg18[%c0_83, %c0_84, %c0_85] : memref<1x16x128xf32, #tpu.memory_space<vmem>>, vector<1x16x128xf32>
      %202 = vector.shape_cast %201 : vector<1x16x128xf32> to vector<16x128xf32>
      %203 = vector.shape_cast %200 : vector<16x128xf32> to vector<1x16x128xf32>
      tpu.vector_store %arg18[%c0_83, %c0_84, %c0_85], %203 {strides = array<i32>} : memref<1x16x128xf32, #tpu.memory_space<vmem>>, vector<1x16x128xf32>,
    } else {
    }
    return
  }
  func.func @transform_0(%arg0: i32, %arg1: i32) -> (i32, i32, i32) {
    %c0_i32 = arith.constant 0 : i32
    %c0_i32_0 = arith.constant 0 : i32
    %c0_i32_1 = arith.constant 0 : i32
    return %arg0, %c0_i32, %c0_i32_0 : i32, i32, i32
  }
  func.func @transform_1(%arg0: i32, %arg1: i32) -> (i32, i32) {
    %c0_i32 = arith.constant 0 : i32
    %c0_i32_0 = arith.constant 0 : i32
    %c0_i32_1 = arith.constant 0 : i32
    return %c0_i32, %c0_i32_0 : i32, i32
  }
  func.func @transform_2(%arg0: i32, %arg1: i32) -> (i32, i32) {
    %c0_i32 = arith.constant 0 : i32
    %c0_i32_0 = arith.constant 0 : i32
    %c0_i32_1 = arith.constant 0 : i32
    return %c0_i32, %c0_i32_0 : i32, i32
  }
  func.func @transform_3(%arg0: i32, %arg1: i32) -> (i32, i32, i32) {
    %c0_i32 = arith.constant 0 : i32
    %c0_i32_0 = arith.constant 0 : i32
    %c0_i32_1 = arith.constant 0 : i32
    return %arg1, %c0_i32, %c0_i32_0 : i32, i32, i32
  }
  func.func @transform_4(%arg0: i32, %arg1: i32) -> (i32, i32, i32) {
    %c0_i32 = arith.constant 0 : i32
    %c0_i32_0 = arith.constant 0 : i32
    %c0_i32_1 = arith.constant 0 : i32
    return %arg1, %c0_i32, %c0_i32_0 : i32, i32, i32
  }
  func.func @transform_5(%arg0: i32, %arg1: i32) -> (i32, i32, i32) {
    %c0_i32 = arith.constant 0 : i32
    %c0_i32_0 = arith.constant 0 : i32
    %c0_i32_1 = arith.constant 0 : i32
    return %arg1, %c0_i32, %c0_i32_0 : i32, i32, i32
  }
  func.func @transform_6(%arg0: i32, %arg1: i32) -> (i32, i32, i32) {
    %c0_i32 = arith.constant 0 : i32
    %c0_i32_0 = arith.constant 0 : i32
    %c0_i32_1 = arith.constant 0 : i32
    return %arg1, %c0_i32, %c0_i32_0 : i32, i32, i32
  }
  func.func @transform_7(%arg0: i32, %arg1: i32) -> (i32, i32, i32) {
    %c0_i32 = arith.constant 0 : i32
    %c0_i32_0 = arith.constant 0 : i32
    %c0_i32_1 = arith.constant 0 : i32
    return %arg1, %c0_i32, %c0_i32_0 : i32, i32, i32
  }
  func.func @transform_8(%arg0: i32, %arg1: i32) -> (i32, i32, i32) {
    %c0_i32 = arith.constant 0 : i32
    %c0_i32_0 = arith.constant 0 : i32
    %c0_i32_1 = arith.constant 0 : i32
    return %arg1, %c0_i32, %c0_i32_0 : i32, i32, i32
  }
  func.func @transform_9(%arg0: i32, %arg1: i32) -> (i32, i32, i32) {
    %c0_i32 = arith.constant 0 : i32
    %c0_i32_0 = arith.constant 0 : i32
    %c0_i32_1 = arith.constant 0 : i32
    return %arg1, %c0_i32, %c0_i32_0 : i32, i32, i32
  }
  func.func @transform_10(%arg0: i32, %arg1: i32) -> (i32, i32, i32) {
    %c0_i32 = arith.constant 0 : i32
    %c0_i32_0 = arith.constant 0 : i32
    %c0_i32_1 = arith.constant 0 : i32
    return %arg1, %c0_i32, %c0_i32_0 : i32, i32, i32
  }
  func.func @transform_11(%arg0: i32, %arg1: i32) -> (i32, i32, i32) {
    %c0_i32 = arith.constant 0 : i32
    %c0_i32_0 = arith.constant 0 : i32
    %c0_i32_1 = arith.constant 0 : i32
    return %arg1, %c0_i32, %c0_i32_0 : i32, i32, i32
  }
  func.func @transform_12(%arg0: i32, %arg1: i32) -> (i32, i32, i32) {
    %c0_i32 = arith.constant 0 : i32
    %c0_i32_0 = arith.constant 0 : i32
    %c0_i32_1 = arith.constant 0 : i32
    return %arg1, %c0_i32, %c0_i32_0 : i32, i32, i32
  }
  func.func @transform_13(%arg0: i32, %arg1: i32) -> (i32, i32, i32) {
    %c0_i32 = arith.constant 0 : i32
    %c0_i32_0 = arith.constant 0 : i32
    %c0_i32_1 = arith.constant 0 : i32
    return %arg1, %c0_i32, %c0_i32_0 : i32, i32, i32
  }
  func.func @transform_14(%arg0: i32, %arg1: i32) -> (i32, i32, i32) {
    %c0_i32 = arith.constant 0 : i32
    %c0_i32_0 = arith.constant 0 : i32
    %c0_i32_1 = arith.constant 0 : i32
    return %arg1, %c0_i32, %c0_i32_0 : i32, i32, i32
  }
  func.func @transform_15(%arg0: i32, %arg1: i32) -> (i32, i32) {
    %c0_i32 = arith.constant 0 : i32
    %c0_i32_0 = arith.constant 0 : i32
    %c0_i32_1 = arith.constant 0 : i32
    return %c0_i32, %c0_i32_0 : i32, i32
  }
  func.func @transform_16(%arg0: i32, %arg1: i32) -> (i32, i32, i32) {
    %c0_i32 = arith.constant 0 : i32
    %c0_i32_0 = arith.constant 0 : i32
    %c0_i32_1 = arith.constant 0 : i32
    return %arg0, %c0_i32, %c0_i32_0 : i32, i32, i32
  }
}

</mosaic_0001>

<llo_original>
// kernel: tpu_custom_call.1
$region0: #{tpu_custom_call.1}
  #allocation0 [shape = 'u32[]', space=smem, size = 0x4, offset = 0x4, fixed_abs, tag = 'smem constant byte address 0x4 - core index']
  #allocation1 [shape = 'u32[144,128]{1,0:T(1,128)}', space=vmem, size = 0x12000, scoped, tag = 'internal scratch']
  #allocation2 [shape = 'f32[36,128]{1,0:T(8,128)}', space=vmem, size = 0x5000, scoped, tag = 'scratch operand']
  %s0 = inlined_call_operand.hbm [shape: bf16[2,36,48], index: 0, kind: input, shape index: {}]
  %s1 = inlined_call_operand.hbm [shape: bf16[48,128], index: 1, kind: input, shape index: {}]
  %s2 = inlined_call_operand.hbm [shape: f32[36,128], index: 2, kind: input, shape index: {}]
  %s3 = inlined_call_operand.hbm [shape: f32[2,1,128], index: 3, kind: input, shape index: {}]
  %s4 = inlined_call_operand.hbm [shape: f32[2,1,128], index: 4, kind: input, shape index: {}]
  %s5 = inlined_call_operand.hbm [shape: bf16[2,128,384], index: 5, kind: input, shape index: {}]
  %s6 = inlined_call_operand.hbm [shape: f32[2,1,384], index: 6, kind: input, shape index: {}]
  %s7 = inlined_call_operand.hbm [shape: bf16[2,128,128], index: 7, kind: input, shape index: {}]
  %s8 = inlined_call_operand.hbm [shape: f32[2,1,128], index: 8, kind: input, shape index: {}]
  %s9 = inlined_call_operand.hbm [shape: f32[2,1,128], index: 9, kind: input, shape index: {}]
  %s10 = inlined_call_operand.hbm [shape: f32[2,1,128], index: 10, kind: input, shape index: {}]
  %s11 = inlined_call_operand.hbm [shape: bf16[2,128,256], index: 11, kind: input, shape index: {}]
  %s12 = inlined_call_operand.hbm [shape: f32[2,1,256], index: 12, kind: input, shape index: {}]
  %s13 = inlined_call_operand.hbm [shape: bf16[2,256,128], index: 13, kind: input, shape index: {}]
  %s14 = inlined_call_operand.hbm [shape: f32[2,1,128], index: 14, kind: input, shape index: {}]
  %s15 = inlined_call_operand.hbm [shape: f32[16,36], index: 15, kind: input, shape index: {}]
  %s16 = inlined_call_operand.hbm [shape: f32[2,16,128], index: 16, kind: output, shape index: {}]
  %s17 = sld [smem:[#allocation0]]
  $region169: #{tpu_custom_call.1} parent=0
    _
  %s19 = ssub.s32 1, %s17
  %s20 = scalar_select 0, %s19, %s17
  $region1: #{tpu_custom_call.1} parent=0
    #allocation3 [shape = 'u8[20480]{0}', space=vmem, size = 0x5000, scoped, tag = 'input window, operand 0']
    #allocation4 [shape = 's32[2]{0}', space=sflag, size = 0x8, scoped, tag = 'scoped memory for tpu_custom_call.1']
    #allocation5 [shape = 's32[2]{0}', space=sflag, size = 0x8, scoped, tag = 'scoped memory for tpu_custom_call.1']
    #allocation6 [shape = 'u8[12288]{0}', space=vmem, size = 0x3000, scoped, tag = 'input window, operand 1, single buffered']
    #allocation7 [shape = 's32[1]{0}', space=sflag, size = 0x4, scoped, tag = 'scoped memory for tpu_custom_call.1']
    #allocation8 [shape = 'u8[20480]{0}', space=vmem, size = 0x5000, scoped, tag = 'input window, operand 2, single buffered']
    #allocation9 [shape = 'u8[1024]{0}', space=vmem, size = 0x400, scoped, tag = 'input window, operand 3']
    #allocation10 [shape = 's32[2]{0}', space=sflag, size = 0x8, scoped, tag = 'scoped memory for tpu_custom_call.1']
    #allocation11 [shape = 'u8[1024]{0}', space=vmem, size = 0x400, scoped, tag = 'input window, operand 4']
    #allocation12 [shape = 'u8[196608]{0}', space=vmem, size = 0x30000, scoped, tag = 'input window, operand 5']
    #allocation13 [shape = 's32[2]{0}', space=sflag, size = 0x8, scoped, tag = 'scoped memory for tpu_custom_call.1']
    #allocation14 [shape = 'u8[3072]{0}', space=vmem, size = 0xc00, scoped, tag = 'input window, operand 6']
    #allocation15 [shape = 'u8[65536]{0}', space=vmem, size = 0x10000, scoped, tag = 'input window, operand 7']
    #allocation16 [shape = 's32[2]{0}', space=sflag, size = 0x8, scoped, tag = 'scoped memory for tpu_custom_call.1']
    #allocation17 [shape = 'u8[1024]{0}', space=vmem, size = 0x400, scoped, tag = 'input window, operand 8']
    #allocation18 [shape = 'u8[1024]{0}', space=vmem, size = 0x400, scoped, tag = 'input window, operand 9']
    #allocation19 [shape = 's32[2]{0}', space=sflag, size = 0x8, scoped, tag = 'scoped memory for tpu_custom_call.1']
    #allocation20 [shape = 'u8[1024]{0}', space=vmem, size = 0x400, scoped, tag = 'input window, operand 10']
    #allocation21 [shape = 'u8[131072]{0}', space=vmem, size = 0x20000, scoped, tag = 'input window, operand 11']
    #allocation22 [shape = 's32[2]{0}', space=sflag, size = 0x8, scoped, tag = 'scoped memory for tpu_custom_call.1']
    #allocation23 [shape = 'u8[2048]{0}', space=vmem, size = 0x800, scoped, tag = 'input window, operand 12']
    #allocation24 [shape = 'u8[131072]{0}', space=vmem, size = 0x20000, scoped, tag = 'input window, operand 13']
    #allocation25 [shape = 's32[2]{0}', space=sflag, size = 0x8, scoped, tag = 'scoped memory for tpu_custom_call.1']
    #allocation26 [shape = 'u8[1024]{0}', space=vmem, size = 0x400, scoped, tag = 'input window, operand 14']
    #allocation27 [shape = 'u8[8192]{0}', space=vmem, size = 0x2000, scoped, tag = 'input window, operand 15, single buffered']
    #allocation28 [shape = 's32[1]{0}', space=sflag, size = 0x4, scoped, tag = 'scoped memory for tpu_custom_call.1']
    #allocation29 [shape = 'u8[16384]{0}', space=vmem, size = 0x4000, scoped, tag = 'output window, operand 0']
    %21 = vsyncpa [#allocation4], 0
    %s22 = scalar_lea.sflag [#allocation4], 1
    %23 = vsyncpa %s22, 0
    %24 = vsyncpa [#allocation7], 0
    %25 = vsyncpa [#allocation10], 0
    %s26 = scalar_lea.sflag [#allocation10], 1
    %27 = vsyncpa %s26, 0
    %28 = vsyncpa [#allocation13], 0
    %s29 = scalar_lea.sflag [#allocation13], 1
    %30 = vsyncpa %s29, 0
    %31 = vsyncpa [#allocation16], 0
    %s32 = scalar_lea.sflag [#allocation16], 1
    %33 = vsyncpa %s32, 0
    %34 = vsyncpa [#allocation19], 0
    %s35 = scalar_lea.sflag [#allocation19], 1
    %36 = vsyncpa %s35, 0
    %37 = vsyncpa [#allocation22], 0
    %s38 = scalar_lea.sflag [#allocation22], 1
    %39 = vsyncpa %s38, 0
    %40 = vsyncpa [#allocation25], 0
    %s41 = scalar_lea.sflag [#allocation25], 1
    %42 = vsyncpa %s41, 0
    %43 = vsyncpa [#allocation28], 0
    %44 = vsyncpa [#allocation5], 0
    %s45 = scalar_lea.sflag [#allocation5], 1
    %46 = vsyncpa %s45, 0
    loop: start=0, step=1, limit=6
    $region2: #{tpu_custom_call.1} parent=1 // loop_pre_header
      _
    $region3: #{tpu_custom_call.1} parent=1 // loop_header
      %s48 = sphi 0, %s52
      %p49 = scmp.ge.s32.totalorder %s48, 6
      %s55 = sphi 0, %s67
      %s56 = sphi 0, %s63
      %s57 = sphi 0, %s55
      %s58 = sphi 0, %s56
      %s59 = sphi 0, %s57
      %s60 = sphi 0, %s58
      %s70 = sphi 0, %s72
      %s73 = sphi 0, %s70
      %s74 = sphi 0, %s73
      %s90 = sphi 0, %s74
      %s94 = sphi 0, %s94
      %s96 = sphi 0, %s94
      %s97 = sphi 0, %s96
      %s111 = sphi 0, %s97
      %s115 = sphi 0, %s115
      %s117 = sphi 0, %s115
      %s118 = sphi 0, %s117
      %s132 = sphi 0, %s118
      %s138 = sphi 0, %s140
      %s141 = sphi 0, %s138
      %s142 = sphi 0, %s141
      %s158 = sphi 0, %s142
      %s164 = sphi 0, %s166
      %s167 = sphi 0, %s164
      %s168 = sphi 0, %s167
      %s184 = sphi 0, %s168
      %s190 = sphi 0, %s192
      %s193 = sphi 0, %s190
      %s194 = sphi 0, %s193
      %s210 = sphi 0, %s194
      %s216 = sphi 0, %s218
      %s219 = sphi 0, %s216
      %s220 = sphi 0, %s219
      %s236 = sphi 0, %s220
      %s242 = sphi 0, %s244
      %s245 = sphi 0, %s242
      %s246 = sphi 0, %s245
      %s262 = sphi 0, %s246
      %s268 = sphi 0, %s270
      %s271 = sphi 0, %s268
      %s272 = sphi 0, %s271
      %s288 = sphi 0, %s272
      %s294 = sphi 0, %s296
      %s297 = sphi 0, %s294
      %s298 = sphi 0, %s297
      %s314 = sphi 0, %s298
      %s320 = sphi 0, %s322
      %s323 = sphi 0, %s320
      %s324 = sphi 0, %s323
      %s340 = sphi 0, %s324
      %s346 = sphi 0, %s348
      %s349 = sphi 0, %s346
      %s350 = sphi 0, %s349
      %s366 = sphi 0, %s350
      %s372 = sphi 0, %s374
      %s375 = sphi 0, %s372
      %s376 = sphi 0, %s375
      %s392 = sphi 0, %s376
      %s398 = sphi 0, %s400
      %s401 = sphi 0, %s398
      %s402 = sphi 0, %s401
      %s418 = sphi 0, %s402
      %s424 = sphi 0, %s426
      %s427 = sphi 0, %s424
      %s428 = sphi 0, %s427
      %s444 = sphi 0, %s428
      %s448 = sphi 0, %s448
      %s450 = sphi 0, %s448
      %s451 = sphi 0, %s450
      %s465 = sphi 0, %s451
      %s471 = sphi 0, %s473
      %s474 = sphi 0, %s471
      %s475 = sphi 0, %s474
      %s491 = sphi 0, %s475
    $region4: #{tpu_custom_call.1} parent=1 // loop_header_branch
      %51 = sbr.rel (%p49) target = $region8
    $region5: #{tpu_custom_call.1} parent=1 // loop_body
      %s53 = ssub.s32 %s48, 1
      %s54 = ssub.s32 %s48, 2
      %s61 = sadd.s32 1, %s56
      %p62 = scmp.ge.s32.totalorder %s61, 2
      %s63 = scalar_select %p62, 0, %s61
      %s64 = sadd.s32 1, %s55
      %s65 = scalar_select %p62, %s64, %s55
      %p66 = scmp.ge.s32.totalorder %s65, 2
      %s67 = scalar_select %p66, 0, %s65
      %s68 = ssub.s32 %s55, %s67
      %p69 = scmp.eq.s32.totalorder %s68, 0
      %s71 = sadd.s32 %s70, 1
      %s72 = scalar_select %p69, %s70, %s71
      %p75 = pneg %p69
      %p76 = scmp.eq.s32.totalorder %s48, 3
      %p77 = por %p75, %p76
      %p78 = scmp.ne.s32.totalorder %s70, %s73
      %p79 = scmp.eq.s32.totalorder %s48, 0
      %p80 = por %p78, %p79
      %p81 = scmp.ne.s32.totalorder %s70, %s73
      %p82 = scmp.eq.s32.totalorder %s53, 3
      %p83 = por %p81, %p82
      %p84 = scmp.ne.s32.totalorder %s73, %s74
      %p85 = scmp.eq.s32.totalorder %s53, 0
      %p86 = por %p84, %p85
      %p87 = scmp.ne.s32.totalorder %s73, %s74
      %p88 = scmp.eq.s32.totalorder %s54, 3
      %p89 = por %p87, %p88
      %p91 = scmp.ne.s32.totalorder %s74, %s90
      %p92 = scmp.eq.s32.totalorder %s54, 0
      %p93 = por %p91, %p92
      %s95 = sadd.s32 %s94, 1
      %p98 = scmp.eq.s32.totalorder %s48, 3
      %p99 = scmp.ne.s32.totalorder %s94, %s96
      %p100 = scmp.eq.s32.totalorder %s48, 0
      %p101 = por %p99, %p100
      %p102 = scmp.ne.s32.totalorder %s94, %s96
      %p103 = scmp.eq.s32.totalorder %s53, 3
      %p104 = por %p102, %p103
      %p105 = scmp.ne.s32.totalorder %s96, %s97
      %p106 = scmp.eq.s32.totalorder %s53, 0
      %p107 = por %p105, %p106
      %p108 = scmp.ne.s32.totalorder %s96, %s97
      %p109 = scmp.eq.s32.totalorder %s54, 3
      %p110 = por %p108, %p109
      %p112 = scmp.ne.s32.totalorder %s97, %s111
      %p113 = scmp.eq.s32.totalorder %s54, 0
      %p114 = por %p112, %p113
      %s116 = sadd.s32 %s115, 1
      %p119 = scmp.eq.s32.totalorder %s48, 3
      %p120 = scmp.ne.s32.totalorder %s115, %s117
      %p121 = scmp.eq.s32.totalorder %s48, 0
      %p122 = por %p120, %p121
      %p123 = scmp.ne.s32.totalorder %s115, %s117
      %p124 = scmp.eq.s32.totalorder %s53, 3
      %p125 = por %p123, %p124
      %p126 = scmp.ne.s32.totalorder %s117, %s118
      %p127 = scmp.eq.s32.totalorder %s53, 0
      %p128 = por %p126, %p127
      %p129 = scmp.ne.s32.totalorder %s117, %s118
      %p130 = scmp.eq.s32.totalorder %s54, 3
      %p131 = por %p129, %p130
      %p133 = scmp.ne.s32.totalorder %s118, %s132
      %p134 = scmp.eq.s32.totalorder %s54, 0
      %p135 = por %p133, %p134
      %s136 = ssub.s32 %s56, %s63
      %p137 = scmp.eq.s32.totalorder %s136, 0
      %s139 = sadd.s32 %s138, 1
      %s140 = scalar_select %p137, %s138, %s139
      %p143 = pneg %p137
      %p144 = scmp.eq.s32.totalorder %s48, 3
      %p145 = por %p143, %p144
      %p146 = scmp.ne.s32.totalorder %s138, %s141
      %p147 = scmp.eq.s32.totalorder %s48, 0
      %p148 = por %p146, %p147
      %p149 = scmp.ne.s32.totalorder %s138, %s141
      %p150 = scmp.eq.s32.totalorder %s53, 3
      %p151 = por %p149, %p150
      %p152 = scmp.ne.s32.totalorder %s141, %s142
      %p153 = scmp.eq.s32.totalorder %s53, 0
      %p154 = por %p152, %p153
      %p155 = scmp.ne.s32.totalorder %s141, %s142
      %p156 = scmp.eq.s32.totalorder %s54, 3
      %p157 = por %p155, %p156
      %p159 = scmp.ne.s32.totalorder %s142, %s158
      %p160 = scmp.eq.s32.totalorder %s54, 0
      %p161 = por %p159, %p160
      %s162 = ssub.s32 %s56, %s63
      %p163 = scmp.eq.s32.totalorder %s162, 0
      %s165 = sadd.s32 %s164, 1
      %s166 = scalar_select %p163, %s164, %s165
      %p169 = pneg %p163
      %p170 = scmp.eq.s32.totalorder %s48, 3
      %p171 = por %p169, %p170
      %p172 = scmp.ne.s32.totalorder %s164, %s167
      %p173 = scmp.eq.s32.totalorder %s48, 0
      %p174 = por %p172, %p173
      %p175 = scmp.ne.s32.totalorder %s164, %s167
      %p176 = scmp.eq.s32.totalorder %s53, 3
      %p177 = por %p175, %p176
      %p178 = scmp.ne.s32.totalorder %s167, %s168
      %p179 = scmp.eq.s32.totalorder %s53, 0
      %p180 = por %p178, %p179
      %p181 = scmp.ne.s32.totalorder %s167, %s168
      %p182 = scmp.eq.s32.totalorder %s54, 3
      %p183 = por %p181, %p182
      %p185 = scmp.ne.s32.totalorder %s168, %s184
      %p186 = scmp.eq.s32.totalorder %s54, 0
      %p187 = por %p185, %p186
      %s188 = ssub.s32 %s56, %s63
      %p189 = scmp.eq.s32.totalorder %s188, 0
      %s191 = sadd.s32 %s190, 1
      %s192 = scalar_select %p189, %s190, %s191
      %p195 = pneg %p189
      %p196 = scmp.eq.s32.totalorder %s48, 3
      %p197 = por %p195, %p196
      %p198 = scmp.ne.s32.totalorder %s190, %s193
      %p199 = scmp.eq.s32.totalorder %s48, 0
      %p200 = por %p198, %p199
      %p201 = scmp.ne.s32.totalorder %s190, %s193
      %p202 = scmp.eq.s32.totalorder %s53, 3
      %p203 = por %p201, %p202
      %p204 = scmp.ne.s32.totalorder %s193, %s194
      %p205 = scmp.eq.s32.totalorder %s53, 0
      %p206 = por %p204, %p205
      %p207 = scmp.ne.s32.totalorder %s193, %s194
      %p208 = scmp.eq.s32.totalorder %s54, 3
      %p209 = por %p207, %p208
      %p211 = scmp.ne.s32.totalorder %s194, %s210
      %p212 = scmp.eq.s32.totalorder %s54, 0
      %p213 = por %p211, %p212
      %s214 = ssub.s32 %s56, %s63
      %p215 = scmp.eq.s32.totalorder %s214, 0
      %s217 = sadd.s32 %s216, 1
      %s218 = scalar_select %p215, %s216, %s217
      %p221 = pneg %p215
      %p222 = scmp.eq.s32.totalorder %s48, 3
      %p223 = por %p221, %p222
      %p224 = scmp.ne.s32.totalorder %s216, %s219
      %p225 = scmp.eq.s32.totalorder %s48, 0
      %p226 = por %p224, %p225
      %p227 = scmp.ne.s32.totalorder %s216, %s219
      %p228 = scmp.eq.s32.totalorder %s53, 3
      %p229 = por %p227, %p228
      %p230 = scmp.ne.s32.totalorder %s219, %s220
      %p231 = scmp.eq.s32.totalorder %s53, 0
      %p232 = por %p230, %p231
      %p233 = scmp.ne.s32.totalorder %s219, %s220
      %p234 = scmp.eq.s32.totalorder %s54, 3
      %p235 = por %p233, %p234
      %p237 = scmp.ne.s32.totalorder %s220, %s236
      %p238 = scmp.eq.s32.totalorder %s54, 0
      %p239 = por %p237, %p238
      %s240 = ssub.s32 %s56, %s63
      %p241 = scmp.eq.s32.totalorder %s240, 0
      %s243 = sadd.s32 %s242, 1
      %s244 = scalar_select %p241, %s242, %s243
      %p247 = pneg %p241
      %p248 = scmp.eq.s32.totalorder %s48, 3
      %p249 = por %p247, %p248
      %p250 = scmp.ne.s32.totalorder %s242, %s245
      %p251 = scmp.eq.s32.totalorder %s48, 0
      %p252 = por %p250, %p251
      %p253 = scmp.ne.s32.totalorder %s242, %s245
      %p254 = scmp.eq.s32.totalorder %s53, 3
      %p255 = por %p253, %p254
      %p256 = scmp.ne.s32.totalorder %s245, %s246
      %p257 = scmp.eq.s32.totalorder %s53, 0
      %p258 = por %p256, %p257
      %p259 = scmp.ne.s32.totalorder %s245, %s246
      %p260 = scmp.eq.s32.totalorder %s54, 3
      %p261 = por %p259, %p260
      %p263 = scmp.ne.s32.totalorder %s246, %s262
      %p264 = scmp.eq.s32.totalorder %s54, 0
      %p265 = por %p263, %p264
      %s266 = ssub.s32 %s56, %s63
      %p267 = scmp.eq.s32.totalorder %s266, 0
      %s269 = sadd.s32 %s268, 1
      %s270 = scalar_select %p267, %s268, %s269
      %p273 = pneg %p267
      %p274 = scmp.eq.s32.totalorder %s48, 3
      %p275 = por %p273, %p274
      %p276 = scmp.ne.s32.totalorder %s268, %s271
      %p277 = scmp.eq.s32.totalorder %s48, 0
      %p278 = por %p276, %p277
      %p279 = scmp.ne.s32.totalorder %s268, %s271
      %p280 = scmp.eq.s32.totalorder %s53, 3
      %p281 = por %p279, %p280
      %p282 = scmp.ne.s32.totalorder %s271, %s272
      %p283 = scmp.eq.s32.totalorder %s53, 0
      %p284 = por %p282, %p283
      %p285 = scmp.ne.s32.totalorder %s271, %s272
      %p286 = scmp.eq.s32.totalorder %s54, 3
      %p287 = por %p285, %p286
      %p289 = scmp.ne.s32.totalorder %s272, %s288
      %p290 = scmp.eq.s32.totalorder %s54, 0
      %p291 = por %p289, %p290
      %s292 = ssub.s32 %s56, %s63
      %p293 = scmp.eq.s32.totalorder %s292, 0
      %s295 = sadd.s32 %s294, 1
      %s296 = scalar_select %p293, %s294, %s295
      %p299 = pneg %p293
      %p300 = scmp.eq.s32.totalorder %s48, 3
      %p301 = por %p299, %p300
      %p302 = scmp.ne.s32.totalorder %s294, %s297
      %p303 = scmp.eq.s32.totalorder %s48, 0
      %p304 = por %p302, %p303
      %p305 = scmp.ne.s32.totalorder %s294, %s297
      %p306 = scmp.eq.s32.totalorder %s53, 3
      %p307 = por %p305, %p306
      %p308 = scmp.ne.s32.totalorder %s297, %s298
      %p309 = scmp.eq.s32.totalorder %s53, 0
      %p310 = por %p308, %p309
      %p311 = scmp.ne.s32.totalorder %s297, %s298
      %p312 = scmp.eq.s32.totalorder %s54, 3
      %p313 = por %p311, %p312
      %p315 = scmp.ne.s32.totalorder %s298, %s314
      %p316 = scmp.eq.s32.totalorder %s54, 0
      %p317 = por %p315, %p316
      %s318 = ssub.s32 %s56, %s63
      %p319 = scmp.eq.s32.totalorder %s318, 0
      %s321 = sadd.s32 %s320, 1
      %s322 = scalar_select %p319, %s320, %s321
      %p325 = pneg %p319
      %p326 = scmp.eq.s32.totalorder %s48, 3
      %p327 = por %p325, %p326
      %p328 = scmp.ne.s32.totalorder %s320, %s323
      %p329 = scmp.eq.s32.totalorder %s48, 0
      %p330 = por %p328, %p329
      %p331 = scmp.ne.s32.totalorder %s320, %s323
      %p332 = scmp.eq.s32.totalorder %s53, 3
      %p333 = por %p331, %p332
      %p334 = scmp.ne.s32.totalorder %s323, %s324
      %p335 = scmp.eq.s32.totalorder %s53, 0
      %p336 = por %p334, %p335
      %p337 = scmp.ne.s32.totalorder %s323, %s324
      %p338 = scmp.eq.s32.totalorder %s54, 3
      %p339 = por %p337, %p338
      %p341 = scmp.ne.s32.totalorder %s324, %s340
      %p342 = scmp.eq.s32.totalorder %s54, 0
      %p343 = por %p341, %p342
      %s344 = ssub.s32 %s56, %s63
      %p345 = scmp.eq.s32.totalorder %s344, 0
      %s347 = sadd.s32 %s346, 1
      %s348 = scalar_select %p345, %s346, %s347
      %p351 = pneg %p345
      %p352 = scmp.eq.s32.totalorder %s48, 3
      %p353 = por %p351, %p352
      %p354 = scmp.ne.s32.totalorder %s346, %s349
      %p355 = scmp.eq.s32.totalorder %s48, 0
      %p356 = por %p354, %p355
      %p357 = scmp.ne.s32.totalorder %s346, %s349
      %p358 = scmp.eq.s32.totalorder %s53, 3
      %p359 = por %p357, %p358
      %p360 = scmp.ne.s32.totalorder %s349, %s350
      %p361 = scmp.eq.s32.totalorder %s53, 0
      %p362 = por %p360, %p361
      %p363 = scmp.ne.s32.totalorder %s349, %s350
      %p364 = scmp.eq.s32.totalorder %s54, 3
      %p365 = por %p363, %p364
      %p367 = scmp.ne.s32.totalorder %s350, %s366
      %p368 = scmp.eq.s32.totalorder %s54, 0
      %p369 = por %p367, %p368
      %s370 = ssub.s32 %s56, %s63
      %p371 = scmp.eq.s32.totalorder %s370, 0
      %s373 = sadd.s32 %s372, 1
      %s374 = scalar_select %p371, %s372, %s373
      %p377 = pneg %p371
      %p378 = scmp.eq.s32.totalorder %s48, 3
      %p379 = por %p377, %p378
      %p380 = scmp.ne.s32.totalorder %s372, %s375
      %p381 = scmp.eq.s32.totalorder %s48, 0
      %p382 = por %p380, %p381
      %p383 = scmp.ne.s32.totalorder %s372, %s375
      %p384 = scmp.eq.s32.totalorder %s53, 3
      %p385 = por %p383, %p384
      %p386 = scmp.ne.s32.totalorder %s375, %s376
      %p387 = scmp.eq.s32.totalorder %s53, 0
      %p388 = por %p386, %p387
      %p389 = scmp.ne.s32.totalorder %s375, %s376
      %p390 = scmp.eq.s32.totalorder %s54, 3
      %p391 = por %p389, %p390
      %p393 = scmp.ne.s32.totalorder %s376, %s392
      %p394 = scmp.eq.s32.totalorder %s54, 0
      %p395 = por %p393, %p394
      %s396 = ssub.s32 %s56, %s63
      %p397 = scmp.eq.s32.totalorder %s396, 0
      %s399 = sadd.s32 %s398, 1
      %s400 = scalar_select %p397, %s398, %s399
      %p403 = pneg %p397
      %p404 = scmp.eq.s32.totalorder %s48, 3
      %p405 = por %p403, %p404
      %p406 = scmp.ne.s32.totalorder %s398, %s401
      %p407 = scmp.eq.s32.totalorder %s48, 0
      %p408 = por %p406, %p407
      %p409 = scmp.ne.s32.totalorder %s398, %s401
      %p410 = scmp.eq.s32.totalorder %s53, 3
      %p411 = por %p409, %p410
      %p412 = scmp.ne.s32.totalorder %s401, %s402
      %p413 = scmp.eq.s32.totalorder %s53, 0
      %p414 = por %p412, %p413
      %p415 = scmp.ne.s32.totalorder %s401, %s402
      %p416 = scmp.eq.s32.totalorder %s54, 3
      %p417 = por %p415, %p416
      %p419 = scmp.ne.s32.totalorder %s402, %s418
      %p420 = scmp.eq.s32.totalorder %s54, 0
      %p421 = por %p419, %p420
      %s422 = ssub.s32 %s56, %s63
      %p423 = scmp.eq.s32.totalorder %s422, 0
      %s425 = sadd.s32 %s424, 1
      %s426 = scalar_select %p423, %s424, %s425
      %p429 = pneg %p423
      %p430 = scmp.eq.s32.totalorder %s48, 3
      %p431 = por %p429, %p430
      %p432 = scmp.ne.s32.totalorder %s424, %s427
      %p433 = scmp.eq.s32.totalorder %s48, 0
      %p434 = por %p432, %p433
      %p435 = scmp.ne.s32.totalorder %s424, %s427
      %p436 = scmp.eq.s32.totalorder %s53, 3
      %p437 = por %p435, %p436
      %p438 = scmp.ne.s32.totalorder %s427, %s428
      %p439 = scmp.eq.s32.totalorder %s53, 0
      %p440 = por %p438, %p439
      %p441 = scmp.ne.s32.totalorder %s427, %s428
      %p442 = scmp.eq.s32.totalorder %s54, 3
      %p443 = por %p441, %p442
      %p445 = scmp.ne.s32.totalorder %s428, %s444
      %p446 = scmp.eq.s32.totalorder %s54, 0
      %p447 = por %p445, %p446
      %s449 = sadd.s32 %s448, 1
      %p452 = scmp.eq.s32.totalorder %s48, 3
      %p453 = scmp.ne.s32.totalorder %s448, %s450
      %p454 = scmp.eq.s32.totalorder %s48, 0
      %p455 = por %p453, %p454
      %p456 = scmp.ne.s32.totalorder %s448, %s450
      %p457 = scmp.eq.s32.totalorder %s53, 3
      %p458 = por %p456, %p457
      %p459 = scmp.ne.s32.totalorder %s450, %s451
      %p460 = scmp.eq.s32.totalorder %s53, 0
      %p461 = por %p459, %p460
      %p462 = scmp.ne.s32.totalorder %s450, %s451
      %p463 = scmp.eq.s32.totalorder %s54, 3
      %p464 = por %p462, %p463
      %p466 = scmp.ne.s32.totalorder %s451, %s465
      %p467 = scmp.eq.s32.totalorder %s54, 0
      %p468 = por %p466, %p467
      %s469 = ssub.s32 %s55, %s67
      %p470 = scmp.eq.s32.totalorder %s469, 0
      %s472 = sadd.s32 %s471, 1
      %s473 = scalar_select %p470, %s471, %s472
      %p476 = pneg %p470
      %p477 = scmp.eq.s32.totalorder %s48, 3
      %p478 = por %p476, %p477
      %p479 = scmp.ne.s32.totalorder %s471, %s474
      %p480 = scmp.eq.s32.totalorder %s48, 0
      %p481 = por %p479, %p480
      %p482 = scmp.ne.s32.totalorder %s471, %s474
      %p483 = scmp.eq.s32.totalorder %s53, 3
      %p484 = por %p482, %p483
      %p485 = scmp.ne.s32.totalorder %s474, %s475
      %p486 = scmp.eq.s32.totalorder %s53, 0
      %p487 = por %p485, %p486
      %p488 = scmp.ne.s32.totalorder %s474, %s475
      %p489 = scmp.eq.s32.totalorder %s54, 3
      %p490 = por %p488, %p489
      %p492 = scmp.ne.s32.totalorder %s475, %s491
      %p493 = scmp.eq.s32.totalorder %s54, 0
      %p494 = por %p492, %p493
      %p495 = scmp.le.s32.totalorder 1, %s48
      %p496 = scmp.lt.s32.totalorder %s48, 5
      %p497 = pnand %p495, %p496
      %p498 = pneg %p497
      // Predicated region
      $region9: #{tpu_custom_call.1} parent=5 // pred_check
        _
      $region10: #{tpu_custom_call.1} parent=5 // pred_check_branch
        %500 = sbr.rel (%p497) target = $region12
      $region11: #{tpu_custom_call.1} parent=5 // pred_region
        %s501 = ssub.s32 %s48, 1
        // Predicated region
        $region13: #{tpu_custom_call.1} parent=11 // pred_check
          %p502 = pneg %p107
        $region14: #{tpu_custom_call.1} parent=11 // pred_check_branch
          %504 = sbr.rel (%p502) target = $region16
        $region15: #{tpu_custom_call.1} parent=11 // pred_region
          %s506 = ssub.s32 384, 384
          %507 = vsyncadd [#allocation7], %s506
          %s508 = sshll.u32 [#allocation6], 4
          %s509 = int_to_ptr.vmem [resolvable:$true] %s508
          %514 = dma.hbm_to_vmem [thread:$0]  %s1, 384, %s509, [#allocation7], 64, 64, 4
        $region16: #{tpu_custom_call.1} parent=11 // pred_fallthru
          _
        // Predicated region
        $region17: #{tpu_custom_call.1} parent=11 // pred_check
          %p515 = pneg %p128
        $region18: #{tpu_custom_call.1} parent=11 // pred_check_branch
          %517 = sbr.rel (%p515) target = $region20
        $region19: #{tpu_custom_call.1} parent=11 // pred_region
          %s519 = ssub.s32 640, 640
          %520 = vsyncadd [#allocation7], %s519
          %s521 = sshll.u32 [#allocation8], 4
          %s522 = int_to_ptr.vmem [resolvable:$true] %s521
          %527 = dma.hbm_to_vmem [thread:$0]  %s2, 640, %s522, [#allocation7], 128, 128, 8
        $region20: #{tpu_custom_call.1} parent=11 // pred_fallthru
          _
        // Predicated region
        $region21: #{tpu_custom_call.1} parent=11 // pred_check
          %p528 = pneg %p461
        $region22: #{tpu_custom_call.1} parent=11 // pred_check_branch
          %530 = sbr.rel (%p528) target = $region24
        $region23: #{tpu_custom_call.1} parent=11 // pred_region
          %s532 = ssub.s32 256, 256
          %533 = vsyncadd [#allocation28], %s532
          %s534 = sshll.u32 [#allocation27], 4
          %s535 = int_to_ptr.vmem [resolvable:$true] %s534
          %540 = dma.hbm_to_vmem [thread:$0]  %s15, 256, %s535, [#allocation28], 128, 128, 8
        $region24: #{tpu_custom_call.1} parent=11 // pred_fallthru
          _
      $region12: #{tpu_custom_call.1} parent=5 // pred_fallthru
        _
      %p541 = scmp.lt.s32.totalorder %s48, 4
      // Predicated region
      $region25: #{tpu_custom_call.1} parent=5 // pred_check
        %p542 = pneg %p541
      $region26: #{tpu_custom_call.1} parent=5 // pred_check_branch
        %544 = sbr.rel (%p542) target = $region28
      $region27: #{tpu_custom_call.1} parent=5 // pred_region
        // Predicated region
        $region29: #{tpu_custom_call.1} parent=27 // pred_check
          %p545 = pneg %p80
        $region30: #{tpu_custom_call.1} parent=27 // pred_check_branch
          %547 = sbr.rel (%p545) target = $region32
        $region31: #{tpu_custom_call.1} parent=27 // pred_region
          %s548 = sand.u32 %s70, 1
          %s549 = scalar_lea.sflag [#allocation4], %s548
          %s550 = sand.u32 %s70, 1
          %s551 = smul.addr %s550, 20
          %s552 = scalar_lea.vmem [#allocation3], %s551
          %s554 = ssub.s32 320, 320
          %555 = vsyncadd %s549, %s554
          %s556 = smul.addr %s55, 5
          %s557 = smul.addr %s556, 64
          %s558 = scalar_lea.hbm %s0, %s557
          %s559 = sshll.u32 %s552, 4
          %s560 = int_to_ptr.vmem [resolvable:$true] %s559
          %565 = dma.hbm_to_vmem [thread:$0]  %s558, 320, %s560, %s549, 64, 64, 4
        $region32: #{tpu_custom_call.1} parent=27 // pred_fallthru
          _
        // Predicated region
        $region33: #{tpu_custom_call.1} parent=27 // pred_check
          %p566 = pneg %p148
        $region34: #{tpu_custom_call.1} parent=27 // pred_check_branch
          %568 = sbr.rel (%p566) target = $region36
        $region35: #{tpu_custom_call.1} parent=27 // pred_region
          %s569 = sand.u32 %s48, 1
          %s570 = scalar_lea.sflag [#allocation10], %s569
          %s571 = sand.u32 %s138, 1
          %s572 = scalar_lea.vmem [#allocation9], %s571
          %s574 = ssub.s32 16, 16
          %575 = vsyncadd %s570, %s574
          %s576 = smul.addr %s56, 16
          %s577 = scalar_lea.hbm %s3, %s576
          %s579 = sshll.u32 %s572, 4
          %s580 = int_to_ptr.vmem [resolvable:$true] %s579
          %582 = dma.hbm_to_vmem [thread:$0]  %s577, 16, %s580, %s570
        $region36: #{tpu_custom_call.1} parent=27 // pred_fallthru
          _
        // Predicated region
        $region37: #{tpu_custom_call.1} parent=27 // pred_check
          %p583 = pneg %p174
        $region38: #{tpu_custom_call.1} parent=27 // pred_check_branch
          %585 = sbr.rel (%p583) target = $region40
        $region39: #{tpu_custom_call.1} parent=27 // pred_region
          %s586 = sand.u32 %s48, 1
          %s587 = scalar_lea.sflag [#allocation10], %s586
          %s588 = sand.u32 %s164, 1
          %s589 = scalar_lea.vmem [#allocation11], %s588
          %s591 = ssub.s32 16, 16
          %592 = vsyncadd %s587, %s591
          %s593 = smul.addr %s56, 16
          %s594 = scalar_lea.hbm %s4, %s593
          %s596 = sshll.u32 %s589, 4
          %s597 = int_to_ptr.vmem [resolvable:$true] %s596
          %599 = dma.hbm_to_vmem [thread:$0]  %s594, 16, %s597, %s587
        $region40: #{tpu_custom_call.1} parent=27 // pred_fallthru
          _
        // Predicated region
        $region41: #{tpu_custom_call.1} parent=27 // pred_check
          %p600 = pneg %p200
        $region42: #{tpu_custom_call.1} parent=27 // pred_check_branch
          %602 = sbr.rel (%p600) target = $region44
        $region43: #{tpu_custom_call.1} parent=27 // pred_region
          %s603 = sand.u32 %s48, 1
          %s604 = scalar_lea.sflag [#allocation13], %s603
          %s605 = sand.u32 %s190, 1
          %s606 = smul.addr %s605, 192
          %s607 = scalar_lea.vmem [#allocation12], %s606
          %s609 = ssub.s32 3072, 3072
          %610 = vsyncadd %s604, %s609
          %s611 = smul.addr %s56, 48
          %s612 = smul.addr %s611, 64
          %s613 = scalar_lea.hbm %s5, %s612
          %s614 = sshll.u32 %s607, 4
          %s615 = int_to_ptr.vmem [resolvable:$true] %s614
          %620 = dma.hbm_to_vmem [thread:$0]  %s613, 3072, %s615, %s604, 192, 192, 12
        $region44: #{tpu_custom_call.1} parent=27 // pred_fallthru
          _
        // Predicated region
        $region45: #{tpu_custom_call.1} parent=27 // pred_check
          %p621 = pneg %p226
        $region46: #{tpu_custom_call.1} parent=27 // pred_check_branch
          %623 = sbr.rel (%p621) target = $region48
        $region47: #{tpu_custom_call.1} parent=27 // pred_region
          %s624 = sand.u32 %s48, 1
          %s625 = scalar_lea.sflag [#allocation13], %s624
          %s626 = sand.u32 %s216, 1
          %s627 = smul.addr %s626, 3
          %s628 = scalar_lea.vmem [#allocation14], %s627
          %s630 = ssub.s32 48, 48
          %631 = vsyncadd %s625, %s630
          %s632 = smul.addr %s56, 3
          %s633 = smul.addr %s632, 16
          %s634 = scalar_lea.hbm %s6, %s633
          %s636 = sshll.u32 %s628, 4
          %s637 = int_to_ptr.vmem [resolvable:$true] %s636
          %639 = dma.hbm_to_vmem [thread:$0]  %s634, 48, %s637, %s625
        $region48: #{tpu_custom_call.1} parent=27 // pred_fallthru
          _
        // Predicated region
        $region49: #{tpu_custom_call.1} parent=27 // pred_check
          %p640 = pneg %p252
        $region50: #{tpu_custom_call.1} parent=27 // pred_check_branch
          %642 = sbr.rel (%p640) target = $region52
        $region51: #{tpu_custom_call.1} parent=27 // pred_region
          %s643 = sand.u32 %s48, 1
          %s644 = scalar_lea.sflag [#allocation16], %s643
          %s645 = sand.u32 %s242, 1
          %s646 = smul.addr %s645, 64
          %s647 = scalar_lea.vmem [#allocation15], %s646
          %s649 = ssub.s32 1024, 1024
          %650 = vsyncadd %s644, %s649
          %s651 = smul.addr %s56, 16
          %s652 = smul.addr %s651, 64
          %s653 = scalar_lea.hbm %s7, %s652
          %s654 = sshll.u32 %s647, 4
          %s655 = int_to_ptr.vmem [resolvable:$true] %s654
          %660 = dma.hbm_to_vmem [thread:$0]  %s653, 1024, %s655, %s644, 64, 64, 4
        $region52: #{tpu_custom_call.1} parent=27 // pred_fallthru
          _
        // Predicated region
        $region53: #{tpu_custom_call.1} parent=27 // pred_check
          %p661 = pneg %p278
        $region54: #{tpu_custom_call.1} parent=27 // pred_check_branch
          %663 = sbr.rel (%p661) target = $region56
        $region55: #{tpu_custom_call.1} parent=27 // pred_region
          %s664 = sand.u32 %s48, 1
          %s665 = scalar_lea.sflag [#allocation16], %s664
          %s666 = sand.u32 %s268, 1
          %s667 = scalar_lea.vmem [#allocation17], %s666
          %s669 = ssub.s32 16, 16
          %670 = vsyncadd %s665, %s669
          %s671 = smul.addr %s56, 16
          %s672 = scalar_lea.hbm %s8, %s671
          %s674 = sshll.u32 %s667, 4
          %s675 = int_to_ptr.vmem [resolvable:$true] %s674
          %677 = dma.hbm_to_vmem [thread:$0]  %s672, 16, %s675, %s665
        $region56: #{tpu_custom_call.1} parent=27 // pred_fallthru
          _
        // Predicated region
        $region57: #{tpu_custom_call.1} parent=27 // pred_check
          %p678 = pneg %p304
        $region58: #{tpu_custom_call.1} parent=27 // pred_check_branch
          %680 = sbr.rel (%p678) target = $region60
        $region59: #{tpu_custom_call.1} parent=27 // pred_region
          %s681 = sand.u32 %s48, 1
          %s682 = scalar_lea.sflag [#allocation19], %s681
          %s683 = sand.u32 %s294, 1
          %s684 = scalar_lea.vmem [#allocation18], %s683
          %s686 = ssub.s32 16, 16
          %687 = vsyncadd %s682, %s686
          %s688 = smul.addr %s56, 16
          %s689 = scalar_lea.hbm %s9, %s688
          %s691 = sshll.u32 %s684, 4
          %s692 = int_to_ptr.vmem [resolvable:$true] %s691
          %694 = dma.hbm_to_vmem [thread:$0]  %s689, 16, %s692, %s682
        $region60: #{tpu_custom_call.1} parent=27 // pred_fallthru
          _
        // Predicated region
        $region61: #{tpu_custom_call.1} parent=27 // pred_check
          %p695 = pneg %p330
        $region62: #{tpu_custom_call.1} parent=27 // pred_check_branch
          %697 = sbr.rel (%p695) target = $region64
        $region63: #{tpu_custom_call.1} parent=27 // pred_region
          %s698 = sand.u32 %s48, 1
          %s699 = scalar_lea.sflag [#allocation19], %s698
          %s700 = sand.u32 %s320, 1
          %s701 = scalar_lea.vmem [#allocation20], %s700
          %s703 = ssub.s32 16, 16
          %704 = vsyncadd %s699, %s703
          %s705 = smul.addr %s56, 16
          %s706 = scalar_lea.hbm %s10, %s705
          %s708 = sshll.u32 %s701, 4
          %s709 = int_to_ptr.vmem [resolvable:$true] %s708
          %711 = dma.hbm_to_vmem [thread:$0]  %s706, 16, %s709, %s699
        $region64: #{tpu_custom_call.1} parent=27 // pred_fallthru
          _
        // Predicated region
        $region65: #{tpu_custom_call.1} parent=27 // pred_check
          %p712 = pneg %p356
        $region66: #{tpu_custom_call.1} parent=27 // pred_check_branch
          %714 = sbr.rel (%p712) target = $region68
        $region67: #{tpu_custom_call.1} parent=27 // pred_region
          %s715 = sand.u32 %s48, 1
          %s716 = scalar_lea.sflag [#allocation22], %s715
          %s717 = sand.u32 %s346, 1
          %s718 = smul.addr %s717, 128
          %s719 = scalar_lea.vmem [#allocation21], %s718
          %s721 = ssub.s32 2048, 2048
          %722 = vsyncadd %s716, %s721
          %s723 = smul.addr %s56, 32
          %s724 = smul.addr %s723, 64
          %s725 = scalar_lea.hbm %s11, %s724
          %s726 = sshll.u32 %s719, 4
          %s727 = int_to_ptr.vmem [resolvable:$true] %s726
          %732 = dma.hbm_to_vmem [thread:$0]  %s725, 2048, %s727, %s716, 128, 128, 8
        $region68: #{tpu_custom_call.1} parent=27 // pred_fallthru
          _
        // Predicated region
        $region69: #{tpu_custom_call.1} parent=27 // pred_check
          %p733 = pneg %p382
        $region70: #{tpu_custom_call.1} parent=27 // pred_check_branch
          %735 = sbr.rel (%p733) target = $region72
        $region71: #{tpu_custom_call.1} parent=27 // pred_region
          %s736 = sand.u32 %s48, 1
          %s737 = scalar_lea.sflag [#allocation22], %s736
          %s738 = sand.u32 %s372, 1
          %s739 = smul.addr %s738, 2
          %s740 = scalar_lea.vmem [#allocation23], %s739
          %s742 = ssub.s32 32, 32
          %743 = vsyncadd %s737, %s742
          %s744 = smul.addr %s56, 2
          %s745 = smul.addr %s744, 16
          %s746 = scalar_lea.hbm %s12, %s745
          %s748 = sshll.u32 %s740, 4
          %s749 = int_to_ptr.vmem [resolvable:$true] %s748
          %751 = dma.hbm_to_vmem [thread:$0]  %s746, 32, %s749, %s737
        $region72: #{tpu_custom_call.1} parent=27 // pred_fallthru
          _
        // Predicated region
        $region73: #{tpu_custom_call.1} parent=27 // pred_check
          %p752 = pneg %p408
        $region74: #{tpu_custom_call.1} parent=27 // pred_check_branch
          %754 = sbr.rel (%p752) target = $region76
        $region75: #{tpu_custom_call.1} parent=27 // pred_region
          %s755 = sand.u32 %s48, 1
          %s756 = scalar_lea.sflag [#allocation25], %s755
          %s757 = sand.u32 %s398, 1
          %s758 = smul.addr %s757, 128
          %s759 = scalar_lea.vmem [#allocation24], %s758
          %s761 = ssub.s32 2048, 2048
          %762 = vsyncadd %s756, %s761
          %s763 = smul.addr %s56, 32
          %s764 = smul.addr %s763, 64
          %s765 = scalar_lea.hbm %s13, %s764
          %s766 = sshll.u32 %s759, 4
          %s767 = int_to_ptr.vmem [resolvable:$true] %s766
          %772 = dma.hbm_to_vmem [thread:$0]  %s765, 2048, %s767, %s756, 64, 64, 4
        $region76: #{tpu_custom_call.1} parent=27 // pred_fallthru
          _
        // Predicated region
        $region77: #{tpu_custom_call.1} parent=27 // pred_check
          %p773 = pneg %p434
        $region78: #{tpu_custom_call.1} parent=27 // pred_check_branch
          %775 = sbr.rel (%p773) target = $region80
        $region79: #{tpu_custom_call.1} parent=27 // pred_region
          %s776 = sand.u32 %s48, 1
          %s777 = scalar_lea.sflag [#allocation25], %s776
          %s778 = sand.u32 %s424, 1
          %s779 = scalar_lea.vmem [#allocation26], %s778
          %s781 = ssub.s32 16, 16
          %782 = vsyncadd %s777, %s781
          %s783 = smul.addr %s56, 16
          %s784 = scalar_lea.hbm %s14, %s783
          %s786 = sshll.u32 %s779, 4
          %s787 = int_to_ptr.vmem [resolvable:$true] %s786
          %789 = dma.hbm_to_vmem [thread:$0]  %s784, 16, %s787, %s777
        $region80: #{tpu_custom_call.1} parent=27 // pred_fallthru
          _
      $region28: #{tpu_custom_call.1} parent=5 // pred_fallthru
        _
      %p790 = scmp.le.s32.totalorder 1, %s48
      %p791 = scmp.lt.s32.totalorder %s48, 5
      %p792 = pnand %p790, %p791
      %p793 = pneg %p792
      // Predicated region
      $region81: #{tpu_custom_call.1} parent=5 // pred_check
        _
      $region82: #{tpu_custom_call.1} parent=5 // pred_check_branch
        %795 = sbr.rel (%p792) target = $region84
      $region83: #{tpu_custom_call.1} parent=5 // pred_region
        %s796 = ssub.s32 %s48, 1
        %s797 = sand.u32 %s73, 1
        %s798 = scalar_lea.sflag [#allocation4], %s797
        %s799 = sand.u32 %s73, 1
        %s800 = smul.addr %s799, 20
        %s801 = scalar_lea.vmem [#allocation3], %s800
        // Predicated region
        $region85: #{tpu_custom_call.1} parent=83 // pred_check
          %p802 = pneg %p86
        $region86: #{tpu_custom_call.1} parent=83 // pred_check_branch
          %804 = sbr.rel (%p802) target = $region88
        $region87: #{tpu_custom_call.1} parent=83 // pred_region
          %805 = dma.done %s798, 320
        $region88: #{tpu_custom_call.1} parent=83 // pred_fallthru
          _
        // Predicated region
        $region89: #{tpu_custom_call.1} parent=83 // pred_check
          %p806 = pneg %p107
        $region90: #{tpu_custom_call.1} parent=83 // pred_check_branch
          %808 = sbr.rel (%p806) target = $region92
        $region91: #{tpu_custom_call.1} parent=83 // pred_region
          %809 = dma.done [#allocation7], 384
        $region92: #{tpu_custom_call.1} parent=83 // pred_fallthru
          _
        // Predicated region
        $region93: #{tpu_custom_call.1} parent=83 // pred_check
          %p810 = pneg %p128
        $region94: #{tpu_custom_call.1} parent=83 // pred_check_branch
          %812 = sbr.rel (%p810) target = $region96
        $region95: #{tpu_custom_call.1} parent=83 // pred_region
          %813 = dma.done [#allocation7], 640
        $region96: #{tpu_custom_call.1} parent=83 // pred_fallthru
          _
        %s814 = sand.u32 %s53, 1
        %s815 = scalar_lea.sflag [#allocation10], %s814
        %s816 = sand.u32 %s141, 1
        %s817 = scalar_lea.vmem [#allocation9], %s816
        // Predicated region
        $region97: #{tpu_custom_call.1} parent=83 // pred_check
          %p818 = pneg %p154
        $region98: #{tpu_custom_call.1} parent=83 // pred_check_branch
          %820 = sbr.rel (%p818) target = $region100
        $region99: #{tpu_custom_call.1} parent=83 // pred_region
          %821 = dma.done %s815, 16
        $region100: #{tpu_custom_call.1} parent=83 // pred_fallthru
          _
        %s822 = sand.u32 %s53, 1
        %s823 = scalar_lea.sflag [#allocation10], %s822
        %s824 = sand.u32 %s167, 1
        %s825 = scalar_lea.vmem [#allocation11], %s824
        // Predicated region
        $region101: #{tpu_custom_call.1} parent=83 // pred_check
          %p826 = pneg %p180
        $region102: #{tpu_custom_call.1} parent=83 // pred_check_branch
          %828 = sbr.rel (%p826) target = $region104
        $region103: #{tpu_custom_call.1} parent=83 // pred_region
          %829 = dma.done %s823, 16
        $region104: #{tpu_custom_call.1} parent=83 // pred_fallthru
          _
        %s830 = sand.u32 %s53, 1
        %s831 = scalar_lea.sflag [#allocation13], %s830
        %s832 = sand.u32 %s193, 1
        %s833 = smul.addr %s832, 192
        %s834 = scalar_lea.vmem [#allocation12], %s833
        // Predicated region
        $region105: #{tpu_custom_call.1} parent=83 // pred_check
          %p835 = pneg %p206
        $region106: #{tpu_custom_call.1} parent=83 // pred_check_branch
          %837 = sbr.rel (%p835) target = $region108
        $region107: #{tpu_custom_call.1} parent=83 // pred_region
          %838 = dma.done %s831, 3072
        $region108: #{tpu_custom_call.1} parent=83 // pred_fallthru
          _
        %s839 = sand.u32 %s53, 1
        %s840 = scalar_lea.sflag [#allocation13], %s839
        %s841 = sand.u32 %s219, 1
        %s842 = smul.addr %s841, 3
        %s843 = scalar_lea.vmem [#allocation14], %s842
        // Predicated region
        $region109: #{tpu_custom_call.1} parent=83 // pred_check
          %p844 = pneg %p232
        $region110: #{tpu_custom_call.1} parent=83 // pred_check_branch
          %846 = sbr.rel (%p844) target = $region112
        $region111: #{tpu_custom_call.1} parent=83 // pred_region
          %847 = dma.done %s840, 48
        $region112: #{tpu_custom_call.1} parent=83 // pred_fallthru
          _
        %s848 = sand.u32 %s53, 1
        %s849 = scalar_lea.sflag [#allocation16], %s848
        %s850 = sand.u32 %s245, 1
        %s851 = smul.addr %s850, 64
        %s852 = scalar_lea.vmem [#allocation15], %s851
        // Predicated region
        $region113: #{tpu_custom_call.1} parent=83 // pred_check
          %p853 = pneg %p258
        $region114: #{tpu_custom_call.1} parent=83 // pred_check_branch
          %855 = sbr.rel (%p853) target = $region116
        $region115: #{tpu_custom_call.1} parent=83 // pred_region
          %856 = dma.done %s849, 1024
        $region116: #{tpu_custom_call.1} parent=83 // pred_fallthru
          _
        %s857 = sand.u32 %s53, 1
        %s858 = scalar_lea.sflag [#allocation16], %s857
        %s859 = sand.u32 %s271, 1
        %s860 = scalar_lea.vmem [#allocation17], %s859
        // Predicated region
        $region117: #{tpu_custom_call.1} parent=83 // pred_check
          %p861 = pneg %p284
        $region118: #{tpu_custom_call.1} parent=83 // pred_check_branch
          %863 = sbr.rel (%p861) target = $region120
        $region119: #{tpu_custom_call.1} parent=83 // pred_region
          %864 = dma.done %s858, 16
        $region120: #{tpu_custom_call.1} parent=83 // pred_fallthru
          _
        %s865 = sand.u32 %s53, 1
        %s866 = scalar_lea.sflag [#allocation19], %s865
        %s867 = sand.u32 %s297, 1
        %s868 = scalar_lea.vmem [#allocation18], %s867
        // Predicated region
        $region121: #{tpu_custom_call.1} parent=83 // pred_check
          %p869 = pneg %p310
        $region122: #{tpu_custom_call.1} parent=83 // pred_check_branch
          %871 = sbr.rel (%p869) target = $region124
        $region123: #{tpu_custom_call.1} parent=83 // pred_region
          %872 = dma.done %s866, 16
        $region124: #{tpu_custom_call.1} parent=83 // pred_fallthru
          _
        %s873 = sand.u32 %s53, 1
        %s874 = scalar_lea.sflag [#allocation19], %s873
        %s875 = sand.u32 %s323, 1
        %s876 = scalar_lea.vmem [#allocation20], %s875
        // Predicated region
        $region125: #{tpu_custom_call.1} parent=83 // pred_check
          %p877 = pneg %p336
        $region126: #{tpu_custom_call.1} parent=83 // pred_check_branch
          %879 = sbr.rel (%p877) target = $region128
        $region127: #{tpu_custom_call.1} parent=83 // pred_region
          %880 = dma.done %s874, 16
        $region128: #{tpu_custom_call.1} parent=83 // pred_fallthru
          _
        %s881 = sand.u32 %s53, 1
        %s882 = scalar_lea.sflag [#allocation22], %s881
        %s883 = sand.u32 %s349, 1
        %s884 = smul.addr %s883, 128
        %s885 = scalar_lea.vmem [#allocation21], %s884
        // Predicated region
        $region129: #{tpu_custom_call.1} parent=83 // pred_check
          %p886 = pneg %p362
        $region130: #{tpu_custom_call.1} parent=83 // pred_check_branch
          %888 = sbr.rel (%p886) target = $region132
        $region131: #{tpu_custom_call.1} parent=83 // pred_region
          %889 = dma.done %s882, 2048
        $region132: #{tpu_custom_call.1} parent=83 // pred_fallthru
          _
        %s890 = sand.u32 %s53, 1
        %s891 = scalar_lea.sflag [#allocation22], %s890
        %s892 = sand.u32 %s375, 1
        %s893 = smul.addr %s892, 2
        %s894 = scalar_lea.vmem [#allocation23], %s893
        // Predicated region
        $region133: #{tpu_custom_call.1} parent=83 // pred_check
          %p895 = pneg %p388
        $region134: #{tpu_custom_call.1} parent=83 // pred_check_branch
          %897 = sbr.rel (%p895) target = $region136
        $region135: #{tpu_custom_call.1} parent=83 // pred_region
          %898 = dma.done %s891, 32
        $region136: #{tpu_custom_call.1} parent=83 // pred_fallthru
          _
        %s899 = sand.u32 %s53, 1
        %s900 = scalar_lea.sflag [#allocation25], %s899
        %s901 = sand.u32 %s401, 1
        %s902 = smul.addr %s901, 128
        %s903 = scalar_lea.vmem [#allocation24], %s902
        // Predicated region
        $region137: #{tpu_custom_call.1} parent=83 // pred_check
          %p904 = pneg %p414
        $region138: #{tpu_custom_call.1} parent=83 // pred_check_branch
          %906 = sbr.rel (%p904) target = $region140
        $region139: #{tpu_custom_call.1} parent=83 // pred_region
          %907 = dma.done %s900, 2048
        $region140: #{tpu_custom_call.1} parent=83 // pred_fallthru
          _
        %s908 = sand.u32 %s53, 1
        %s909 = scalar_lea.sflag [#allocation25], %s908
        %s910 = sand.u32 %s427, 1
        %s911 = scalar_lea.vmem [#allocation26], %s910
        // Predicated region
        $region141: #{tpu_custom_call.1} parent=83 // pred_check
          %p912 = pneg %p440
        $region142: #{tpu_custom_call.1} parent=83 // pred_check_branch
          %914 = sbr.rel (%p912) target = $region144
        $region143: #{tpu_custom_call.1} parent=83 // pred_region
          %915 = dma.done %s909, 16
        $region144: #{tpu_custom_call.1} parent=83 // pred_fallthru
          _
        // Predicated region
        $region145: #{tpu_custom_call.1} parent=83 // pred_check
          %p916 = pneg %p461
        $region146: #{tpu_custom_call.1} parent=83 // pred_check_branch
          %918 = sbr.rel (%p916) target = $region148
        $region147: #{tpu_custom_call.1} parent=83 // pred_region
          %919 = dma.done [#allocation28], 256
        $region148: #{tpu_custom_call.1} parent=83 // pred_fallthru
          _
        %s920 = sand.u32 %s73, 1
        %s921 = scalar_lea.sflag [#allocation4], %s920
        %s922 = sand.u32 %s73, 1
        %s923 = smul.addr %s922, 20
        %s924 = scalar_lea.vmem [#allocation3], %s923
        %p925 = pneg %p86
        %p926 = pneg %p83
        %p927 = pneg %p107
        %p928 = pneg %p104
        %p929 = pneg %p128
        %p930 = pneg %p125
        %s931 = sand.u32 %s53, 1
        %s932 = scalar_lea.sflag [#allocation10], %s931
        %s933 = sand.u32 %s141, 1
        %s934 = scalar_lea.vmem [#allocation9], %s933
        %p935 = pneg %p154
        %p936 = pneg %p151
        %s937 = sand.u32 %s53, 1
        %s938 = scalar_lea.sflag [#allocation10], %s937
        %s939 = sand.u32 %s167, 1
        %s940 = scalar_lea.vmem [#allocation11], %s939
        %p941 = pneg %p180
        %p942 = pneg %p177
        %s943 = sand.u32 %s53, 1
        %s944 = scalar_lea.sflag [#allocation13], %s943
        %s945 = sand.u32 %s193, 1
        %s946 = smul.addr %s945, 192
        %s947 = scalar_lea.vmem [#allocation12], %s946
        %p948 = pneg %p206
        %p949 = pneg %p203
        %s950 = sand.u32 %s53, 1
        %s951 = scalar_lea.sflag [#allocation13], %s950
        %s952 = sand.u32 %s219, 1
        %s953 = smul.addr %s952, 3
        %s954 = scalar_lea.vmem [#allocation14], %s953
        %p955 = pneg %p232
        %p956 = pneg %p229
        %s957 = sand.u32 %s53, 1
        %s958 = scalar_lea.sflag [#allocation16], %s957
        %s959 = sand.u32 %s245, 1
        %s960 = smul.addr %s959, 64
        %s961 = scalar_lea.vmem [#allocation15], %s960
        %p962 = pneg %p258
        %p963 = pneg %p255
        %s964 = sand.u32 %s53, 1
        %s965 = scalar_lea.sflag [#allocation16], %s964
        %s966 = sand.u32 %s271, 1
        %s967 = scalar_lea.vmem [#allocation17], %s966
        %p968 = pneg %p284
        %p969 = pneg %p281
        %s970 = sand.u32 %s53, 1
        %s971 = scalar_lea.sflag [#allocation19], %s970
        %s972 = sand.u32 %s297, 1
        %s973 = scalar_lea.vmem [#allocation18], %s972
        %p974 = pneg %p310
        %p975 = pneg %p307
        %s976 = sand.u32 %s53, 1
        %s977 = scalar_lea.sflag [#allocation19], %s976
        %s978 = sand.u32 %s323, 1
        %s979 = scalar_lea.vmem [#allocation20], %s978
        %p980 = pneg %p336
        %p981 = pneg %p333
        %s982 = sand.u32 %s53, 1
        %s983 = scalar_lea.sflag [#allocation22], %s982
        %s984 = sand.u32 %s349, 1
        %s985 = smul.addr %s984, 128
        %s986 = scalar_lea.vmem [#allocation21], %s985
        %p987 = pneg %p362
        %p988 = pneg %p359
        %s989 = sand.u32 %s53, 1
        %s990 = scalar_lea.sflag [#allocation22], %s989
        %s991 = sand.u32 %s375, 1
        %s992 = smul.addr %s991, 2
        %s993 = scalar_lea.vmem [#allocation23], %s992
        %p994 = pneg %p388
        %p995 = pneg %p385
        %s996 = sand.u32 %s53, 1
        %s997 = scalar_lea.sflag [#allocation25], %s996
        %s998 = sand.u32 %s401, 1
        %s999 = smul.addr %s998, 128
        %s1000 = scalar_lea.vmem [#allocation24], %s999
        %p1001 = pneg %p414
        %p1002 = pneg %p411
        %s1003 = sand.u32 %s53, 1
        %s1004 = scalar_lea.sflag [#allocation25], %s1003
        %s1005 = sand.u32 %s427, 1
        %s1006 = scalar_lea.vmem [#allocation26], %s1005
        %p1007 = pneg %p440
        %p1008 = pneg %p437
        %p1009 = pneg %p461
        %p1010 = pneg %p458
        %p1011 = pneg %p487
        %p1012 = pneg %p484
        %s1013 = sand.u32 %s474, 1
        %s1014 = scalar_lea.sflag [#allocation5], %s1013
        %s1015 = sand.u32 %s474, 1
        %s1016 = smul.addr %s1015, 16
        %s1017 = scalar_lea.vmem [#allocation29], %s1016
        %p1019 = scmp.eq.s32.totalorder %s58, 0
        // Predicated region
        $region149: #{tpu_custom_call.1} parent=83 // pred_check
          %p1020 = pneg %p1019
        $region150: #{tpu_custom_call.1} parent=83 // pred_check_branch
          %1022 = sbr.rel (%p1020) target = $region152
        $region151: #{tpu_custom_call.1} parent=83 // pred_region
          %v1023 = vld [vmem:[%s801] sm:$0xf]
          %v1024 = vld [vmem:[%s801 + $0x4] sm:$0xf]
          %v1025 = vld [vmem:[%s801 + $0x8] sm:$0xf]
          %v1026 = vld [vmem:[%s801 + $0xc] sm:$0xf]
          %v1027 = vld [vmem:[%s801 + $0x10] sm:$0x3]
          %v1028 = vld [vmem:[#allocation6] sm:$0xf]
          %v1029 = vld [vmem:[#allocation6 + $0x4] sm:$0xf]
          %v1030 = vld [vmem:[#allocation6 + $0x8] sm:$0xf]
          %v1031 = vld [vmem:[#allocation6 + $0xc] sm:$0xf]
          %v1032 = vld [vmem:[#allocation6 + $0x10] sm:$0xf]
          %v1033 = vld [vmem:[#allocation6 + $0x14] sm:$0xf]
          %v1034 = vld [vmem:[#allocation8] sm:$0xff]
          %v1035 = vld [vmem:[#allocation8 + $0x8] sm:$0xff]
          %v1036 = vld [vmem:[#allocation8 + $0x10] sm:$0xff]
          %v1037 = vld [vmem:[#allocation8 + $0x18] sm:$0xff]
          %v1038 = vld [vmem:[#allocation8 + $0x20] sm:$0xf]
          %v1044 = vunpack.c.l.b16 %v1023
          %v1045 = vunpack.c.l.b16 %v1024
          %v1046 = vunpack.c.l.b16 %v1025
          %v1047 = vunpack.c.l.b16 %v1026
          %v1048 = vunpack.c.l.b16 %v1027
          %v1049 = vpack.c.b16 %v1045, %v1044
          %v1050 = vpack.c.b16 %v1047, %v1046
          %v1051 = vpack.c.b16 %v1048, %v1048
          %v1058 = vunpack.c.l.b16 %v1028
          %v1059 = vunpack.c.l.b16 %v1029
          %v1060 = vunpack.c.l.b16 %v1030
          %v1061 = vunpack.c.l.b16 %v1031
          %v1062 = vunpack.c.l.b16 %v1032
          %v1063 = vunpack.c.l.b16 %v1033
          %v1064 = vpack.c.b16 %v1059, %v1058
          %v1065 = vpack.c.b16 %v1061, %v1060
          %v1066 = vpack.c.b16 %v1063, %v1062
          %vm1070 = vcmask 392192
          %v1072 = vsel %vm1070, %v1049, 0
          %v1075 = vsel %vm1070, %v1050, 0
          %v1078 = vsel %vm1070, %v1051, 0
          %1080 = vmatprep.subr.bf16.mxu0 0
          %1081 = vmatpush1.bf16.msra.mxu0 %v1064
          %1082 = vmatprep.subr.bf16.mxu0 0
          %1083 = vmatpush1.bf16.msra.mxu0 %v1065
          %1084 = vmatprep.subr.bf16.mxu0 0
          %1085 = vmatpush1.bf16.msra.mxu0 %v1066
          %1086 = vmatprep.subr.bf16.mxu0 0
          %1087 = vmatpush1.bf16.msra.mxu0 0
          %1088 = vmatprep.subr.bf16.mxu0 0
          %1089 = vmatpush1.bf16.msra.mxu0 0
          %1090 = vmatprep.subr.bf16.mxu0 0
          %1091 = vmatpush1.bf16.msra.mxu0 0
          %1092 = vmatprep.subr.bf16.mxu0 0
          %1093 = vmatpush1.bf16.msra.mxu0 0
          %1094 = vmatprep.subr.bf16.mxu0 0
          %1095 = vmatpush1.bf16.msra.mxu0 0
          %1096 = vmatprep.subr.bf16.mxu0 0
          %1097 = vmatpush1.bf16.msra.mxu0 0
          %1098 = vmatprep.subr.bf16.mxu0 0
          %1099 = vmatpush1.bf16.msra.mxu0 0
          %1100 = vmatprep.subr.bf16.mxu0 0
          %1101 = vmatpush1.bf16.msra.mxu0 0
          %1102 = vmatprep.subr.bf16.mxu0 0
          %1103 = vmatpush1.bf16.msra.mxu0 0
          %1104 = vmatprep.subr.bf16.mxu0 0
          %1105 = vmatpush1.bf16.msra.mxu0 0
          %1106 = vmatprep.subr.bf16.mxu0 0
          %1107 = vmatpush1.bf16.msra.mxu0 0
          %1108 = vmatprep.subr.bf16.mxu0 0
          %1109 = vmatpush1.bf16.msra.mxu0 0
          %1110 = vmatprep.subr.bf16.mxu0 0
          %1111 = vmatpush1.bf16.msra.mxu0 0
          %1112 = vmatprep.mubr.bf16.mxu0 0
          %1113 = vmatmul.mubr.bf16.gmra.mrb[0].mxu0 %v1072
          %v1114 = vpop.f32.mrb[0].mxu0
          %v1115 = vadd.f32 %v1034, %v1114
          %v1116 = vpop.f32.mrb[0].mxu0
          %v1117 = vpop.f32.mrb[0].mxu0
          %v1118 = vadd.f32 %v1035, %v1117
          %v1119 = vpop.f32.mrb[0].mxu0
          %1120 = vmatprep.mubr.bf16.mxu0 0
          %1121 = vmatmul.mubr.bf16.gmra.mrb[0].mxu0 %v1075
          %v1122 = vpop.f32.mrb[0].mxu0
          %v1123 = vadd.f32 %v1036, %v1122
          %v1124 = vpop.f32.mrb[0].mxu0
          %v1125 = vpop.f32.mrb[0].mxu0
          %v1126 = vadd.f32 %v1037, %v1125
          %v1127 = vpop.f32.mrb[0].mxu0
          %1128 = vmatprep.mubr.bf16.mxu0 0
          %1129 = vmatmul.mubr.bf16.gmra.mrb[0].mxu0 %v1078
          %v1130 = vpop.f32.mrb[0].mxu0
          %v1131 = vadd.f32 %v1038, %v1130
          %v1132 = vpop.f32.mrb[0].mxu0
          %v1133 = vpop.f32.mrb[0].mxu0
          %v1134 = vpop.f32.mrb[0].mxu0
          %1135 = vdwg.mxu0
          %1136 = vst [vmem:[#allocation2] sm:$0xff] %v1115
          %1137 = vst [vmem:[#allocation2 + $0x8] sm:$0xff] %v1118
          %1138 = vst [vmem:[#allocation2 + $0x10] sm:$0xff] %v1123
          %1139 = vst [vmem:[#allocation2 + $0x18] sm:$0xff] %v1126
          %1140 = vst [vmem:[#allocation2 + $0x20] sm:$0xf] %v1131
        $region152: #{tpu_custom_call.1} parent=83 // pred_fallthru
          _
        %v1141 = vld [vmem:[#allocation2] sm:$0xff]
        %v1142 = vld [vmem:[#allocation2 + $0x8] sm:$0xff]
        %v1143 = vld [vmem:[#allocation2 + $0x10] sm:$0xff]
        %v1144 = vld [vmem:[#allocation2 + $0x18] sm:$0xff]
        %v1145 = vld [vmem:[#allocation2 + $0x20] sm:$0xf]
        %v1146 = vld [vmem:[%s817] sm:$0x1]
        %v1147 = vld [vmem:[%s825] sm:$0x1]
        %1148 = vadd.xlane.f32.xlu0 %v1141
        %v1149 = vpop.xlane.xlu0 %1148
        %1150 = vadd.xlane.f32.xlu0 %v1142
        %v1151 = vpop.xlane.xlu0 %1150
        %1152 = vadd.xlane.f32.xlu0 %v1143
        %v1153 = vpop.xlane.xlu0 %1152
        %1154 = vadd.xlane.f32.xlu0 %v1144
        %v1155 = vpop.xlane.xlu0 %1154
        %vm1156 = vcmask 1043456
        %v1157 = vsel %vm1156, %v1145, 0.0
        %1158 = vadd.xlane.f32.xlu0 %v1157
        %v1159 = vpop.xlane.xlu0 %1158
        %v1160 = vrcp.pop 128.0
        %v1161 = vmul.f32 %v1149, %v1160
        %v1162 = vmul.f32 %v1151, %v1160
        %v1163 = vmul.f32 %v1153, %v1160
        %v1164 = vmul.f32 %v1155, %v1160
        %v1165 = vmul.f32 %v1159, %v1160
        %v1166 = vsub.f32 %v1141, %v1161
        %v1167 = vsub.f32 %v1142, %v1162
        %v1168 = vsub.f32 %v1143, %v1163
        %v1169 = vsub.f32 %v1144, %v1164
        %v1170 = vsub.f32 %v1145, %v1165
        %v1171 = vmul.f32 %v1166, %v1166
        %v1172 = vmul.f32 %v1167, %v1167
        %v1173 = vmul.f32 %v1168, %v1168
        %v1174 = vmul.f32 %v1169, %v1169
        %v1175 = vmul.f32 %v1170, %v1170
        %1176 = vadd.xlane.f32.xlu0 %v1171
        %v1177 = vpop.xlane.xlu0 %1176
        %1178 = vadd.xlane.f32.xlu0 %v1172
        %v1179 = vpop.xlane.xlu0 %1178
        %1180 = vadd.xlane.f32.xlu0 %v1173
        %v1181 = vpop.xlane.xlu0 %1180
        %1182 = vadd.xlane.f32.xlu0 %v1174
        %v1183 = vpop.xlane.xlu0 %1182
        %v1184 = vsel %vm1156, %v1175, 0.0
        %1185 = vadd.xlane.f32.xlu0 %v1184
        %v1186 = vpop.xlane.xlu0 %1185
        %v1187 = vmul.f32 %v1177, %v1160
        %v1188 = vmul.f32 %v1179, %v1160
        %v1189 = vmul.f32 %v1181, %v1160
        %v1190 = vmul.f32 %v1183, %v1160
        %v1191 = vmul.f32 %v1186, %v1160
        %v1192 = vadd.f32 %v1187, 1e-06
        %v1193 = vadd.f32 %v1188, 1e-06
        %v1194 = vadd.f32 %v1189, 1e-06
        %v1195 = vadd.f32 %v1190, 1e-06
        %v1196 = vadd.f32 %v1191, 1e-06
        %v1197 = vrsqrt.pop %v1192
        %v1198 = vrsqrt.pop %v1193
        %v1199 = vrsqrt.pop %v1194
        %v1200 = vrsqrt.pop %v1195
        %v1201 = vrsqrt.pop %v1196
        %v1202 = vmul.f32 %v1166, %v1197
        %v1203 = vmul.f32 %v1167, %v1198
        %v1204 = vmul.f32 %v1168, %v1199
        %v1205 = vmul.f32 %v1169, %v1200
        %v1206 = vmul.f32 %v1170, %v1201
        %v1208 = vlaneseq
        %v1209 = vshrl.u32 %v1208, 7
        %v1210 = vsub.s32 0, %v1209
        %v1211 = vrot.slane %v1146, %v1210
        %v1213 = vmul.f32 %v1202, %v1211
        %v1214 = vmul.f32 %v1203, %v1211
        %v1215 = vmul.f32 %v1204, %v1211
        %v1216 = vmul.f32 %v1205, %v1211
        %v1217 = vmul.f32 %v1206, %v1211
        %v1219 = vlaneseq
        %v1220 = vshrl.u32 %v1219, 7
        %v1221 = vsub.s32 0, %v1220
        %v1222 = vrot.slane %v1147, %v1221
        %v1224 = vadd.f32 %v1213, %v1222
        %v1225 = vadd.f32 %v1214, %v1222
        %v1226 = vadd.f32 %v1215, %v1222
        %v1227 = vadd.f32 %v1216, %v1222
        %v1228 = vadd.f32 %v1217, %v1222
        %v1229 = vpack.c.bf16 %v1225, %v1224
        %v1230 = vpack.c.bf16 %v1227, %v1226
        %v1231 = vpack.c.bf16 %v1228, %v1228
        %v1232 = vld [vmem:[%s834] sm:$0xff]
        %v1233 = vld [vmem:[%s834 + $0x8] sm:$0xf]
        %v1234 = vld [vmem:[%s834 + $0xc] sm:$0xff]
        %v1235 = vld [vmem:[%s834 + $0x14] sm:$0xf]
        %v1236 = vld [vmem:[%s834 + $0x18] sm:$0xff]
        %v1237 = vld [vmem:[%s834 + $0x20] sm:$0xf]
        %v1238 = vld [vmem:[%s834 + $0x24] sm:$0xff]
        %v1239 = vld [vmem:[%s834 + $0x2c] sm:$0xf]
        %v1240 = vld [vmem:[%s834 + $0x30] sm:$0xff]
        %v1241 = vld [vmem:[%s834 + $0x38] sm:$0xf]
        %v1242 = vld [vmem:[%s834 + $0x3c] sm:$0xff]
        %v1243 = vld [vmem:[%s834 + $0x44] sm:$0xf]
        %v1244 = vld [vmem:[%s834 + $0x48] sm:$0xff]
        %v1245 = vld [vmem:[%s834 + $0x50] sm:$0xf]
        %v1246 = vld [vmem:[%s834 + $0x54] sm:$0xff]
        %v1247 = vld [vmem:[%s834 + $0x5c] sm:$0xf]
        %v1248 = vld [vmem:[%s834 + $0x60] sm:$0xff]
        %v1249 = vld [vmem:[%s834 + $0x68] sm:$0xf]
        %v1250 = vld [vmem:[%s834 + $0x6c] sm:$0xff]
        %v1251 = vld [vmem:[%s834 + $0x74] sm:$0xf]
        %v1252 = vld [vmem:[%s834 + $0x78] sm:$0xff]
        %v1253 = vld [vmem:[%s834 + $0x80] sm:$0xf]
        %v1254 = vld [vmem:[%s834 + $0x84] sm:$0xff]
        %v1255 = vld [vmem:[%s834 + $0x8c] sm:$0xf]
        %v1256 = vld [vmem:[%s834 + $0x90] sm:$0xff]
        %v1257 = vld [vmem:[%s834 + $0x98] sm:$0xf]
        %v1258 = vld [vmem:[%s834 + $0x9c] sm:$0xff]
        %v1259 = vld [vmem:[%s834 + $0xa4] sm:$0xf]
        %v1260 = vld [vmem:[%s834 + $0xa8] sm:$0xff]
        %v1261 = vld [vmem:[%s834 + $0xb0] sm:$0xf]
        %v1262 = vld [vmem:[%s834 + $0xb4] sm:$0xff]
        %v1263 = vld [vmem:[%s834 + $0xbc] sm:$0xf]
        %v1264 = vld [vmem:[%s843] sm:$0x7]
        %v1266 = vlaneseq
        %v1267 = vshrl.u32 %v1266, 7
        %v1268 = vsub.s32 0, %v1267
        %v1269 = vrot.slane %v1264, %v1268
        %v1270 = vlaneseq
        %v1271 = vshrl.u32 %v1270, 7
        %v1272 = vsub.s32 1, %v1271
        %v1273 = vrot.slane %v1264, %v1272
        %v1274 = vlaneseq
        %v1275 = vshrl.u32 %v1274, 7
        %v1276 = vsub.s32 2, %v1275
        %v1277 = vrot.slane %v1264, %v1276
        %v1313 = vunpack.c.l.b16 %v1232
        %v1314 = vunpack.c.h.b16 %v1232
        %v1315 = vunpack.c.l.b16 %v1233
        %v1316 = vunpack.c.l.b16 %v1234
        %v1317 = vunpack.c.h.b16 %v1234
        %v1318 = vunpack.c.l.b16 %v1235
        %v1319 = vunpack.c.l.b16 %v1236
        %v1320 = vunpack.c.h.b16 %v1236
        %v1321 = vunpack.c.l.b16 %v1237
        %v1322 = vunpack.c.l.b16 %v1238
        %v1323 = vunpack.c.h.b16 %v1238
        %v1324 = vunpack.c.l.b16 %v1239
        %v1325 = vunpack.c.l.b16 %v1240
        %v1326 = vunpack.c.h.b16 %v1240
        %v1327 = vunpack.c.l.b16 %v1241
        %v1328 = vunpack.c.l.b16 %v1242
        %v1329 = vunpack.c.h.b16 %v1242
        %v1330 = vunpack.c.l.b16 %v1243
        %v1331 = vunpack.c.l.b16 %v1244
        %v1332 = vunpack.c.h.b16 %v1244
        %v1333 = vunpack.c.l.b16 %v1245
        %v1334 = vunpack.c.l.b16 %v1246
        %v1335 = vunpack.c.h.b16 %v1246
        %v1336 = vunpack.c.l.b16 %v1247
        %v1337 = vunpack.c.l.b16 %v1248
        %v1338 = vunpack.c.h.b16 %v1248
        %v1339 = vunpack.c.l.b16 %v1249
        %v1340 = vunpack.c.l.b16 %v1250
        %v1341 = vunpack.c.h.b16 %v1250
        %v1342 = vunpack.c.l.b16 %v1251
        %v1343 = vunpack.c.l.b16 %v1252
        %v1344 = vunpack.c.h.b16 %v1252
        %v1345 = vunpack.c.l.b16 %v1253
        %v1346 = vunpack.c.l.b16 %v1254
        %v1347 = vunpack.c.h.b16 %v1254
        %v1348 = vunpack.c.l.b16 %v1255
        %v1349 = vunpack.c.l.b16 %v1256
        %v1350 = vunpack.c.h.b16 %v1256
        %v1351 = vunpack.c.l.b16 %v1257
        %v1352 = vunpack.c.l.b16 %v1258
        %v1353 = vunpack.c.h.b16 %v1258
        %v1354 = vunpack.c.l.b16 %v1259
        %v1355 = vunpack.c.l.b16 %v1260
        %v1356 = vunpack.c.h.b16 %v1260
        %v1357 = vunpack.c.l.b16 %v1261
        %v1358 = vunpack.c.l.b16 %v1262
        %v1359 = vunpack.c.h.b16 %v1262
        %v1360 = vunpack.c.l.b16 %v1263
        %v1361 = vpack.c.b16 %v1316, %v1313
        %v1362 = vpack.c.b16 %v1317, %v1314
        %v1363 = vpack.c.b16 %v1318, %v1315
        %v1364 = vpack.c.b16 %v1322, %v1319
        %v1365 = vpack.c.b16 %v1323, %v1320
        %v1366 = vpack.c.b16 %v1324, %v1321
        %v1367 = vpack.c.b16 %v1328, %v1325
        %v1368 = vpack.c.b16 %v1329, %v1326
        %v1369 = vpack.c.b16 %v1330, %v1327
        %v1370 = vpack.c.b16 %v1334, %v1331
        %v1371 = vpack.c.b16 %v1335, %v1332
        %v1372 = vpack.c.b16 %v1336, %v1333
        %v1373 = vpack.c.b16 %v1340, %v1337
        %v1374 = vpack.c.b16 %v1341, %v1338
        %v1375 = vpack.c.b16 %v1342, %v1339
        %v1376 = vpack.c.b16 %v1346, %v1343
        %v1377 = vpack.c.b16 %v1347, %v1344
        %v1378 = vpack.c.b16 %v1348, %v1345
        %v1379 = vpack.c.b16 %v1352, %v1349
        %v1380 = vpack.c.b16 %v1353, %v1350
        %v1381 = vpack.c.b16 %v1354, %v1351
        %v1382 = vpack.c.b16 %v1358, %v1355
        %v1383 = vpack.c.b16 %v1359, %v1356
        %v1384 = vpack.c.b16 %v1360, %v1357
        %1409 = vmatprep.subr.bf16.mxu0 %v1362
        %1410 = vmatpush1.bf16.msra.mxu0 %v1361
        %1411 = vmatprep.subr.bf16.mxu0 %v1365
        %1412 = vmatpush1.bf16.msra.mxu0 %v1364
        %1413 = vmatprep.subr.bf16.mxu0 %v1368
        %1414 = vmatpush1.bf16.msra.mxu0 %v1367
        %1415 = vmatprep.subr.bf16.mxu0 %v1371
        %1416 = vmatpush1.bf16.msra.mxu0 %v1370
        %1417 = vmatprep.subr.bf16.mxu0 %v1374
        %1418 = vmatpush1.bf16.msra.mxu0 %v1373
        %1419 = vmatprep.subr.bf16.mxu0 %v1377
        %1420 = vmatpush1.bf16.msra.mxu0 %v1376
        %1421 = vmatprep.subr.bf16.mxu0 %v1380
        %1422 = vmatpush1.bf16.msra.mxu0 %v1379
        %1423 = vmatprep.subr.bf16.mxu0 %v1383
        %1424 = vmatpush1.bf16.msra.mxu0 %v1382
        %1425 = vmatprep.subr.bf16.mxu0 0
        %1426 = vmatpush1.bf16.msra.mxu0 0
        %1427 = vmatprep.subr.bf16.mxu0 0
        %1428 = vmatpush1.bf16.msra.mxu0 0
        %1429 = vmatprep.subr.bf16.mxu0 0
        %1430 = vmatpush1.bf16.msra.mxu0 0
        %1431 = vmatprep.subr.bf16.mxu0 0
        %1432 = vmatpush1.bf16.msra.mxu0 0
        %1433 = vmatprep.subr.bf16.mxu0 0
        %1434 = vmatpush1.bf16.msra.mxu0 0
        %1435 = vmatprep.subr.bf16.mxu0 0
        %1436 = vmatpush1.bf16.msra.mxu0 0
        %1437 = vmatprep.subr.bf16.mxu0 0
        %1438 = vmatpush1.bf16.msra.mxu0 0
        %1439 = vmatprep.subr.bf16.mxu0 0
        %1440 = vmatpush1.bf16.msra.mxu0 0
        %1441 = vmatprep.mubr.bf16.mxu0 0
        %1442 = vmatmul.mubr.bf16.gmra.mrb[0].mxu0 %v1229
        %v1443 = vpop.f32.mrb[0].mxu0
        %v1444 = vadd.f32 %v1269, %v1443
        %v1445 = vpop.f32.mrb[0].mxu0
        %v1446 = vadd.f32 %v1273, %v1445
        %v1447 = vpop.f32.mrb[0].mxu0
        %v1448 = vadd.f32 %v1269, %v1447
        %v1449 = vpop.f32.mrb[0].mxu0
        %v1450 = vadd.f32 %v1273, %v1449
        %1451 = vmatprep.mubr.bf16.mxu0 0
        %1452 = vmatmul.mubr.bf16.gmra.mrb[0].mxu0 %v1230
        %v1453 = vpop.f32.mrb[0].mxu0
        %v1454 = vadd.f32 %v1269, %v1453
        %v1455 = vpop.f32.mrb[0].mxu0
        %v1456 = vadd.f32 %v1273, %v1455
        %v1457 = vpop.f32.mrb[0].mxu0
        %v1458 = vadd.f32 %v1269, %v1457
        %v1459 = vpop.f32.mrb[0].mxu0
        %v1460 = vadd.f32 %v1273, %v1459
        %1461 = vmatprep.mubr.bf16.mxu0 0
        %1462 = vmatmul.mubr.bf16.gmra.mrb[0].mxu0 %v1231
        %v1463 = vpop.f32.mrb[0].mxu0
        %v1464 = vadd.f32 %v1269, %v1463
        %v1465 = vpop.f32.mrb[0].mxu0
        %v1466 = vadd.f32 %v1273, %v1465
        %v1467 = vpop.f32.mrb[0].mxu0
        %v1468 = vpop.f32.mrb[0].mxu0
        %1469 = vdwg.mxu0
        %1470 = vmatprep.subr.bf16.mxu0 0
        %1471 = vmatpush1.bf16.msra.mxu0 %v1363
        %1472 = vmatprep.subr.bf16.mxu0 0
        %1473 = vmatpush1.bf16.msra.mxu0 %v1366
        %1474 = vmatprep.subr.bf16.mxu0 0
        %1475 = vmatpush1.bf16.msra.mxu0 %v1369
        %1476 = vmatprep.subr.bf16.mxu0 0
        %1477 = vmatpush1.bf16.msra.mxu0 %v1372
        %1478 = vmatprep.subr.bf16.mxu0 0
        %1479 = vmatpush1.bf16.msra.mxu0 %v1375
        %1480 = vmatprep.subr.bf16.mxu0 0
        %1481 = vmatpush1.bf16.msra.mxu0 %v1378
        %1482 = vmatprep.subr.bf16.mxu0 0
        %1483 = vmatpush1.bf16.msra.mxu0 %v1381
        %1484 = vmatprep.subr.bf16.mxu0 0
        %1485 = vmatpush1.bf16.msra.mxu0 %v1384
        %1486 = vmatprep.subr.bf16.mxu0 0
        %1487 = vmatpush1.bf16.msra.mxu0 0
        %1488 = vmatprep.subr.bf16.mxu0 0
        %1489 = vmatpush1.bf16.msra.mxu0 0
        %1490 = vmatprep.subr.bf16.mxu0 0
        %1491 = vmatpush1.bf16.msra.mxu0 0
        %1492 = vmatprep.subr.bf16.mxu0 0
        %1493 = vmatpush1.bf16.msra.mxu0 0
        %1494 = vmatprep.subr.bf16.mxu0 0
        %1495 = vmatpush1.bf16.msra.mxu0 0
        %1496 = vmatprep.subr.bf16.mxu0 0
        %1497 = vmatpush1.bf16.msra.mxu0 0
        %1498 = vmatprep.subr.bf16.mxu0 0
        %1499 = vmatpush1.bf16.msra.mxu0 0
        %1500 = vmatprep.subr.bf16.mxu0 0
        %1501 = vmatpush1.bf16.msra.mxu0 0
        %1502 = vmatprep.mubr.bf16.mxu0 0
        %1503 = vmatmul.mubr.bf16.gmra.mrb[0].mxu0 %v1229
        %v1504 = vpop.f32.mrb[0].mxu0
        %v1505 = vadd.f32 %v1277, %v1504
        %v1506 = vpop.f32.mrb[0].mxu0
        %v1507 = vpop.f32.mrb[0].mxu0
        %v1508 = vadd.f32 %v1277, %v1507
        %v1509 = vpop.f32.mrb[0].mxu0
        %1510 = vmatprep.mubr.bf16.mxu0 0
        %1511 = vmatmul.mubr.bf16.gmra.mrb[0].mxu0 %v1230
        %v1512 = vpop.f32.mrb[0].mxu0
        %v1513 = vadd.f32 %v1277, %v1512
        %v1514 = vpop.f32.mrb[0].mxu0
        %v1515 = vpop.f32.mrb[0].mxu0
        %v1516 = vadd.f32 %v1277, %v1515
        %v1517 = vpop.f32.mrb[0].mxu0
        %1518 = vmatprep.mubr.bf16.mxu0 0
        %1519 = vmatmul.mubr.bf16.gmra.mrb[0].mxu0 %v1231
        %v1520 = vpop.f32.mrb[0].mxu0
        %v1521 = vadd.f32 %v1277, %v1520
        %v1522 = vpop.f32.mrb[0].mxu0
        %v1523 = vpop.f32.mrb[0].mxu0
        %v1524 = vpop.f32.mrb[0].mxu0
        %1525 = vdwg.mxu0
        %v1526 = vpack.c.bf16 %v1448, %v1444
        %v1527 = vpack.c.bf16 %v1458, %v1454
        %v1528 = vpack.c.bf16 %v1464, %v1464
        %v1529 = vpack.c.bf16 %v1450, %v1446
        %v1530 = vpack.c.bf16 %v1460, %v1456
        %v1531 = vpack.c.bf16 %v1466, %v1466
        %v1532 = vpack.c.bf16 %v1508, %v1505
        %v1533 = vpack.c.bf16 %v1516, %v1513
        %v1534 = vpack.c.bf16 %v1521, %v1521
        %vm1535 = vcmask 261120
        %v1537 = vsel %vm1535, %v1526, 0
        %v1540 = vsel %vm1535, %v1527, 0
        %v1543 = vsel %vm1535, %v1528, 0
        %v1546 = vsel %vm1535, %v1529, 0
        %v1549 = vsel %vm1535, %v1530, 0
        %v1552 = vsel %vm1535, %v1531, 0
        %1554 = vmatprep.subr.bf16.mxu0 0
        %1555 = vmatpush1.bf16.xpose.msra.mxu0 %v1546
        %1556 = vmatprep.subr.bf16.mxu0 0
        %1557 = vmatpush1.bf16.xpose.msra.mxu0 %v1549
        %1558 = vmatprep.subr.bf16.mxu0 0
        %1559 = vmatpush1.bf16.xpose.msra.mxu0 %v1552
        %1560 = vmatprep.subr.bf16.mxu0 0
        %1561 = vmatpush1.bf16.xpose.msra.mxu0 0
        %1562 = vmatprep.subr.bf16.mxu0 0
        %1563 = vmatpush1.bf16.xpose.msra.mxu0 0
        %1564 = vmatprep.subr.bf16.mxu0 0
        %1565 = vmatpush1.bf16.xpose.msra.mxu0 0
        %1566 = vmatprep.subr.bf16.mxu0 0
        %1567 = vmatpush1.bf16.xpose.msra.mxu0 0
        %1568 = vmatprep.subr.bf16.mxu0 0
        %1569 = vmatpush1.bf16.xpose.msra.mxu0 0
        %1570 = vmatprep.subr.bf16.mxu0 0
        %1571 = vmatpush1.bf16.xpose.msra.mxu0 0
        %1572 = vmatprep.subr.bf16.mxu0 0
        %1573 = vmatpush1.bf16.xpose.msra.mxu0 0
        %1574 = vmatprep.subr.bf16.mxu0 0
        %1575 = vmatpush1.bf16.xpose.msra.mxu0 0
        %1576 = vmatprep.subr.bf16.mxu0 0
        %1577 = vmatpush1.bf16.xpose.msra.mxu0 0
        %1578 = vmatprep.subr.bf16.mxu0 0
        %1579 = vmatpush1.bf16.xpose.msra.mxu0 0
        %1580 = vmatprep.subr.bf16.mxu0 0
        %1581 = vmatpush1.bf16.xpose.msra.mxu0 0
        %1582 = vmatprep.subr.bf16.mxu0 0
        %1583 = vmatpush1.bf16.xpose.msra.mxu0 0
        %1584 = vmatprep.subr.bf16.mxu0 0
        %1585 = vmatpush1.bf16.xpose.msra.mxu0 0
        %1586 = vmatprep.mubr.bf16.mxu0 0
        %1587 = vmatmul.mubr.bf16.gmra.mrb[0].mxu0 %v1537
        %v1588 = vpop.f32.mrb[0].mxu0
        %v1589 = vadd.f32 0.0, %v1588
        %v1590 = vpop.f32.mrb[0].mxu0
        %v1591 = vpop.f32.mrb[0].mxu0
        %v1592 = vadd.f32 0.0, %v1591
        %v1593 = vpop.f32.mrb[0].mxu0
        %1594 = vmatprep.mubr.bf16.mxu0 0
        %1595 = vmatmul.mubr.bf16.gmra.mrb[0].mxu0 %v1540
        %v1596 = vpop.f32.mrb[0].mxu0
        %v1597 = vadd.f32 0.0, %v1596
        %v1598 = vpop.f32.mrb[0].mxu0
        %v1599 = vpop.f32.mrb[0].mxu0
        %v1600 = vadd.f32 0.0, %v1599
        %v1601 = vpop.f32.mrb[0].mxu0
        %1602 = vmatprep.mubr.bf16.mxu0 0
        %1603 = vmatmul.mubr.bf16.gmra.mrb[0].mxu0 %v1543
        %v1604 = vpop.f32.mrb[0].mxu0
        %v1605 = vadd.f32 0.0, %v1604
        %v1606 = vpop.f32.mrb[0].mxu0
        %v1607 = vpop.f32.mrb[0].mxu0
        %v1608 = vpop.f32.mrb[0].mxu0
        %1609 = vdwg.mxu0
        %v1610 = vmul.f32 %v1589, 0.17677669
        %v1611 = vmul.f32 %v1592, 0.17677669
        %v1612 = vmul.f32 %v1597, 0.17677669
        %v1613 = vmul.f32 %v1600, 0.17677669
        %v1614 = vmul.f32 %v1605, 0.17677669
        %vm1615 = vcmask 293888
        %v1616 = vsel %vm1615, %v1610, -inf
        %1617 = vmax.xlane.f32.xlu0 %v1616
        %v1618 = vpop.xlane.xlu0 %1617
        %v1619 = vsel %vm1615, %v1611, -inf
        %1620 = vmax.xlane.f32.xlu0 %v1619
        %v1621 = vpop.xlane.xlu0 %1620
        %v1622 = vsel %vm1615, %v1612, -inf
        %1623 = vmax.xlane.f32.xlu0 %v1622
        %v1624 = vpop.xlane.xlu0 %1623
        %v1625 = vsel %vm1615, %v1613, -inf
        %1626 = vmax.xlane.f32.xlu0 %v1625
        %v1627 = vpop.xlane.xlu0 %1626
        %vm1628 = vcmask 289792
        %v1629 = vsel %vm1628, %v1614, -inf
        %1630 = vmax.xlane.f32.xlu0 %v1629
        %v1631 = vpop.xlane.xlu0 %1630
        %v1632 = vsub.f32 %v1610, %v1618
        %v1633 = vsub.f32 %v1611, %v1621
        %v1634 = vsub.f32 %v1612, %v1624
        %v1635 = vsub.f32 %v1613, %v1627
        %v1636 = vsub.f32 %v1614, %v1631
        %v1637 = vmul.f32 %v1632, 1.442695
        %v1638 = vpow.pop %v1637
        %v1639 = vmul.f32 %v1633, 1.442695
        %v1640 = vpow.pop %v1639
        %v1641 = vmul.f32 %v1634, 1.442695
        %v1642 = vpow.pop %v1641
        %v1643 = vmul.f32 %v1635, 1.442695
        %v1644 = vpow.pop %v1643
        %v1645 = vmul.f32 %v1636, 1.442695
        %v1646 = vpow.pop %v1645
        %v1647 = vsel %vm1615, %v1638, 0.0
        %1648 = vadd.xlane.f32.xlu0 %v1647
        %v1649 = vpop.xlane.xlu0 %1648
        %v1650 = vsel %vm1615, %v1640, 0.0
        %1651 = vadd.xlane.f32.xlu0 %v1650
        %v1652 = vpop.xlane.xlu0 %1651
        %v1653 = vsel %vm1615, %v1642, 0.0
        %1654 = vadd.xlane.f32.xlu0 %v1653
        %v1655 = vpop.xlane.xlu0 %1654
        %v1656 = vsel %vm1615, %v1644, 0.0
        %1657 = vadd.xlane.f32.xlu0 %v1656
        %v1658 = vpop.xlane.xlu0 %1657
        %v1659 = vsel %vm1628, %v1646, 0.0
        %1660 = vadd.xlane.f32.xlu0 %v1659
        %v1661 = vpop.xlane.xlu0 %1660
        %v1662 = vrcp.pop %v1649
        %v1663 = vrcp.pop %v1652
        %v1664 = vrcp.pop %v1655
        %v1665 = vrcp.pop %v1658
        %v1666 = vrcp.pop %v1661
        %v1667 = vmul.f32 %v1638, %v1662
        %v1668 = vmul.f32 %v1640, %v1663
        %v1669 = vmul.f32 %v1642, %v1664
        %v1670 = vmul.f32 %v1644, %v1665
        %v1671 = vmul.f32 %v1646, %v1666
        %v1672 = vpack.c.bf16 %v1668, %v1667
        %v1673 = vpack.c.bf16 %v1670, %v1669
        %v1674 = vpack.c.bf16 %v1671, %v1671
        %v1676 = vsel %vm1615, %v1672, 0
        %v1679 = vsel %vm1615, %v1673, 0
        %v1682 = vsel %vm1615, %v1674, 0
        %vm1684 = vcmask 1041408
        %v1686 = vsel %vm1684, %v1534, 0
        %1688 = vmatprep.subr.bf16.mxu0 0
        %1689 = vmatpush1.bf16.msra.mxu0 %v1532
        %1690 = vmatprep.subr.bf16.mxu0 0
        %1691 = vmatpush1.bf16.msra.mxu0 %v1533
        %1692 = vmatprep.subr.bf16.mxu0 0
        %1693 = vmatpush1.bf16.msra.mxu0 %v1686
        %1694 = vmatprep.subr.bf16.mxu0 0
        %1695 = vmatpush1.bf16.msra.mxu0 0
        %1696 = vmatprep.subr.bf16.mxu0 0
        %1697 = vmatpush1.bf16.msra.mxu0 0
        %1698 = vmatprep.subr.bf16.mxu0 0
        %1699 = vmatpush1.bf16.msra.mxu0 0
        %1700 = vmatprep.subr.bf16.mxu0 0
        %1701 = vmatpush1.bf16.msra.mxu0 0
        %1702 = vmatprep.subr.bf16.mxu0 0
        %1703 = vmatpush1.bf16.msra.mxu0 0
        %1704 = vmatprep.subr.bf16.mxu0 0
        %1705 = vmatpush1.bf16.msra.mxu0 0
        %1706 = vmatprep.subr.bf16.mxu0 0
        %1707 = vmatpush1.bf16.msra.mxu0 0
        %1708 = vmatprep.subr.bf16.mxu0 0
        %1709 = vmatpush1.bf16.msra.mxu0 0
        %1710 = vmatprep.subr.bf16.mxu0 0
        %1711 = vmatpush1.bf16.msra.mxu0 0
        %1712 = vmatprep.subr.bf16.mxu0 0
        %1713 = vmatpush1.bf16.msra.mxu0 0
        %1714 = vmatprep.subr.bf16.mxu0 0
        %1715 = vmatpush1.bf16.msra.mxu0 0
        %1716 = vmatprep.subr.bf16.mxu0 0
        %1717 = vmatpush1.bf16.msra.mxu0 0
        %1718 = vmatprep.subr.bf16.mxu0 0
        %1719 = vmatpush1.bf16.msra.mxu0 0
        %1720 = vmatprep.mubr.bf16.mxu0 0
        %1721 = vmatmul.mubr.bf16.gmra.mrb[0].mxu0 %v1676
        %v1722 = vpop.f32.mrb[0].mxu0
        %v1723 = vadd.f32 0.0, %v1722
        %v1724 = vpop.f32.mrb[0].mxu0
        %v1725 = vpop.f32.mrb[0].mxu0
        %v1726 = vadd.f32 0.0, %v1725
        %v1727 = vpop.f32.mrb[0].mxu0
        %1728 = vmatprep.mubr.bf16.mxu0 0
        %1729 = vmatmul.mubr.bf16.gmra.mrb[0].mxu0 %v1679
        %v1730 = vpop.f32.mrb[0].mxu0
        %v1731 = vadd.f32 0.0, %v1730
        %v1732 = vpop.f32.mrb[0].mxu0
        %v1733 = vpop.f32.mrb[0].mxu0
        %v1734 = vadd.f32 0.0, %v1733
        %v1735 = vpop.f32.mrb[0].mxu0
        %1736 = vmatprep.mubr.bf16.mxu0 0
        %1737 = vmatmul.mubr.bf16.gmra.mrb[0].mxu0 %v1682
        %v1738 = vpop.f32.mrb[0].mxu0
        %v1739 = vadd.f32 0.0, %v1738
        %v1740 = vpop.f32.mrb[0].mxu0
        %v1741 = vpop.f32.mrb[0].mxu0
        %v1742 = vpop.f32.mrb[0].mxu0
        %1743 = vdwg.mxu0
        %1747 = vrot.lane.b32.xlu0 %v1526, 96
        %v1748 = vpop.permute.xlu0 %1747
        %1749 = vrot.lane.b32.xlu0 %v1527, 96
        %v1750 = vpop.permute.xlu0 %1749
        %1751 = vrot.lane.b32.xlu0 %v1528, 96
        %v1752 = vpop.permute.xlu0 %1751
        %1756 = vrot.lane.b32.xlu0 %v1529, 96
        %v1757 = vpop.permute.xlu0 %1756
        %1758 = vrot.lane.b32.xlu0 %v1530, 96
        %v1759 = vpop.permute.xlu0 %1758
        %1760 = vrot.lane.b32.xlu0 %v1531, 96
        %v1761 = vpop.permute.xlu0 %1760
        %v1763 = vsel %vm1535, %v1748, 0
        %v1766 = vsel %vm1535, %v1750, 0
        %v1769 = vsel %vm1535, %v1752, 0
        %v1772 = vsel %vm1535, %v1757, 0
        %v1775 = vsel %vm1535, %v1759, 0
        %v1778 = vsel %vm1535, %v1761, 0
        %1780 = vmatprep.subr.bf16.mxu0 0
        %1781 = vmatpush1.bf16.xpose.msra.mxu0 %v1772
        %1782 = vmatprep.subr.bf16.mxu0 0
        %1783 = vmatpush1.bf16.xpose.msra.mxu0 %v1775
        %1784 = vmatprep.subr.bf16.mxu0 0
        %1785 = vmatpush1.bf16.xpose.msra.mxu0 %v1778
        %1786 = vmatprep.subr.bf16.mxu0 0
        %1787 = vmatpush1.bf16.xpose.msra.mxu0 0
        %1788 = vmatprep.subr.bf16.mxu0 0
        %1789 = vmatpush1.bf16.xpose.msra.mxu0 0
        %1790 = vmatprep.subr.bf16.mxu0 0
        %1791 = vmatpush1.bf16.xpose.msra.mxu0 0
        %1792 = vmatprep.subr.bf16.mxu0 0
        %1793 = vmatpush1.bf16.xpose.msra.mxu0 0
        %1794 = vmatprep.subr.bf16.mxu0 0
        %1795 = vmatpush1.bf16.xpose.msra.mxu0 0
        %1796 = vmatprep.subr.bf16.mxu0 0
        %1797 = vmatpush1.bf16.xpose.msra.mxu0 0
        %1798 = vmatprep.subr.bf16.mxu0 0
        %1799 = vmatpush1.bf16.xpose.msra.mxu0 0
        %1800 = vmatprep.subr.bf16.mxu0 0
        %1801 = vmatpush1.bf16.xpose.msra.mxu0 0
        %1802 = vmatprep.subr.bf16.mxu0 0
        %1803 = vmatpush1.bf16.xpose.msra.mxu0 0
        %1804 = vmatprep.subr.bf16.mxu0 0
        %1805 = vmatpush1.bf16.xpose.msra.mxu0 0
        %1806 = vmatprep.subr.bf16.mxu0 0
        %1807 = vmatpush1.bf16.xpose.msra.mxu0 0
        %1808 = vmatprep.subr.bf16.mxu0 0
        %1809 = vmatpush1.bf16.xpose.msra.mxu0 0
        %1810 = vmatprep.subr.bf16.mxu0 0
        %1811 = vmatpush1.bf16.xpose.msra.mxu0 0
        %1812 = vmatprep.mubr.bf16.mxu0 0
        %1813 = vmatmul.mubr.bf16.gmra.mrb[0].mxu0 %v1763
        %v1814 = vpop.f32.mrb[0].mxu0
        %v1815 = vadd.f32 0.0, %v1814
        %v1816 = vpop.f32.mrb[0].mxu0
        %v1817 = vpop.f32.mrb[0].mxu0
        %v1818 = vadd.f32 0.0, %v1817
        %v1819 = vpop.f32.mrb[0].mxu0
        %1820 = vmatprep.mubr.bf16.mxu0 0
        %1821 = vmatmul.mubr.bf16.gmra.mrb[0].mxu0 %v1766
        %v1822 = vpop.f32.mrb[0].mxu0
        %v1823 = vadd.f32 0.0, %v1822
        %v1824 = vpop.f32.mrb[0].mxu0
        %v1825 = vpop.f32.mrb[0].mxu0
        %v1826 = vadd.f32 0.0, %v1825
        %v1827 = vpop.f32.mrb[0].mxu0
        %1828 = vmatprep.mubr.bf16.mxu0 0
        %1829 = vmatmul.mubr.bf16.gmra.mrb[0].mxu0 %v1769
        %v1830 = vpop.f32.mrb[0].mxu0
        %v1831 = vadd.f32 0.0, %v1830
        %v1832 = vpop.f32.mrb[0].mxu0
        %v1833 = vpop.f32.mrb[0].mxu0
        %v1834 = vpop.f32.mrb[0].mxu0
        %1835 = vdwg.mxu0
        %v1836 = vmul.f32 %v1815, 0.17677669
        %v1837 = vmul.f32 %v1818, 0.17677669
        %v1838 = vmul.f32 %v1823, 0.17677669
        %v1839 = vmul.f32 %v1826, 0.17677669
        %v1840 = vmul.f32 %v1831, 0.17677669
        %v1841 = vsel %vm1615, %v1836, -inf
        %1842 = vmax.xlane.f32.xlu0 %v1841
        %v1843 = vpop.xlane.xlu0 %1842
        %v1844 = vsel %vm1615, %v1837, -inf
        %1845 = vmax.xlane.f32.xlu0 %v1844
        %v1846 = vpop.xlane.xlu0 %1845
        %v1847 = vsel %vm1615, %v1838, -inf
        %1848 = vmax.xlane.f32.xlu0 %v1847
        %v1849 = vpop.xlane.xlu0 %1848
        %v1850 = vsel %vm1615, %v1839, -inf
        %1851 = vmax.xlane.f32.xlu0 %v1850
        %v1852 = vpop.xlane.xlu0 %1851
        %v1853 = vsel %vm1628, %v1840, -inf
        %1854 = vmax.xlane.f32.xlu0 %v1853
        %v1855 = vpop.xlane.xlu0 %1854
        %v1856 = vsub.f32 %v1836, %v1843
        %v1857 = vsub.f32 %v1837, %v1846
        %v1858 = vsub.f32 %v1838, %v1849
        %v1859 = vsub.f32 %v1839, %v1852
        %v1860 = vsub.f32 %v1840, %v1855
        %v1861 = vmul.f32 %v1856, 1.442695
        %v1862 = vpow.pop %v1861
        %v1863 = vmul.f32 %v1857, 1.442695
        %v1864 = vpow.pop %v1863
        %v1865 = vmul.f32 %v1858, 1.442695
        %v1866 = vpow.pop %v1865
        %v1867 = vmul.f32 %v1859, 1.442695
        %v1868 = vpow.pop %v1867
        %v1869 = vmul.f32 %v1860, 1.442695
        %v1870 = vpow.pop %v1869
        %v1871 = vsel %vm1615, %v1862, 0.0
        %1872 = vadd.xlane.f32.xlu0 %v1871
        %v1873 = vpop.xlane.xlu0 %1872
        %v1874 = vsel %vm1615, %v1864, 0.0
        %1875 = vadd.xlane.f32.xlu0 %v1874
        %v1876 = vpop.xlane.xlu0 %1875
        %v1877 = vsel %vm1615, %v1866, 0.0
        %1878 = vadd.xlane.f32.xlu0 %v1877
        %v1879 = vpop.xlane.xlu0 %1878
        %v1880 = vsel %vm1615, %v1868, 0.0
        %1881 = vadd.xlane.f32.xlu0 %v1880
        %v1882 = vpop.xlane.xlu0 %1881
        %v1883 = vsel %vm1628, %v1870, 0.0
        %1884 = vadd.xlane.f32.xlu0 %v1883
        %v1885 = vpop.xlane.xlu0 %1884
        %v1886 = vrcp.pop %v1873
        %v1887 = vrcp.pop %v1876
        %v1888 = vrcp.pop %v1879
        %v1889 = vrcp.pop %v1882
        %v1890 = vrcp.pop %v1885
        %v1891 = vmul.f32 %v1862, %v1886
        %v1892 = vmul.f32 %v1864, %v1887
        %v1893 = vmul.f32 %v1866, %v1888
        %v1894 = vmul.f32 %v1868, %v1889
        %v1895 = vmul.f32 %v1870, %v1890
        %v1896 = vpack.c.bf16 %v1892, %v1891
        %v1897 = vpack.c.bf16 %v1894, %v1893
        %v1898 = vpack.c.bf16 %v1895, %v1895
        %1902 = vrot.lane.b32.xlu0 %v1532, 96
        %v1903 = vpop.permute.xlu0 %1902
        %1904 = vrot.lane.b32.xlu0 %v1533, 96
        %v1905 = vpop.permute.xlu0 %1904
        %1906 = vrot.lane.b32.xlu0 %v1534, 96
        %v1907 = vpop.permute.xlu0 %1906
        %v1911 = vsel %vm1615, %v1896, 0
        %v1914 = vsel %vm1615, %v1897, 0
        %v1917 = vsel %vm1615, %v1898, 0
        %v1920 = vsel %vm1684, %v1907, 0
        %1922 = vmatprep.subr.bf16.mxu0 0
        %1923 = vmatpush1.bf16.msra.mxu0 %v1903
        %1924 = vmatprep.subr.bf16.mxu0 0
        %1925 = vmatpush1.bf16.msra.mxu0 %v1905
        %1926 = vmatprep.subr.bf16.mxu0 0
        %1927 = vmatpush1.bf16.msra.mxu0 %v1920
        %1928 = vmatprep.subr.bf16.mxu0 0
        %1929 = vmatpush1.bf16.msra.mxu0 0
        %1930 = vmatprep.subr.bf16.mxu0 0
        %1931 = vmatpush1.bf16.msra.mxu0 0
        %1932 = vmatprep.subr.bf16.mxu0 0
        %1933 = vmatpush1.bf16.msra.mxu0 0
        %1934 = vmatprep.subr.bf16.mxu0 0
        %1935 = vmatpush1.bf16.msra.mxu0 0
        %1936 = vmatprep.subr.bf16.mxu0 0
        %1937 = vmatpush1.bf16.msra.mxu0 0
        %1938 = vmatprep.subr.bf16.mxu0 0
        %1939 = vmatpush1.bf16.msra.mxu0 0
        %1940 = vmatprep.subr.bf16.mxu0 0
        %1941 = vmatpush1.bf16.msra.mxu0 0
        %1942 = vmatprep.subr.bf16.mxu0 0
        %1943 = vmatpush1.bf16.msra.mxu0 0
        %1944 = vmatprep.subr.bf16.mxu0 0
        %1945 = vmatpush1.bf16.msra.mxu0 0
        %1946 = vmatprep.subr.bf16.mxu0 0
        %1947 = vmatpush1.bf16.msra.mxu0 0
        %1948 = vmatprep.subr.bf16.mxu0 0
        %1949 = vmatpush1.bf16.msra.mxu0 0
        %1950 = vmatprep.subr.bf16.mxu0 0
        %1951 = vmatpush1.bf16.msra.mxu0 0
        %1952 = vmatprep.subr.bf16.mxu0 0
        %1953 = vmatpush1.bf16.msra.mxu0 0
        %1954 = vmatprep.mubr.bf16.mxu0 0
        %1955 = vmatmul.mubr.bf16.gmra.mrb[0].mxu0 %v1911
        %v1956 = vpop.f32.mrb[0].mxu0
        %v1957 = vadd.f32 0.0, %v1956
        %v1958 = vpop.f32.mrb[0].mxu0
        %v1959 = vpop.f32.mrb[0].mxu0
        %v1960 = vadd.f32 0.0, %v1959
        %v1961 = vpop.f32.mrb[0].mxu0
        %1962 = vmatprep.mubr.bf16.mxu0 0
        %1963 = vmatmul.mubr.bf16.gmra.mrb[0].mxu0 %v1914
        %v1964 = vpop.f32.mrb[0].mxu0
        %v1965 = vadd.f32 0.0, %v1964
        %v1966 = vpop.f32.mrb[0].mxu0
        %v1967 = vpop.f32.mrb[0].mxu0
        %v1968 = vadd.f32 0.0, %v1967
        %v1969 = vpop.f32.mrb[0].mxu0
        %1970 = vmatprep.mubr.bf16.mxu0 0
        %1971 = vmatmul.mubr.bf16.gmra.mrb[0].mxu0 %v1917
        %v1972 = vpop.f32.mrb[0].mxu0
        %v1973 = vadd.f32 0.0, %v1972
        %v1974 = vpop.f32.mrb[0].mxu0
        %v1975 = vpop.f32.mrb[0].mxu0
        %v1976 = vpop.f32.mrb[0].mxu0
        %1977 = vdwg.mxu0
        %1978 = vrot.lane.b32.xlu0 %v1526, 64
        %v1979 = vpop.permute.xlu0 %1978
        %1980 = vrot.lane.b32.xlu0 %v1527, 64
        %v1981 = vpop.permute.xlu0 %1980
        %1982 = vrot.lane.b32.xlu0 %v1528, 64
        %v1983 = vpop.permute.xlu0 %1982
        %1984 = vrot.lane.b32.xlu0 %v1529, 64
        %v1985 = vpop.permute.xlu0 %1984
        %1986 = vrot.lane.b32.xlu0 %v1530, 64
        %v1987 = vpop.permute.xlu0 %1986
        %1988 = vrot.lane.b32.xlu0 %v1531, 64
        %v1989 = vpop.permute.xlu0 %1988
        %v1991 = vsel %vm1535, %v1979, 0
        %v1994 = vsel %vm1535, %v1981, 0
        %v1997 = vsel %vm1535, %v1983, 0
        %v2000 = vsel %vm1535, %v1985, 0
        %v2003 = vsel %vm1535, %v1987, 0
        %v2006 = vsel %vm1535, %v1989, 0
        %2008 = vmatprep.subr.bf16.mxu0 0
        %2009 = vmatpush1.bf16.xpose.msra.mxu0 %v2000
        %2010 = vmatprep.subr.bf16.mxu0 0
        %2011 = vmatpush1.bf16.xpose.msra.mxu0 %v2003
        %2012 = vmatprep.subr.bf16.mxu0 0
        %2013 = vmatpush1.bf16.xpose.msra.mxu0 %v2006
        %2014 = vmatprep.subr.bf16.mxu0 0
        %2015 = vmatpush1.bf16.xpose.msra.mxu0 0
        %2016 = vmatprep.subr.bf16.mxu0 0
        %2017 = vmatpush1.bf16.xpose.msra.mxu0 0
        %2018 = vmatprep.subr.bf16.mxu0 0
        %2019 = vmatpush1.bf16.xpose.msra.mxu0 0
        %2020 = vmatprep.subr.bf16.mxu0 0
        %2021 = vmatpush1.bf16.xpose.msra.mxu0 0
        %2022 = vmatprep.subr.bf16.mxu0 0
        %2023 = vmatpush1.bf16.xpose.msra.mxu0 0
        %2024 = vmatprep.subr.bf16.mxu0 0
        %2025 = vmatpush1.bf16.xpose.msra.mxu0 0
        %2026 = vmatprep.subr.bf16.mxu0 0
        %2027 = vmatpush1.bf16.xpose.msra.mxu0 0
        %2028 = vmatprep.subr.bf16.mxu0 0
        %2029 = vmatpush1.bf16.xpose.msra.mxu0 0
        %2030 = vmatprep.subr.bf16.mxu0 0
        %2031 = vmatpush1.bf16.xpose.msra.mxu0 0
        %2032 = vmatprep.subr.bf16.mxu0 0
        %2033 = vmatpush1.bf16.xpose.msra.mxu0 0
        %2034 = vmatprep.subr.bf16.mxu0 0
        %2035 = vmatpush1.bf16.xpose.msra.mxu0 0
        %2036 = vmatprep.subr.bf16.mxu0 0
        %2037 = vmatpush1.bf16.xpose.msra.mxu0 0
        %2038 = vmatprep.subr.bf16.mxu0 0
        %2039 = vmatpush1.bf16.xpose.msra.mxu0 0
        %2040 = vmatprep.mubr.bf16.mxu0 0
        %2041 = vmatmul.mubr.bf16.gmra.mrb[0].mxu0 %v1991
        %v2042 = vpop.f32.mrb[0].mxu0
        %v2043 = vadd.f32 0.0, %v2042
        %v2044 = vpop.f32.mrb[0].mxu0
        %v2045 = vpop.f32.mrb[0].mxu0
        %v2046 = vadd.f32 0.0, %v2045
        %v2047 = vpop.f32.mrb[0].mxu0
        %2048 = vmatprep.mubr.bf16.mxu0 0
        %2049 = vmatmul.mubr.bf16.gmra.mrb[0].mxu0 %v1994
        %v2050 = vpop.f32.mrb[0].mxu0
        %v2051 = vadd.f32 0.0, %v2050
        %v2052 = vpop.f32.mrb[0].mxu0
        %v2053 = vpop.f32.mrb[0].mxu0
        %v2054 = vadd.f32 0.0, %v2053
        %v2055 = vpop.f32.mrb[0].mxu0
        %2056 = vmatprep.mubr.bf16.mxu0 0
        %2057 = vmatmul.mubr.bf16.gmra.mrb[0].mxu0 %v1997
        %v2058 = vpop.f32.mrb[0].mxu0
        %v2059 = vadd.f32 0.0, %v2058
        %v2060 = vpop.f32.mrb[0].mxu0
        %v2061 = vpop.f32.mrb[0].mxu0
        %v2062 = vpop.f32.mrb[0].mxu0
        %2063 = vdwg.mxu0
        %v2064 = vmul.f32 %v2043, 0.17677669
        %v2065 = vmul.f32 %v2046, 0.17677669
        %v2066 = vmul.f32 %v2051, 0.17677669
        %v2067 = vmul.f32 %v2054, 0.17677669
        %v2068 = vmul.f32 %v2059, 0.17677669
        %v2069 = vsel %vm1615, %v2064, -inf
        %2070 = vmax.xlane.f32.xlu0 %v2069
        %v2071 = vpop.xlane.xlu0 %2070
        %v2072 = vsel %vm1615, %v2065, -inf
        %2073 = vmax.xlane.f32.xlu0 %v2072
        %v2074 = vpop.xlane.xlu0 %2073
        %v2075 = vsel %vm1615, %v2066, -inf
        %2076 = vmax.xlane.f32.xlu0 %v2075
        %v2077 = vpop.xlane.xlu0 %2076
        %v2078 = vsel %vm1615, %v2067, -inf
        %2079 = vmax.xlane.f32.xlu0 %v2078
        %v2080 = vpop.xlane.xlu0 %2079
        %v2081 = vsel %vm1628, %v2068, -inf
        %2082 = vmax.xlane.f32.xlu0 %v2081
        %v2083 = vpop.xlane.xlu0 %2082
        %v2084 = vsub.f32 %v2064, %v2071
        %v2085 = vsub.f32 %v2065, %v2074
        %v2086 = vsub.f32 %v2066, %v2077
        %v2087 = vsub.f32 %v2067, %v2080
        %v2088 = vsub.f32 %v2068, %v2083
        %v2089 = vmul.f32 %v2084, 1.442695
        %v2090 = vpow.pop %v2089
        %v2091 = vmul.f32 %v2085, 1.442695
        %v2092 = vpow.pop %v2091
        %v2093 = vmul.f32 %v2086, 1.442695
        %v2094 = vpow.pop %v2093
        %v2095 = vmul.f32 %v2087, 1.442695
        %v2096 = vpow.pop %v2095
        %v2097 = vmul.f32 %v2088, 1.442695
        %v2098 = vpow.pop %v2097
        %v2099 = vsel %vm1615, %v2090, 0.0
        %2100 = vadd.xlane.f32.xlu0 %v2099
        %v2101 = vpop.xlane.xlu0 %2100
        %v2102 = vsel %vm1615, %v2092, 0.0
        %2103 = vadd.xlane.f32.xlu0 %v2102
        %v2104 = vpop.xlane.xlu0 %2103
        %v2105 = vsel %vm1615, %v2094, 0.0
        %2106 = vadd.xlane.f32.xlu0 %v2105
        %v2107 = vpop.xlane.xlu0 %2106
        %v2108 = vsel %vm1615, %v2096, 0.0
        %2109 = vadd.xlane.f32.xlu0 %v2108
        %v2110 = vpop.xlane.xlu0 %2109
        %v2111 = vsel %vm1628, %v2098, 0.0
        %2112 = vadd.xlane.f32.xlu0 %v2111
        %v2113 = vpop.xlane.xlu0 %2112
        %v2114 = vrcp.pop %v2101
        %v2115 = vrcp.pop %v2104
        %v2116 = vrcp.pop %v2107
        %v2117 = vrcp.pop %v2110
        %v2118 = vrcp.pop %v2113
        %v2119 = vmul.f32 %v2090, %v2114
        %v2120 = vmul.f32 %v2092, %v2115
        %v2121 = vmul.f32 %v2094, %v2116
        %v2122 = vmul.f32 %v2096, %v2117
        %v2123 = vmul.f32 %v2098, %v2118
        %v2124 = vpack.c.bf16 %v2120, %v2119
        %v2125 = vpack.c.bf16 %v2122, %v2121
        %v2126 = vpack.c.bf16 %v2123, %v2123
        %2127 = vrot.lane.b32.xlu0 %v1532, 64
        %v2128 = vpop.permute.xlu0 %2127
        %2129 = vrot.lane.b32.xlu0 %v1533, 64
        %v2130 = vpop.permute.xlu0 %2129
        %2131 = vrot.lane.b32.xlu0 %v1534, 64
        %v2132 = vpop.permute.xlu0 %2131
        %v2136 = vsel %vm1615, %v2124, 0
        %v2139 = vsel %vm1615, %v2125, 0
        %v2142 = vsel %vm1615, %v2126, 0
        %v2145 = vsel %vm1684, %v2132, 0
        %2147 = vmatprep.subr.bf16.mxu0 0
        %2148 = vmatpush1.bf16.msra.mxu0 %v2128
        %2149 = vmatprep.subr.bf16.mxu0 0
        %2150 = vmatpush1.bf16.msra.mxu0 %v2130
        %2151 = vmatprep.subr.bf16.mxu0 0
        %2152 = vmatpush1.bf16.msra.mxu0 %v2145
        %2153 = vmatprep.subr.bf16.mxu0 0
        %2154 = vmatpush1.bf16.msra.mxu0 0
        %2155 = vmatprep.subr.bf16.mxu0 0
        %2156 = vmatpush1.bf16.msra.mxu0 0
        %2157 = vmatprep.subr.bf16.mxu0 0
        %2158 = vmatpush1.bf16.msra.mxu0 0
        %2159 = vmatprep.subr.bf16.mxu0 0
        %2160 = vmatpush1.bf16.msra.mxu0 0
        %2161 = vmatprep.subr.bf16.mxu0 0
        %2162 = vmatpush1.bf16.msra.mxu0 0
        %2163 = vmatprep.subr.bf16.mxu0 0
        %2164 = vmatpush1.bf16.msra.mxu0 0
        %2165 = vmatprep.subr.bf16.mxu0 0
        %2166 = vmatpush1.bf16.msra.mxu0 0
        %2167 = vmatprep.subr.bf16.mxu0 0
        %2168 = vmatpush1.bf16.msra.mxu0 0
        %2169 = vmatprep.subr.bf16.mxu0 0
        %2170 = vmatpush1.bf16.msra.mxu0 0
        %2171 = vmatprep.subr.bf16.mxu0 0
        %2172 = vmatpush1.bf16.msra.mxu0 0
        %2173 = vmatprep.subr.bf16.mxu0 0
        %2174 = vmatpush1.bf16.msra.mxu0 0
        %2175 = vmatprep.subr.bf16.mxu0 0
        %2176 = vmatpush1.bf16.msra.mxu0 0
        %2177 = vmatprep.subr.bf16.mxu0 0
        %2178 = vmatpush1.bf16.msra.mxu0 0
        %2179 = vmatprep.mubr.bf16.mxu0 0
        %2180 = vmatmul.mubr.bf16.gmra.mrb[0].mxu0 %v2136
        %v2181 = vpop.f32.mrb[0].mxu0
        %v2182 = vadd.f32 0.0, %v2181
        %v2183 = vpop.f32.mrb[0].mxu0
        %v2184 = vpop.f32.mrb[0].mxu0
        %v2185 = vadd.f32 0.0, %v2184
        %v2186 = vpop.f32.mrb[0].mxu0
        %2187 = vmatprep.mubr.bf16.mxu0 0
        %2188 = vmatmul.mubr.bf16.gmra.mrb[0].mxu0 %v2139
        %v2189 = vpop.f32.mrb[0].mxu0
        %v2190 = vadd.f32 0.0, %v2189
        %v2191 = vpop.f32.mrb[0].mxu0
        %v2192 = vpop.f32.mrb[0].mxu0
        %v2193 = vadd.f32 0.0, %v2192
        %v2194 = vpop.f32.mrb[0].mxu0
        %2195 = vmatprep.mubr.bf16.mxu0 0
        %2196 = vmatmul.mubr.bf16.gmra.mrb[0].mxu0 %v2142
        %v2197 = vpop.f32.mrb[0].mxu0
        %v2198 = vadd.f32 0.0, %v2197
        %v2199 = vpop.f32.mrb[0].mxu0
        %v2200 = vpop.f32.mrb[0].mxu0
        %v2201 = vpop.f32.mrb[0].mxu0
        %2202 = vdwg.mxu0
        %2203 = vrot.lane.b32.xlu0 %v1526, 32
        %v2204 = vpop.permute.xlu0 %2203
        %2205 = vrot.lane.b32.xlu0 %v1527, 32
        %v2206 = vpop.permute.xlu0 %2205
        %2207 = vrot.lane.b32.xlu0 %v1528, 32
        %v2208 = vpop.permute.xlu0 %2207
        %2209 = vrot.lane.b32.xlu0 %v1529, 32
        %v2210 = vpop.permute.xlu0 %2209
        %2211 = vrot.lane.b32.xlu0 %v1530, 32
        %v2212 = vpop.permute.xlu0 %2211
        %2213 = vrot.lane.b32.xlu0 %v1531, 32
        %v2214 = vpop.permute.xlu0 %2213
        %v2216 = vsel %vm1535, %v2204, 0
        %v2219 = vsel %vm1535, %v2206, 0
        %v2222 = vsel %vm1535, %v2208, 0
        %v2225 = vsel %vm1535, %v2210, 0
        %v2228 = vsel %vm1535, %v2212, 0
        %v2231 = vsel %vm1535, %v2214, 0
        %2233 = vmatprep.subr.bf16.mxu0 0
        %2234 = vmatpush1.bf16.xpose.msra.mxu0 %v2225
        %2235 = vmatprep.subr.bf16.mxu0 0
        %2236 = vmatpush1.bf16.xpose.msra.mxu0 %v2228
        %2237 = vmatprep.subr.bf16.mxu0 0
        %2238 = vmatpush1.bf16.xpose.msra.mxu0 %v2231
        %2239 = vmatprep.subr.bf16.mxu0 0
        %2240 = vmatpush1.bf16.xpose.msra.mxu0 0
        %2241 = vmatprep.subr.bf16.mxu0 0
        %2242 = vmatpush1.bf16.xpose.msra.mxu0 0
        %2243 = vmatprep.subr.bf16.mxu0 0
        %2244 = vmatpush1.bf16.xpose.msra.mxu0 0
        %2245 = vmatprep.subr.bf16.mxu0 0
        %2246 = vmatpush1.bf16.xpose.msra.mxu0 0
        %2247 = vmatprep.subr.bf16.mxu0 0
        %2248 = vmatpush1.bf16.xpose.msra.mxu0 0
        %2249 = vmatprep.subr.bf16.mxu0 0
        %2250 = vmatpush1.bf16.xpose.msra.mxu0 0
        %2251 = vmatprep.subr.bf16.mxu0 0
        %2252 = vmatpush1.bf16.xpose.msra.mxu0 0
        %2253 = vmatprep.subr.bf16.mxu0 0
        %2254 = vmatpush1.bf16.xpose.msra.mxu0 0
        %2255 = vmatprep.subr.bf16.mxu0 0
        %2256 = vmatpush1.bf16.xpose.msra.mxu0 0
        %2257 = vmatprep.subr.bf16.mxu0 0
        %2258 = vmatpush1.bf16.xpose.msra.mxu0 0
        %2259 = vmatprep.subr.bf16.mxu0 0
        %2260 = vmatpush1.bf16.xpose.msra.mxu0 0
        %2261 = vmatprep.subr.bf16.mxu0 0
        %2262 = vmatpush1.bf16.xpose.msra.mxu0 0
        %2263 = vmatprep.subr.bf16.mxu0 0
        %2264 = vmatpush1.bf16.xpose.msra.mxu0 0
        %2265 = vmatprep.mubr.bf16.mxu0 0
        %2266 = vmatmul.mubr.bf16.gmra.mrb[0].mxu0 %v2216
        %v2267 = vpop.f32.mrb[0].mxu0
        %v2268 = vadd.f32 0.0, %v2267
        %v2269 = vpop.f32.mrb[0].mxu0
        %v2270 = vpop.f32.mrb[0].mxu0
        %v2271 = vadd.f32 0.0, %v2270
        %v2272 = vpop.f32.mrb[0].mxu0
        %2273 = vmatprep.mubr.bf16.mxu0 0
        %2274 = vmatmul.mubr.bf16.gmra.mrb[0].mxu0 %v2219
        %v2275 = vpop.f32.mrb[0].mxu0
        %v2276 = vadd.f32 0.0, %v2275
        %v2277 = vpop.f32.mrb[0].mxu0
        %v2278 = vpop.f32.mrb[0].mxu0
        %v2279 = vadd.f32 0.0, %v2278
        %v2280 = vpop.f32.mrb[0].mxu0
        %2281 = vmatprep.mubr.bf16.mxu0 0
        %2282 = vmatmul.mubr.bf16.gmra.mrb[0].mxu0 %v2222
        %v2283 = vpop.f32.mrb[0].mxu0
        %v2284 = vadd.f32 0.0, %v2283
        %v2285 = vpop.f32.mrb[0].mxu0
        %v2286 = vpop.f32.mrb[0].mxu0
        %v2287 = vpop.f32.mrb[0].mxu0
        %2288 = vdwg.mxu0
        %v2289 = vmul.f32 %v2268, 0.17677669
        %v2290 = vmul.f32 %v2271, 0.17677669
        %v2291 = vmul.f32 %v2276, 0.17677669
        %v2292 = vmul.f32 %v2279, 0.17677669
        %v2293 = vmul.f32 %v2284, 0.17677669
        %v2294 = vsel %vm1615, %v2289, -inf
        %2295 = vmax.xlane.f32.xlu0 %v2294
        %v2296 = vpop.xlane.xlu0 %2295
        %v2297 = vsel %vm1615, %v2290, -inf
        %2298 = vmax.xlane.f32.xlu0 %v2297
        %v2299 = vpop.xlane.xlu0 %2298
        %v2300 = vsel %vm1615, %v2291, -inf
        %2301 = vmax.xlane.f32.xlu0 %v2300
        %v2302 = vpop.xlane.xlu0 %2301
        %v2303 = vsel %vm1615, %v2292, -inf
        %2304 = vmax.xlane.f32.xlu0 %v2303
        %v2305 = vpop.xlane.xlu0 %2304
        %v2306 = vsel %vm1628, %v2293, -inf
        %2307 = vmax.xlane.f32.xlu0 %v2306
        %v2308 = vpop.xlane.xlu0 %2307
        %v2309 = vsub.f32 %v2289, %v2296
        %v2310 = vsub.f32 %v2290, %v2299
        %v2311 = vsub.f32 %v2291, %v2302
        %v2312 = vsub.f32 %v2292, %v2305
        %v2313 = vsub.f32 %v2293, %v2308
        %v2314 = vmul.f32 %v2309, 1.442695
        %v2315 = vpow.pop %v2314
        %v2316 = vmul.f32 %v2310, 1.442695
        %v2317 = vpow.pop %v2316
        %v2318 = vmul.f32 %v2311, 1.442695
        %v2319 = vpow.pop %v2318
        %v2320 = vmul.f32 %v2312, 1.442695
        %v2321 = vpow.pop %v2320
        %v2322 = vmul.f32 %v2313, 1.442695
        %v2323 = vpow.pop %v2322
        %v2324 = vsel %vm1615, %v2315, 0.0
        %2325 = vadd.xlane.f32.xlu0 %v2324
        %v2326 = vpop.xlane.xlu0 %2325
        %v2327 = vsel %vm1615, %v2317, 0.0
        %2328 = vadd.xlane.f32.xlu0 %v2327
        %v2329 = vpop.xlane.xlu0 %2328
        %v2330 = vsel %vm1615, %v2319, 0.0
        %2331 = vadd.xlane.f32.xlu0 %v2330
        %v2332 = vpop.xlane.xlu0 %2331
        %v2333 = vsel %vm1615, %v2321, 0.0
        %2334 = vadd.xlane.f32.xlu0 %v2333
        %v2335 = vpop.xlane.xlu0 %2334
        %v2336 = vsel %vm1628, %v2323, 0.0
        %2337 = vadd.xlane.f32.xlu0 %v2336
        %v2338 = vpop.xlane.xlu0 %2337
        %v2339 = vrcp.pop %v2326
        %v2340 = vrcp.pop %v2329
        %v2341 = vrcp.pop %v2332
        %v2342 = vrcp.pop %v2335
        %v2343 = vrcp.pop %v2338
        %v2344 = vmul.f32 %v2315, %v2339
        %v2345 = vmul.f32 %v2317, %v2340
        %v2346 = vmul.f32 %v2319, %v2341
        %v2347 = vmul.f32 %v2321, %v2342
        %v2348 = vmul.f32 %v2323, %v2343
        %v2349 = vpack.c.bf16 %v2345, %v2344
        %v2350 = vpack.c.bf16 %v2347, %v2346
        %v2351 = vpack.c.bf16 %v2348, %v2348
        %2352 = vrot.lane.b32.xlu0 %v1532, 32
        %v2353 = vpop.permute.xlu0 %2352
        %2354 = vrot.lane.b32.xlu0 %v1533, 32
        %v2355 = vpop.permute.xlu0 %2354
        %2356 = vrot.lane.b32.xlu0 %v1534, 32
        %v2357 = vpop.permute.xlu0 %2356
        %v2361 = vsel %vm1615, %v2349, 0
        %v2364 = vsel %vm1615, %v2350, 0
        %v2367 = vsel %vm1615, %v2351, 0
        %v2370 = vsel %vm1684, %v2357, 0
        %2372 = vmatprep.subr.bf16.mxu0 0
        %2373 = vmatpush1.bf16.msra.mxu0 %v2353
        %2374 = vmatprep.subr.bf16.mxu0 0
        %2375 = vmatpush1.bf16.msra.mxu0 %v2355
        %2376 = vmatprep.subr.bf16.mxu0 0
        %2377 = vmatpush1.bf16.msra.mxu0 %v2370
        %2378 = vmatprep.subr.bf16.mxu0 0
        %2379 = vmatpush1.bf16.msra.mxu0 0
        %2380 = vmatprep.subr.bf16.mxu0 0
        %2381 = vmatpush1.bf16.msra.mxu0 0
        %2382 = vmatprep.subr.bf16.mxu0 0
        %2383 = vmatpush1.bf16.msra.mxu0 0
        %2384 = vmatprep.subr.bf16.mxu0 0
        %2385 = vmatpush1.bf16.msra.mxu0 0
        %2386 = vmatprep.subr.bf16.mxu0 0
        %2387 = vmatpush1.bf16.msra.mxu0 0
        %2388 = vmatprep.subr.bf16.mxu0 0
        %2389 = vmatpush1.bf16.msra.mxu0 0
        %2390 = vmatprep.subr.bf16.mxu0 0
        %2391 = vmatpush1.bf16.msra.mxu0 0
        %2392 = vmatprep.subr.bf16.mxu0 0
        %2393 = vmatpush1.bf16.msra.mxu0 0
        %2394 = vmatprep.subr.bf16.mxu0 0
        %2395 = vmatpush1.bf16.msra.mxu0 0
        %2396 = vmatprep.subr.bf16.mxu0 0
        %2397 = vmatpush1.bf16.msra.mxu0 0
        %2398 = vmatprep.subr.bf16.mxu0 0
        %2399 = vmatpush1.bf16.msra.mxu0 0
        %2400 = vmatprep.subr.bf16.mxu0 0
        %2401 = vmatpush1.bf16.msra.mxu0 0
        %2402 = vmatprep.subr.bf16.mxu0 0
        %2403 = vmatpush1.bf16.msra.mxu0 0
        %2404 = vmatprep.mubr.bf16.mxu0 0
        %2405 = vmatmul.mubr.bf16.gmra.mrb[0].mxu0 %v2361
        %v2406 = vpop.f32.mrb[0].mxu0
        %v2407 = vadd.f32 0.0, %v2406
        %v2408 = vpop.f32.mrb[0].mxu0
        %v2409 = vpop.f32.mrb[0].mxu0
        %v2410 = vadd.f32 0.0, %v2409
        %v2411 = vpop.f32.mrb[0].mxu0
        %2412 = vmatprep.mubr.bf16.mxu0 0
        %2413 = vmatmul.mubr.bf16.gmra.mrb[0].mxu0 %v2364
        %v2414 = vpop.f32.mrb[0].mxu0
        %v2415 = vadd.f32 0.0, %v2414
        %v2416 = vpop.f32.mrb[0].mxu0
        %v2417 = vpop.f32.mrb[0].mxu0
        %v2418 = vadd.f32 0.0, %v2417
        %v2419 = vpop.f32.mrb[0].mxu0
        %2420 = vmatprep.mubr.bf16.mxu0 0
        %2421 = vmatmul.mubr.bf16.gmra.mrb[0].mxu0 %v2367
        %v2422 = vpop.f32.mrb[0].mxu0
        %v2423 = vadd.f32 0.0, %v2422
        %v2424 = vpop.f32.mrb[0].mxu0
        %v2425 = vpop.f32.mrb[0].mxu0
        %v2426 = vpop.f32.mrb[0].mxu0
        %2427 = vdwg.mxu0
        %2433 = vrot.lane.b32.xlu0 %v1957, 32
        %v2434 = vpop.permute.xlu0 %2433
        %2435 = vrot.lane.b32.xlu0 %v1960, 32
        %v2436 = vpop.permute.xlu0 %2435
        %2437 = vrot.lane.b32.xlu0 %v1965, 32
        %v2438 = vpop.permute.xlu0 %2437
        %2439 = vrot.lane.b32.xlu0 %v1968, 32
        %v2440 = vpop.permute.xlu0 %2439
        %2441 = vrot.lane.b32.xlu0 %v1973, 32
        %v2442 = vpop.permute.xlu0 %2441
        %2453 = vrot.lane.b32.xlu0 %v2182, 64
        %v2454 = vpop.permute.xlu0 %2453
        %2455 = vrot.lane.b32.xlu0 %v2185, 64
        %v2456 = vpop.permute.xlu0 %2455
        %2457 = vrot.lane.b32.xlu0 %v2190, 64
        %v2458 = vpop.permute.xlu0 %2457
        %2459 = vrot.lane.b32.xlu0 %v2193, 64
        %v2460 = vpop.permute.xlu0 %2459
        %2461 = vrot.lane.b32.xlu0 %v2198, 64
        %v2462 = vpop.permute.xlu0 %2461
        %2473 = vrot.lane.b32.xlu0 %v2407, 96
        %v2474 = vpop.permute.xlu0 %2473
        %2475 = vrot.lane.b32.xlu0 %v2410, 96
        %v2476 = vpop.permute.xlu0 %2475
        %2477 = vrot.lane.b32.xlu0 %v2415, 96
        %v2478 = vpop.permute.xlu0 %2477
        %2479 = vrot.lane.b32.xlu0 %v2418, 96
        %v2480 = vpop.permute.xlu0 %2479
        %2481 = vrot.lane.b32.xlu0 %v2423, 96
        %v2482 = vpop.permute.xlu0 %2481
        %v2488 = vsel %vm1535, %v1723, %v2434
        %v2489 = vsel %vm1535, %v1726, %v2436
        %v2490 = vsel %vm1535, %v1731, %v2438
        %v2491 = vsel %vm1535, %v1734, %v2440
        %v2492 = vsel %vm1535, %v1739, %v2442
        %vm2493 = vcmask 523264
        %v2494 = vsel %vm2493, %v2488, %v2454
        %v2495 = vsel %vm2493, %v2489, %v2456
        %v2496 = vsel %vm2493, %v2490, %v2458
        %v2497 = vsel %vm2493, %v2491, %v2460
        %v2498 = vsel %vm2493, %v2492, %v2462
        %vm2499 = vcmask 785408
        %v2500 = vsel %vm2499, %v2494, %v2474
        %v2501 = vsel %vm2499, %v2495, %v2476
        %v2502 = vsel %vm2499, %v2496, %v2478
        %v2503 = vsel %vm2499, %v2497, %v2480
        %v2504 = vsel %vm2499, %v2498, %v2482
        %v2505 = vpack.c.bf16 %v2501, %v2500
        %v2506 = vpack.c.bf16 %v2503, %v2502
        %v2507 = vpack.c.bf16 %v2504, %v2504
        %v2508 = vld [vmem:[%s852] sm:$0xf]
        %v2509 = vld [vmem:[%s852 + $0x4] sm:$0xf]
        %v2510 = vld [vmem:[%s852 + $0x8] sm:$0xf]
        %v2511 = vld [vmem:[%s852 + $0xc] sm:$0xf]
        %v2512 = vld [vmem:[%s852 + $0x10] sm:$0xf]
        %v2513 = vld [vmem:[%s852 + $0x14] sm:$0xf]
        %v2514 = vld [vmem:[%s852 + $0x18] sm:$0xf]
        %v2515 = vld [vmem:[%s852 + $0x1c] sm:$0xf]
        %v2516 = vld [vmem:[%s852 + $0x20] sm:$0xf]
        %v2517 = vld [vmem:[%s852 + $0x24] sm:$0xf]
        %v2518 = vld [vmem:[%s852 + $0x28] sm:$0xf]
        %v2519 = vld [vmem:[%s852 + $0x2c] sm:$0xf]
        %v2520 = vld [vmem:[%s852 + $0x30] sm:$0xf]
        %v2521 = vld [vmem:[%s852 + $0x34] sm:$0xf]
        %v2522 = vld [vmem:[%s852 + $0x38] sm:$0xf]
        %v2523 = vld [vmem:[%s852 + $0x3c] sm:$0xf]
        %v2524 = vld [vmem:[%s860] sm:$0x1]
        %v2526 = vlaneseq
        %v2527 = vshrl.u32 %v2526, 7
        %v2528 = vsub.s32 0, %v2527
        %v2529 = vrot.slane %v2524, %v2528
        %v2547 = vunpack.c.l.b16 %v2508
        %v2548 = vunpack.c.l.b16 %v2509
        %v2549 = vunpack.c.l.b16 %v2510
        %v2550 = vunpack.c.l.b16 %v2511
        %v2551 = vunpack.c.l.b16 %v2512
        %v2552 = vunpack.c.l.b16 %v2513
        %v2553 = vunpack.c.l.b16 %v2514
        %v2554 = vunpack.c.l.b16 %v2515
        %v2555 = vunpack.c.l.b16 %v2516
        %v2556 = vunpack.c.l.b16 %v2517
        %v2557 = vunpack.c.l.b16 %v2518
        %v2558 = vunpack.c.l.b16 %v2519
        %v2559 = vunpack.c.l.b16 %v2520
        %v2560 = vunpack.c.l.b16 %v2521
        %v2561 = vunpack.c.l.b16 %v2522
        %v2562 = vunpack.c.l.b16 %v2523
        %v2563 = vpack.c.b16 %v2548, %v2547
        %v2564 = vpack.c.b16 %v2550, %v2549
        %v2565 = vpack.c.b16 %v2552, %v2551
        %v2566 = vpack.c.b16 %v2554, %v2553
        %v2567 = vpack.c.b16 %v2556, %v2555
        %v2568 = vpack.c.b16 %v2558, %v2557
        %v2569 = vpack.c.b16 %v2560, %v2559
        %v2570 = vpack.c.b16 %v2562, %v2561
        %2579 = vmatprep.subr.bf16.mxu0 0
        %2580 = vmatpush1.bf16.msra.mxu0 %v2563
        %2581 = vmatprep.subr.bf16.mxu0 0
        %2582 = vmatpush1.bf16.msra.mxu0 %v2564
        %2583 = vmatprep.subr.bf16.mxu0 0
        %2584 = vmatpush1.bf16.msra.mxu0 %v2565
        %2585 = vmatprep.subr.bf16.mxu0 0
        %2586 = vmatpush1.bf16.msra.mxu0 %v2566
        %2587 = vmatprep.subr.bf16.mxu0 0
        %2588 = vmatpush1.bf16.msra.mxu0 %v2567
        %2589 = vmatprep.subr.bf16.mxu0 0
        %2590 = vmatpush1.bf16.msra.mxu0 %v2568
        %2591 = vmatprep.subr.bf16.mxu0 0
        %2592 = vmatpush1.bf16.msra.mxu0 %v2569
        %2593 = vmatprep.subr.bf16.mxu0 0
        %2594 = vmatpush1.bf16.msra.mxu0 %v2570
        %2595 = vmatprep.subr.bf16.mxu0 0
        %2596 = vmatpush1.bf16.msra.mxu0 0
        %2597 = vmatprep.subr.bf16.mxu0 0
        %2598 = vmatpush1.bf16.msra.mxu0 0
        %2599 = vmatprep.subr.bf16.mxu0 0
        %2600 = vmatpush1.bf16.msra.mxu0 0
        %2601 = vmatprep.subr.bf16.mxu0 0
        %2602 = vmatpush1.bf16.msra.mxu0 0
        %2603 = vmatprep.subr.bf16.mxu0 0
        %2604 = vmatpush1.bf16.msra.mxu0 0
        %2605 = vmatprep.subr.bf16.mxu0 0
        %2606 = vmatpush1.bf16.msra.mxu0 0
        %2607 = vmatprep.subr.bf16.mxu0 0
        %2608 = vmatpush1.bf16.msra.mxu0 0
        %2609 = vmatprep.subr.bf16.mxu0 0
        %2610 = vmatpush1.bf16.msra.mxu0 0
        %2611 = vmatprep.mubr.bf16.mxu0 0
        %2612 = vmatmul.mubr.bf16.gmra.mrb[0].mxu0 %v2505
        %v2613 = vpop.f32.mrb[0].mxu0
        %v2614 = vadd.f32 %v2529, %v2613
        %v2615 = vpop.f32.mrb[0].mxu0
        %v2616 = vpop.f32.mrb[0].mxu0
        %v2617 = vadd.f32 %v2529, %v2616
        %v2618 = vpop.f32.mrb[0].mxu0
        %2619 = vmatprep.mubr.bf16.mxu0 0
        %2620 = vmatmul.mubr.bf16.gmra.mrb[0].mxu0 %v2506
        %v2621 = vpop.f32.mrb[0].mxu0
        %v2622 = vadd.f32 %v2529, %v2621
        %v2623 = vpop.f32.mrb[0].mxu0
        %v2624 = vpop.f32.mrb[0].mxu0
        %v2625 = vadd.f32 %v2529, %v2624
        %v2626 = vpop.f32.mrb[0].mxu0
        %2627 = vmatprep.mubr.bf16.mxu0 0
        %2628 = vmatmul.mubr.bf16.gmra.mrb[0].mxu0 %v2507
        %v2629 = vpop.f32.mrb[0].mxu0
        %v2630 = vadd.f32 %v2529, %v2629
        %v2631 = vpop.f32.mrb[0].mxu0
        %v2632 = vpop.f32.mrb[0].mxu0
        %v2633 = vpop.f32.mrb[0].mxu0
        %2634 = vdwg.mxu0
        %v2635 = vadd.f32 %v1141, %v2614
        %v2636 = vadd.f32 %v1142, %v2617
        %v2637 = vadd.f32 %v1143, %v2622
        %v2638 = vadd.f32 %v1144, %v2625
        %v2639 = vadd.f32 %v1145, %v2630
        %v2640 = vld [vmem:[%s868] sm:$0x1]
        %v2641 = vld [vmem:[%s876] sm:$0x1]
        %2642 = vadd.xlane.f32.xlu0 %v2635
        %v2643 = vpop.xlane.xlu0 %2642
        %2644 = vadd.xlane.f32.xlu0 %v2636
        %v2645 = vpop.xlane.xlu0 %2644
        %2646 = vadd.xlane.f32.xlu0 %v2637
        %v2647 = vpop.xlane.xlu0 %2646
        %2648 = vadd.xlane.f32.xlu0 %v2638
        %v2649 = vpop.xlane.xlu0 %2648
        %v2650 = vsel %vm1156, %v2639, 0.0
        %2651 = vadd.xlane.f32.xlu0 %v2650
        %v2652 = vpop.xlane.xlu0 %2651
        %v2653 = vmul.f32 %v2643, %v1160
        %v2654 = vmul.f32 %v2645, %v1160
        %v2655 = vmul.f32 %v2647, %v1160
        %v2656 = vmul.f32 %v2649, %v1160
        %v2657 = vmul.f32 %v2652, %v1160
        %v2658 = vsub.f32 %v2635, %v2653
        %v2659 = vsub.f32 %v2636, %v2654
        %v2660 = vsub.f32 %v2637, %v2655
        %v2661 = vsub.f32 %v2638, %v2656
        %v2662 = vsub.f32 %v2639, %v2657
        %v2663 = vmul.f32 %v2658, %v2658
        %v2664 = vmul.f32 %v2659, %v2659
        %v2665 = vmul.f32 %v2660, %v2660
        %v2666 = vmul.f32 %v2661, %v2661
        %v2667 = vmul.f32 %v2662, %v2662
        %2668 = vadd.xlane.f32.xlu0 %v2663
        %v2669 = vpop.xlane.xlu0 %2668
        %2670 = vadd.xlane.f32.xlu0 %v2664
        %v2671 = vpop.xlane.xlu0 %2670
        %2672 = vadd.xlane.f32.xlu0 %v2665
        %v2673 = vpop.xlane.xlu0 %2672
        %2674 = vadd.xlane.f32.xlu0 %v2666
        %v2675 = vpop.xlane.xlu0 %2674
        %v2676 = vsel %vm1156, %v2667, 0.0
        %2677 = vadd.xlane.f32.xlu0 %v2676
        %v2678 = vpop.xlane.xlu0 %2677
        %v2679 = vmul.f32 %v2669, %v1160
        %v2680 = vmul.f32 %v2671, %v1160
        %v2681 = vmul.f32 %v2673, %v1160
        %v2682 = vmul.f32 %v2675, %v1160
        %v2683 = vmul.f32 %v2678, %v1160
        %v2684 = vadd.f32 %v2679, 1e-06
        %v2685 = vadd.f32 %v2680, 1e-06
        %v2686 = vadd.f32 %v2681, 1e-06
        %v2687 = vadd.f32 %v2682, 1e-06
        %v2688 = vadd.f32 %v2683, 1e-06
        %v2689 = vrsqrt.pop %v2684
        %v2690 = vrsqrt.pop %v2685
        %v2691 = vrsqrt.pop %v2686
        %v2692 = vrsqrt.pop %v2687
        %v2693 = vrsqrt.pop %v2688
        %v2694 = vmul.f32 %v2658, %v2689
        %v2695 = vmul.f32 %v2659, %v2690
        %v2696 = vmul.f32 %v2660, %v2691
        %v2697 = vmul.f32 %v2661, %v2692
        %v2698 = vmul.f32 %v2662, %v2693
        %v2700 = vlaneseq
        %v2701 = vshrl.u32 %v2700, 7
        %v2702 = vsub.s32 0, %v2701
        %v2703 = vrot.slane %v2640, %v2702
        %v2705 = vmul.f32 %v2694, %v2703
        %v2706 = vmul.f32 %v2695, %v2703
        %v2707 = vmul.f32 %v2696, %v2703
        %v2708 = vmul.f32 %v2697, %v2703
        %v2709 = vmul.f32 %v2698, %v2703
        %v2711 = vlaneseq
        %v2712 = vshrl.u32 %v2711, 7
        %v2713 = vsub.s32 0, %v2712
        %v2714 = vrot.slane %v2641, %v2713
        %v2716 = vadd.f32 %v2705, %v2714
        %v2717 = vadd.f32 %v2706, %v2714
        %v2718 = vadd.f32 %v2707, %v2714
        %v2719 = vadd.f32 %v2708, %v2714
        %v2720 = vadd.f32 %v2709, %v2714
        %v2721 = vpack.c.bf16 %v2717, %v2716
        %v2722 = vpack.c.bf16 %v2719, %v2718
        %v2723 = vpack.c.bf16 %v2720, %v2720
        %v2724 = vld [vmem:[%s885] sm:$0xff]
        %v2725 = vld [vmem:[%s885 + $0x8] sm:$0xff]
        %v2726 = vld [vmem:[%s885 + $0x10] sm:$0xff]
        %v2727 = vld [vmem:[%s885 + $0x18] sm:$0xff]
        %v2728 = vld [vmem:[%s885 + $0x20] sm:$0xff]
        %v2729 = vld [vmem:[%s885 + $0x28] sm:$0xff]
        %v2730 = vld [vmem:[%s885 + $0x30] sm:$0xff]
        %v2731 = vld [vmem:[%s885 + $0x38] sm:$0xff]
        %v2732 = vld [vmem:[%s885 + $0x40] sm:$0xff]
        %v2733 = vld [vmem:[%s885 + $0x48] sm:$0xff]
        %v2734 = vld [vmem:[%s885 + $0x50] sm:$0xff]
        %v2735 = vld [vmem:[%s885 + $0x58] sm:$0xff]
        %v2736 = vld [vmem:[%s885 + $0x60] sm:$0xff]
        %v2737 = vld [vmem:[%s885 + $0x68] sm:$0xff]
        %v2738 = vld [vmem:[%s885 + $0x70] sm:$0xff]
        %v2739 = vld [vmem:[%s885 + $0x78] sm:$0xff]
        %v2740 = vld [vmem:[%s894] sm:$0x3]
        %v2742 = vlaneseq
        %v2743 = vshrl.u32 %v2742, 7
        %v2744 = vsub.s32 0, %v2743
        %v2745 = vrot.slane %v2740, %v2744
        %v2746 = vlaneseq
        %v2747 = vshrl.u32 %v2746, 7
        %v2748 = vsub.s32 1, %v2747
        %v2749 = vrot.slane %v2740, %v2748
        %v2768 = vunpack.c.l.b16 %v2724
        %v2769 = vunpack.c.h.b16 %v2724
        %v2770 = vunpack.c.l.b16 %v2725
        %v2771 = vunpack.c.h.b16 %v2725
        %v2772 = vunpack.c.l.b16 %v2726
        %v2773 = vunpack.c.h.b16 %v2726
        %v2774 = vunpack.c.l.b16 %v2727
        %v2775 = vunpack.c.h.b16 %v2727
        %v2776 = vunpack.c.l.b16 %v2728
        %v2777 = vunpack.c.h.b16 %v2728
        %v2778 = vunpack.c.l.b16 %v2729
        %v2779 = vunpack.c.h.b16 %v2729
        %v2780 = vunpack.c.l.b16 %v2730
        %v2781 = vunpack.c.h.b16 %v2730
        %v2782 = vunpack.c.l.b16 %v2731
        %v2783 = vunpack.c.h.b16 %v2731
        %v2784 = vunpack.c.l.b16 %v2732
        %v2785 = vunpack.c.h.b16 %v2732
        %v2786 = vunpack.c.l.b16 %v2733
        %v2787 = vunpack.c.h.b16 %v2733
        %v2788 = vunpack.c.l.b16 %v2734
        %v2789 = vunpack.c.h.b16 %v2734
        %v2790 = vunpack.c.l.b16 %v2735
        %v2791 = vunpack.c.h.b16 %v2735
        %v2792 = vunpack.c.l.b16 %v2736
        %v2793 = vunpack.c.h.b16 %v2736
        %v2794 = vunpack.c.l.b16 %v2737
        %v2795 = vunpack.c.h.b16 %v2737
        %v2796 = vunpack.c.l.b16 %v2738
        %v2797 = vunpack.c.h.b16 %v2738
        %v2798 = vunpack.c.l.b16 %v2739
        %v2799 = vunpack.c.h.b16 %v2739
        %v2800 = vpack.c.b16 %v2770, %v2768
        %v2801 = vpack.c.b16 %v2771, %v2769
        %v2802 = vpack.c.b16 %v2774, %v2772
        %v2803 = vpack.c.b16 %v2775, %v2773
        %v2804 = vpack.c.b16 %v2778, %v2776
        %v2805 = vpack.c.b16 %v2779, %v2777
        %v2806 = vpack.c.b16 %v2782, %v2780
        %v2807 = vpack.c.b16 %v2783, %v2781
        %v2808 = vpack.c.b16 %v2786, %v2784
        %v2809 = vpack.c.b16 %v2787, %v2785
        %v2810 = vpack.c.b16 %v2790, %v2788
        %v2811 = vpack.c.b16 %v2791, %v2789
        %v2812 = vpack.c.b16 %v2794, %v2792
        %v2813 = vpack.c.b16 %v2795, %v2793
        %v2814 = vpack.c.b16 %v2798, %v2796
        %v2815 = vpack.c.b16 %v2799, %v2797
        %2832 = vmatprep.subr.bf16.mxu0 %v2801
        %2833 = vmatpush1.bf16.msra.mxu0 %v2800
        %2834 = vmatprep.subr.bf16.mxu0 %v2803
        %2835 = vmatpush1.bf16.msra.mxu0 %v2802
        %2836 = vmatprep.subr.bf16.mxu0 %v2805
        %2837 = vmatpush1.bf16.msra.mxu0 %v2804
        %2838 = vmatprep.subr.bf16.mxu0 %v2807
        %2839 = vmatpush1.bf16.msra.mxu0 %v2806
        %2840 = vmatprep.subr.bf16.mxu0 %v2809
        %2841 = vmatpush1.bf16.msra.mxu0 %v2808
        %2842 = vmatprep.subr.bf16.mxu0 %v2811
        %2843 = vmatpush1.bf16.msra.mxu0 %v2810
        %2844 = vmatprep.subr.bf16.mxu0 %v2813
        %2845 = vmatpush1.bf16.msra.mxu0 %v2812
        %2846 = vmatprep.subr.bf16.mxu0 %v2815
        %2847 = vmatpush1.bf16.msra.mxu0 %v2814
        %2848 = vmatprep.subr.bf16.mxu0 0
        %2849 = vmatpush1.bf16.msra.mxu0 0
        %2850 = vmatprep.subr.bf16.mxu0 0
        %2851 = vmatpush1.bf16.msra.mxu0 0
        %2852 = vmatprep.subr.bf16.mxu0 0
        %2853 = vmatpush1.bf16.msra.mxu0 0
        %2854 = vmatprep.subr.bf16.mxu0 0
        %2855 = vmatpush1.bf16.msra.mxu0 0
        %2856 = vmatprep.subr.bf16.mxu0 0
        %2857 = vmatpush1.bf16.msra.mxu0 0
        %2858 = vmatprep.subr.bf16.mxu0 0
        %2859 = vmatpush1.bf16.msra.mxu0 0
        %2860 = vmatprep.subr.bf16.mxu0 0
        %2861 = vmatpush1.bf16.msra.mxu0 0
        %2862 = vmatprep.subr.bf16.mxu0 0
        %2863 = vmatpush1.bf16.msra.mxu0 0
        %2864 = vmatprep.mubr.bf16.mxu0 0
        %2865 = vmatmul.mubr.bf16.gmra.mrb[0].mxu0 %v2721
        %v2866 = vpop.f32.mrb[0].mxu0
        %v2867 = vadd.f32 %v2745, %v2866
        %v2868 = vpop.f32.mrb[0].mxu0
        %v2869 = vadd.f32 %v2749, %v2868
        %v2870 = vpop.f32.mrb[0].mxu0
        %v2871 = vadd.f32 %v2745, %v2870
        %v2872 = vpop.f32.mrb[0].mxu0
        %v2873 = vadd.f32 %v2749, %v2872
        %2874 = vmatprep.mubr.bf16.mxu0 0
        %2875 = vmatmul.mubr.bf16.gmra.mrb[0].mxu0 %v2722
        %v2876 = vpop.f32.mrb[0].mxu0
        %v2877 = vadd.f32 %v2745, %v2876
        %v2878 = vpop.f32.mrb[0].mxu0
        %v2879 = vadd.f32 %v2749, %v2878
        %v2880 = vpop.f32.mrb[0].mxu0
        %v2881 = vadd.f32 %v2745, %v2880
        %v2882 = vpop.f32.mrb[0].mxu0
        %v2883 = vadd.f32 %v2749, %v2882
        %2884 = vmatprep.mubr.bf16.mxu0 0
        %2885 = vmatmul.mubr.bf16.gmra.mrb[0].mxu0 %v2723
        %v2886 = vpop.f32.mrb[0].mxu0
        %v2887 = vadd.f32 %v2745, %v2886
        %v2888 = vpop.f32.mrb[0].mxu0
        %v2889 = vadd.f32 %v2749, %v2888
        %v2890 = vpop.f32.mrb[0].mxu0
        %v2891 = vpop.f32.mrb[0].mxu0
        %2892 = vdwg.mxu0
        %v2893 = vmul.f32 %v2867, 0.5
        %v2894 = vmul.f32 %v2869, 0.5
        %v2895 = vmul.f32 %v2871, 0.5
        %v2896 = vmul.f32 %v2873, 0.5
        %v2897 = vmul.f32 %v2877, 0.5
        %v2898 = vmul.f32 %v2879, 0.5
        %v2899 = vmul.f32 %v2881, 0.5
        %v2900 = vmul.f32 %v2883, 0.5
        %v2901 = vmul.f32 %v2887, 0.5
        %v2902 = vmul.f32 %v2889, 0.5
        %v2903 = vmul.f32 %v2867, 0.044715
        %v2904 = vmul.f32 %v2869, 0.044715
        %v2905 = vmul.f32 %v2871, 0.044715
        %v2906 = vmul.f32 %v2873, 0.044715
        %v2907 = vmul.f32 %v2877, 0.044715
        %v2908 = vmul.f32 %v2879, 0.044715
        %v2909 = vmul.f32 %v2881, 0.044715
        %v2910 = vmul.f32 %v2883, 0.044715
        %v2911 = vmul.f32 %v2887, 0.044715
        %v2912 = vmul.f32 %v2889, 0.044715
        %v2913 = vmul.f32 %v2903, %v2867
        %v2914 = vmul.f32 %v2904, %v2869
        %v2915 = vmul.f32 %v2905, %v2871
        %v2916 = vmul.f32 %v2906, %v2873
        %v2917 = vmul.f32 %v2907, %v2877
        %v2918 = vmul.f32 %v2908, %v2879
        %v2919 = vmul.f32 %v2909, %v2881
        %v2920 = vmul.f32 %v2910, %v2883
        %v2921 = vmul.f32 %v2911, %v2887
        %v2922 = vmul.f32 %v2912, %v2889
        %v2923 = vmul.f32 %v2913, %v2867
        %v2924 = vmul.f32 %v2914, %v2869
        %v2925 = vmul.f32 %v2915, %v2871
        %v2926 = vmul.f32 %v2916, %v2873
        %v2927 = vmul.f32 %v2917, %v2877
        %v2928 = vmul.f32 %v2918, %v2879
        %v2929 = vmul.f32 %v2919, %v2881
        %v2930 = vmul.f32 %v2920, %v2883
        %v2931 = vmul.f32 %v2921, %v2887
        %v2932 = vmul.f32 %v2922, %v2889
        %v2933 = vadd.f32 %v2867, %v2923
        %v2934 = vadd.f32 %v2869, %v2924
        %v2935 = vadd.f32 %v2871, %v2925
        %v2936 = vadd.f32 %v2873, %v2926
        %v2937 = vadd.f32 %v2877, %v2927
        %v2938 = vadd.f32 %v2879, %v2928
        %v2939 = vadd.f32 %v2881, %v2929
        %v2940 = vadd.f32 %v2883, %v2930
        %v2941 = vadd.f32 %v2887, %v2931
        %v2942 = vadd.f32 %v2889, %v2932
        %v2943 = vmul.f32 %v2933, 0.7978846
        %v2944 = vmul.f32 %v2934, 0.7978846
        %v2945 = vmul.f32 %v2935, 0.7978846
        %v2946 = vmul.f32 %v2936, 0.7978846
        %v2947 = vmul.f32 %v2937, 0.7978846
        %v2948 = vmul.f32 %v2938, 0.7978846
        %v2949 = vmul.f32 %v2939, 0.7978846
        %v2950 = vmul.f32 %v2940, 0.7978846
        %v2951 = vmul.f32 %v2941, 0.7978846
        %v2952 = vmul.f32 %v2942, 0.7978846
        %v2953 = vtanh.pop %v2943
        %v2954 = vtanh.pop %v2944
        %v2955 = vtanh.pop %v2945
        %v2956 = vtanh.pop %v2946
        %v2957 = vtanh.pop %v2947
        %v2958 = vtanh.pop %v2948
        %v2959 = vtanh.pop %v2949
        %v2960 = vtanh.pop %v2950
        %v2961 = vtanh.pop %v2951
        %v2962 = vtanh.pop %v2952
        %v2963 = vadd.f32 %v2953, 1.0
        %v2964 = vadd.f32 %v2954, 1.0
        %v2965 = vadd.f32 %v2955, 1.0
        %v2966 = vadd.f32 %v2956, 1.0
        %v2967 = vadd.f32 %v2957, 1.0
        %v2968 = vadd.f32 %v2958, 1.0
        %v2969 = vadd.f32 %v2959, 1.0
        %v2970 = vadd.f32 %v2960, 1.0
        %v2971 = vadd.f32 %v2961, 1.0
        %v2972 = vadd.f32 %v2962, 1.0
        %v2973 = vmul.f32 %v2893, %v2963
        %v2974 = vmul.f32 %v2894, %v2964
        %v2975 = vmul.f32 %v2895, %v2965
        %v2976 = vmul.f32 %v2896, %v2966
        %v2977 = vmul.f32 %v2897, %v2967
        %v2978 = vmul.f32 %v2898, %v2968
        %v2979 = vmul.f32 %v2899, %v2969
        %v2980 = vmul.f32 %v2900, %v2970
        %v2981 = vmul.f32 %v2901, %v2971
        %v2982 = vmul.f32 %v2902, %v2972
        %v2983 = vpack.c.bf16 %v2975, %v2973
        %v2984 = vpack.c.bf16 %v2976, %v2974
        %v2985 = vpack.c.bf16 %v2979, %v2977
        %v2986 = vpack.c.bf16 %v2980, %v2978
        %v2987 = vpack.c.bf16 %v2981, %v2981
        %v2988 = vpack.c.bf16 %v2982, %v2982
        %v2989 = vld [vmem:[%s903] sm:$0xf]
        %v2990 = vld [vmem:[%s903 + $0x4] sm:$0xf]
        %v2991 = vld [vmem:[%s903 + $0x8] sm:$0xf]
        %v2992 = vld [vmem:[%s903 + $0xc] sm:$0xf]
        %v2993 = vld [vmem:[%s903 + $0x10] sm:$0xf]
        %v2994 = vld [vmem:[%s903 + $0x14] sm:$0xf]
        %v2995 = vld [vmem:[%s903 + $0x18] sm:$0xf]
        %v2996 = vld [vmem:[%s903 + $0x1c] sm:$0xf]
        %v2997 = vld [vmem:[%s903 + $0x20] sm:$0xf]
        %v2998 = vld [vmem:[%s903 + $0x24] sm:$0xf]
        %v2999 = vld [vmem:[%s903 + $0x28] sm:$0xf]
        %v3000 = vld [vmem:[%s903 + $0x2c] sm:$0xf]
        %v3001 = vld [vmem:[%s903 + $0x30] sm:$0xf]
        %v3002 = vld [vmem:[%s903 + $0x34] sm:$0xf]
        %v3003 = vld [vmem:[%s903 + $0x38] sm:$0xf]
        %v3004 = vld [vmem:[%s903 + $0x3c] sm:$0xf]
        %v3005 = vld [vmem:[%s903 + $0x40] sm:$0xf]
        %v3006 = vld [vmem:[%s903 + $0x44] sm:$0xf]
        %v3007 = vld [vmem:[%s903 + $0x48] sm:$0xf]
        %v3008 = vld [vmem:[%s903 + $0x4c] sm:$0xf]
        %v3009 = vld [vmem:[%s903 + $0x50] sm:$0xf]
        %v3010 = vld [vmem:[%s903 + $0x54] sm:$0xf]
        %v3011 = vld [vmem:[%s903 + $0x58] sm:$0xf]
        %v3012 = vld [vmem:[%s903 + $0x5c] sm:$0xf]
        %v3013 = vld [vmem:[%s903 + $0x60] sm:$0xf]
        %v3014 = vld [vmem:[%s903 + $0x64] sm:$0xf]
        %v3015 = vld [vmem:[%s903 + $0x68] sm:$0xf]
        %v3016 = vld [vmem:[%s903 + $0x6c] sm:$0xf]
        %v3017 = vld [vmem:[%s903 + $0x70] sm:$0xf]
        %v3018 = vld [vmem:[%s903 + $0x74] sm:$0xf]
        %v3019 = vld [vmem:[%s903 + $0x78] sm:$0xf]
        %v3020 = vld [vmem:[%s903 + $0x7c] sm:$0xf]
        %v3021 = vld [vmem:[%s911] sm:$0x1]
        %v3023 = vlaneseq
        %v3024 = vshrl.u32 %v3023, 7
        %v3025 = vsub.s32 0, %v3024
        %v3026 = vrot.slane %v3021, %v3025
        %v3060 = vunpack.c.l.b16 %v2989
        %v3061 = vunpack.c.l.b16 %v2990
        %v3062 = vunpack.c.l.b16 %v2991
        %v3063 = vunpack.c.l.b16 %v2992
        %v3064 = vunpack.c.l.b16 %v2993
        %v3065 = vunpack.c.l.b16 %v2994
        %v3066 = vunpack.c.l.b16 %v2995
        %v3067 = vunpack.c.l.b16 %v2996
        %v3068 = vunpack.c.l.b16 %v2997
        %v3069 = vunpack.c.l.b16 %v2998
        %v3070 = vunpack.c.l.b16 %v2999
        %v3071 = vunpack.c.l.b16 %v3000
        %v3072 = vunpack.c.l.b16 %v3001
        %v3073 = vunpack.c.l.b16 %v3002
        %v3074 = vunpack.c.l.b16 %v3003
        %v3075 = vunpack.c.l.b16 %v3004
        %v3076 = vunpack.c.l.b16 %v3005
        %v3077 = vunpack.c.l.b16 %v3006
        %v3078 = vunpack.c.l.b16 %v3007
        %v3079 = vunpack.c.l.b16 %v3008
        %v3080 = vunpack.c.l.b16 %v3009
        %v3081 = vunpack.c.l.b16 %v3010
        %v3082 = vunpack.c.l.b16 %v3011
        %v3083 = vunpack.c.l.b16 %v3012
        %v3084 = vunpack.c.l.b16 %v3013
        %v3085 = vunpack.c.l.b16 %v3014
        %v3086 = vunpack.c.l.b16 %v3015
        %v3087 = vunpack.c.l.b16 %v3016
        %v3088 = vunpack.c.l.b16 %v3017
        %v3089 = vunpack.c.l.b16 %v3018
        %v3090 = vunpack.c.l.b16 %v3019
        %v3091 = vunpack.c.l.b16 %v3020
        %v3092 = vpack.c.b16 %v3061, %v3060
        %v3093 = vpack.c.b16 %v3063, %v3062
        %v3094 = vpack.c.b16 %v3065, %v3064
        %v3095 = vpack.c.b16 %v3067, %v3066
        %v3096 = vpack.c.b16 %v3069, %v3068
        %v3097 = vpack.c.b16 %v3071, %v3070
        %v3098 = vpack.c.b16 %v3073, %v3072
        %v3099 = vpack.c.b16 %v3075, %v3074
        %v3100 = vpack.c.b16 %v3077, %v3076
        %v3101 = vpack.c.b16 %v3079, %v3078
        %v3102 = vpack.c.b16 %v3081, %v3080
        %v3103 = vpack.c.b16 %v3083, %v3082
        %v3104 = vpack.c.b16 %v3085, %v3084
        %v3105 = vpack.c.b16 %v3087, %v3086
        %v3106 = vpack.c.b16 %v3089, %v3088
        %v3107 = vpack.c.b16 %v3091, %v3090
        %3124 = vmatprep.subr.bf16.mxu0 0
        %3125 = vmatpush1.bf16.msra.mxu0 %v3092
        %3126 = vmatprep.subr.bf16.mxu0 0
        %3127 = vmatpush1.bf16.msra.mxu0 %v3093
        %3128 = vmatprep.subr.bf16.mxu0 0
        %3129 = vmatpush1.bf16.msra.mxu0 %v3094
        %3130 = vmatprep.subr.bf16.mxu0 0
        %3131 = vmatpush1.bf16.msra.mxu0 %v3095
        %3132 = vmatprep.subr.bf16.mxu0 0
        %3133 = vmatpush1.bf16.msra.mxu0 %v3096
        %3134 = vmatprep.subr.bf16.mxu0 0
        %3135 = vmatpush1.bf16.msra.mxu0 %v3097
        %3136 = vmatprep.subr.bf16.mxu0 0
        %3137 = vmatpush1.bf16.msra.mxu0 %v3098
        %3138 = vmatprep.subr.bf16.mxu0 0
        %3139 = vmatpush1.bf16.msra.mxu0 %v3099
        %3140 = vmatprep.subr.bf16.mxu0 0
        %3141 = vmatpush1.bf16.msra.mxu0 %v3100
        %3142 = vmatprep.subr.bf16.mxu0 0
        %3143 = vmatpush1.bf16.msra.mxu0 %v3101
        %3144 = vmatprep.subr.bf16.mxu0 0
        %3145 = vmatpush1.bf16.msra.mxu0 %v3102
        %3146 = vmatprep.subr.bf16.mxu0 0
        %3147 = vmatpush1.bf16.msra.mxu0 %v3103
        %3148 = vmatprep.subr.bf16.mxu0 0
        %3149 = vmatpush1.bf16.msra.mxu0 %v3104
        %3150 = vmatprep.subr.bf16.mxu0 0
        %3151 = vmatpush1.bf16.msra.mxu0 %v3105
        %3152 = vmatprep.subr.bf16.mxu0 0
        %3153 = vmatpush1.bf16.msra.mxu0 %v3106
        %3154 = vmatprep.subr.bf16.mxu0 0
        %3155 = vmatpush1.bf16.msra.mxu0 %v3107
        %3156 = vmatprep.mubr.bf16.mxu0 %v2984
        %3157 = vmatmul.mubr.bf16.gmra.mrb[0].mxu0 %v2983
        %v3158 = vpop.f32.mrb[0].mxu0
        %v3159 = vadd.f32 %v3026, %v3158
        %v3160 = vpop.f32.mrb[0].mxu0
        %v3161 = vpop.f32.mrb[0].mxu0
        %v3162 = vadd.f32 %v3026, %v3161
        %v3163 = vpop.f32.mrb[0].mxu0
        %3164 = vmatprep.mubr.bf16.mxu0 %v2986
        %3165 = vmatmul.mubr.bf16.gmra.mrb[0].mxu0 %v2985
        %v3166 = vpop.f32.mrb[0].mxu0
        %v3167 = vadd.f32 %v3026, %v3166
        %v3168 = vpop.f32.mrb[0].mxu0
        %v3169 = vpop.f32.mrb[0].mxu0
        %v3170 = vadd.f32 %v3026, %v3169
        %v3171 = vpop.f32.mrb[0].mxu0
        %3172 = vmatprep.mubr.bf16.mxu0 %v2988
        %3173 = vmatmul.mubr.bf16.gmra.mrb[0].mxu0 %v2987
        %v3174 = vpop.f32.mrb[0].mxu0
        %v3175 = vadd.f32 %v3026, %v3174
        %v3176 = vpop.f32.mrb[0].mxu0
        %v3177 = vpop.f32.mrb[0].mxu0
        %v3178 = vpop.f32.mrb[0].mxu0
        %3179 = vdwg.mxu0
        %v3180 = vadd.f32 %v2635, %v3159
        %v3181 = vadd.f32 %v2636, %v3162
        %v3182 = vadd.f32 %v2637, %v3167
        %v3183 = vadd.f32 %v2638, %v3170
        %v3184 = vadd.f32 %v2639, %v3175
        %3185 = vst [vmem:[#allocation2] sm:$0xff] %v3180
        %3186 = vst [vmem:[#allocation2 + $0x8] sm:$0xff] %v3181
        %3187 = vst [vmem:[#allocation2 + $0x10] sm:$0xff] %v3182
        %3188 = vst [vmem:[#allocation2 + $0x18] sm:$0xff] %v3183
        %3189 = vst [vmem:[#allocation2 + $0x20] sm:$0xf] %v3184
        %p3190 = scmp.eq.s32.totalorder %s58, 1
        // Predicated region
        $region153: #{tpu_custom_call.1} parent=83 // pred_check
          %p3191 = pneg %p3190
        $region154: #{tpu_custom_call.1} parent=83 // pred_check_branch
          %3193 = sbr.rel (%p3191) target = $region156
        $region155: #{tpu_custom_call.1} parent=83 // pred_region
          %v3194 = vld [vmem:[#allocation27] sm:$0xff]
          %v3195 = vld [vmem:[#allocation27 + $0x8] sm:$0xff]
          %v3197 = vsel %vm1615, %v3194, 0
          %v3200 = vsel %vm1615, %v3195, 0
          %v3203 = vsel %vm1156, %v3184, 0
          %3205 = vmatprep.subr.mxu0 0.0
          %3206 = vmatpush1.msra.mxu0 %v3180
          %3207 = vmatprep.subr.mxu0 0.0
          %3208 = vmatpush1.msra.mxu0 %v3181
          %3209 = vmatprep.subr.mxu0 0.0
          %3210 = vmatpush1.msra.mxu0 %v3182
          %3211 = vmatprep.subr.mxu0 0.0
          %3212 = vmatpush1.msra.mxu0 %v3183
          %3213 = vmatprep.subr.mxu0 0.0
          %3214 = vmatpush1.msra.mxu0 %v3203
          %3215 = vmatprep.subr.mxu0 0.0
          %3216 = vmatpush1.msra.mxu0 0.0
          %3217 = vmatprep.subr.mxu0 0.0
          %3218 = vmatpush1.msra.mxu0 0.0
          %3219 = vmatprep.subr.mxu0 0.0
          %3220 = vmatpush1.msra.mxu0 0.0
          %3221 = vmatprep.subr.mxu0 0.0
          %3222 = vmatpush1.msra.mxu0 0.0
          %3223 = vmatprep.subr.mxu0 0.0
          %3224 = vmatpush1.msra.mxu0 0.0
          %3225 = vmatprep.subr.mxu0 0.0
          %3226 = vmatpush1.msra.mxu0 0.0
          %3227 = vmatprep.subr.mxu0 0.0
          %3228 = vmatpush1.msra.mxu0 0.0
          %3229 = vmatprep.subr.mxu0 0.0
          %3230 = vmatpush1.msra.mxu0 0.0
          %3231 = vmatprep.subr.mxu0 0.0
          %3232 = vmatpush1.msra.mxu0 0.0
          %3233 = vmatprep.subr.mxu0 0.0
          %3234 = vmatpush1.msra.mxu0 0.0
          %3235 = vmatprep.subr.mxu0 0.0
          %3236 = vmatpush1.msra.mxu0 0.0
          %3237 = vmatprep.subr.mxu0 0.0
          %3238 = vmatpush1.msra.mxu0 0.0
          %3239 = vmatprep.subr.mxu0 0.0
          %3240 = vmatpush1.msra.mxu0 0.0
          %3241 = vmatprep.subr.mxu0 0.0
          %3242 = vmatpush1.msra.mxu0 0.0
          %3243 = vmatprep.subr.mxu0 0.0
          %3244 = vmatpush1.msra.mxu0 0.0
          %3245 = vmatprep.subr.mxu0 0.0
          %3246 = vmatpush1.msra.mxu0 0.0
          %3247 = vmatprep.subr.mxu0 0.0
          %3248 = vmatpush1.msra.mxu0 0.0
          %3249 = vmatprep.subr.mxu0 0.0
          %3250 = vmatpush1.msra.mxu0 0.0
          %3251 = vmatprep.subr.mxu0 0.0
          %3252 = vmatpush1.msra.mxu0 0.0
          %3253 = vmatprep.subr.mxu0 0.0
          %3254 = vmatpush1.msra.mxu0 0.0
          %3255 = vmatprep.subr.mxu0 0.0
          %3256 = vmatpush1.msra.mxu0 0.0
          %3257 = vmatprep.subr.mxu0 0.0
          %3258 = vmatpush1.msra.mxu0 0.0
          %3259 = vmatprep.subr.mxu0 0.0
          %3260 = vmatpush1.msra.mxu0 0.0
          %3261 = vmatprep.subr.mxu0 0.0
          %3262 = vmatpush1.msra.mxu0 0.0
          %3263 = vmatprep.subr.mxu0 0.0
          %3264 = vmatpush1.msra.mxu0 0.0
          %3265 = vmatprep.subr.mxu0 0.0
          %3266 = vmatpush1.msra.mxu0 0.0
          %3267 = vmatprep.subr.mxu0 0.0
          %3268 = vmatpush1.msra.mxu0 0.0
          %3269 = vmatprep.mubr.f32.mxu0 0.0
          %3270 = vmatmul.mubr.f32.gmra.mrb[0].mxu0 %v3197
          %v3271 = vpop.f32.mrb[0].mxu0
          %v3272 = vadd.f32 0.0, %v3271
          %v3273 = vpop.f32.mrb[0].mxu0
          %3274 = vmatprep.mubr.f32.mxu0 0.0
          %3275 = vmatmul.mubr.f32.gmra.mrb[0].mxu0 %v3200
          %v3276 = vpop.f32.mrb[0].mxu0
          %v3277 = vadd.f32 0.0, %v3276
          %v3278 = vpop.f32.mrb[0].mxu0
          %3279 = vdwg.mxu0
          %v3280 = vmul.f32 %v3272, %v3272
          %v3281 = vmul.f32 %v3277, %v3277
          %3282 = vadd.xlane.f32.xlu0 %v3280
          %v3283 = vpop.xlane.xlu0 %3282
          %3284 = vadd.xlane.f32.xlu0 %v3281
          %v3285 = vpop.xlane.xlu0 %3284
          %v3286 = vrsqrt.pop %v3283
          %v3287 = vmul.f32 %v3283, %v3286
          %vm3288 = vcmp.eq.f32.partialorder %v3283, inf
          %v3289 = vsel %vm3288, %v3283, %v3287
          %vm3290 = vcmp.eq.f32.partialorder %v3283, 0.0
          %v3291 = vand.u32 %v3283, 2147483648
          %v3292 = vsel %vm3290, %v3291, %v3289
          %v3293 = vrsqrt.pop %v3285
          %v3294 = vmul.f32 %v3285, %v3293
          %vm3295 = vcmp.eq.f32.partialorder %v3285, inf
          %v3296 = vsel %vm3295, %v3285, %v3294
          %vm3297 = vcmp.eq.f32.partialorder %v3285, 0.0
          %v3298 = vand.u32 %v3285, 2147483648
          %v3299 = vsel %vm3297, %v3298, %v3296
          %v3300 = vmax.f32 %v3292, 1e-12
          %v3301 = vmax.f32 %v3299, 1e-12
          %v3302 = vrcp.pop %v3300
          %v3303 = vmul.f32 %v3272, %v3302
          %v3304 = vrcp.pop %v3301
          %v3305 = vmul.f32 %v3277, %v3304
          %3306 = vst [vmem:[%s1017] sm:$0xff] %v3303
          %3307 = vst [vmem:[%s1017 + $0x8] sm:$0xff] %v3305
        $region156: #{tpu_custom_call.1} parent=83 // pred_fallthru
          _
        %s3308 = sand.u32 %s474, 1
        %s3309 = scalar_lea.sflag [#allocation5], %s3308
        %s3310 = sand.u32 %s474, 1
        %s3311 = smul.addr %s3310, 16
        %s3312 = scalar_lea.vmem [#allocation29], %s3311
        // Predicated region
        $region157: #{tpu_custom_call.1} parent=83 // pred_check
          %p3313 = pneg %p484
        $region158: #{tpu_custom_call.1} parent=83 // pred_check_branch
          %3315 = sbr.rel (%p3313) target = $region160
        $region159: #{tpu_custom_call.1} parent=83 // pred_region
          %s3317 = ssub.s32 256, 256
          %3318 = vsyncadd %s3309, %s3317
          %s3319 = smul.addr %s57, 2
          %s3320 = smul.addr %s3319, 128
          %s3321 = scalar_lea.hbm %s16, %s3320
          %s3322 = sshll.u32 %s3312, 4
          %s3323 = int_to_ptr.vmem [resolvable:$true] %s3322
          %3328 = dma.vmem_to_hbm [thread:$0]  %s3323, 256, %s3321, %s3309, 128, 128, 8
        $region160: #{tpu_custom_call.1} parent=83 // pred_fallthru
          _
      $region84: #{tpu_custom_call.1} parent=5 // pred_fallthru
        _
      %p3329 = scmp.le.s32.totalorder 2, %s48
      // Predicated region
      $region161: #{tpu_custom_call.1} parent=5 // pred_check
        %p3330 = pneg %p3329
      $region162: #{tpu_custom_call.1} parent=5 // pred_check_branch
        %3332 = sbr.rel (%p3330) target = $region164
      $region163: #{tpu_custom_call.1} parent=5 // pred_region
        %s3333 = ssub.s32 %s48, 2
        // Predicated region
        $region165: #{tpu_custom_call.1} parent=163 // pred_check
          %p3334 = pneg %p490
        $region166: #{tpu_custom_call.1} parent=163 // pred_check_branch
          %3336 = sbr.rel (%p3334) target = $region168
        $region167: #{tpu_custom_call.1} parent=163 // pred_region
          %s3337 = sand.u32 %s475, 1
          %s3338 = scalar_lea.sflag [#allocation5], %s3337
          %s3339 = sand.u32 %s475, 1
          %s3340 = smul.addr %s3339, 16
          %s3341 = scalar_lea.vmem [#allocation29], %s3340
          %3342 = dma.done %s3338, 256
        $region168: #{tpu_custom_call.1} parent=163 // pred_fallthru
          _
      $region164: #{tpu_custom_call.1} parent=5 // pred_fallthru
        _
    $region6: #{tpu_custom_call.1} parent=1 // loop_footer
      %s52 = sadd.s32 1, %s48
    $region7: #{tpu_custom_call.1} parent=1 // loop_footer_branch
      %47 = sbr.rel target = $region3
    $region8: #{tpu_custom_call.1} parent=1 // loop_exit
      _
    %3343 = vsyncpa [#allocation4], 1
    %s3344 = scalar_lea.sflag [#allocation4], 1
    %3345 = vsyncpa %s3344, 1
    %3346 = vsyncpa [#allocation7], 1
    %3347 = vsyncpa [#allocation10], 1
    %s3348 = scalar_lea.sflag [#allocation10], 1
    %3349 = vsyncpa %s3348, 1
    %3350 = vsyncpa [#allocation13], 1
    %s3351 = scalar_lea.sflag [#allocation13], 1
    %3352 = vsyncpa %s3351, 1
    %3353 = vsyncpa [#allocation16], 1
    %s3354 = scalar_lea.sflag [#allocation16], 1
    %3355 = vsyncpa %s3354, 1
    %3356 = vsyncpa [#allocation19], 1
    %s3357 = scalar_lea.sflag [#allocation19], 1
    %3358 = vsyncpa %s3357, 1
    %3359 = vsyncpa [#allocation22], 1
    %s3360 = scalar_lea.sflag [#allocation22], 1
    %3361 = vsyncpa %s3360, 1
    %3362 = vsyncpa [#allocation25], 1
    %s3363 = scalar_lea.sflag [#allocation25], 1
    %3364 = vsyncpa %s3363, 1
    %3365 = vsyncpa [#allocation28], 1
    %3366 = vsyncpa [#allocation5], 1
    %s3367 = scalar_lea.sflag [#allocation5], 1
    %3368 = vsyncpa %s3367, 1

</llo_original>
